<compile_context>
chip_gen: v7x
topology: tpu7x:2x2x1
jax: 0.10.0
libtpu: 0.0.40
codegen_flags: <defaults>
</compile_context>

<pallas_src>
import jax
import jax.numpy as jnp
from jax.experimental import pallas as pl
from jax.experimental.pallas import tpu as pltpu

N_FEATURES = 7
HIDDEN_NODES = [7, 7]
OUTPUT_NODES = 7
NUM_LAYERS = len(HIDDEN_NODES) + 1          # 3 Linear(+ReLU) layers

GROUPS_PER_ROW = 128                        # samples per lane-dense row
LANES = N_FEATURES * GROUPS_PER_ROW         # 896 = 7 * 128 (multiple of 128)
SHIFTS = tuple(range(-(N_FEATURES - 1), N_FEATURES))   # -6 .. 6 (13 shifts)
SHIFT_ZERO_IDX = SHIFTS.index(0)
N_SHIFTS = len(SHIFTS)

MAX_BLOCK_ROWS = 256        # 256 rows * 128 = 32768 samples / grid step
SMALL_BATCH_XLA = 1024      # below this, plain XLA is faster than a launch


# --------------------------------------------------------------------------
# Kernel: operates on the interleaved lane-dense view.
#   element (r, c) of a block  <->  sample (block_row_offset + r)*128 + c//7,
#                                   feature c % 7
# --------------------------------------------------------------------------
def _mlp_softmax_kernel(x_ref, coef_ref, bias_ref, addmask_ref, summask_ref, o_ref):
    h = x_ref[...]                                   # (rows, 896) f32

    # --- 3 x (Linear + ReLU), all in the interleaved layout -----------------
    # y[c] = b[c%7] + sum_d coef_d[c] * h[c - d],  coef_d[c] = W[o, o-d] (o=c%7)
    # Lanes whose source would wrap out of the 7-lane group have coef 0, so the
    # circular wrap of jnp.roll never contaminates the result.
    for l in range(NUM_LAYERS):
        base = l * N_SHIFTS
        acc = h * coef_ref[base + SHIFT_ZERO_IDX:base + SHIFT_ZERO_IDX + 1, :]
        for si, d in enumerate(SHIFTS):
            if d == 0:
                continue
            z = jnp.roll(h, d, axis=-1)              # static lane shift (XLU)
            acc = acc + z * coef_ref[base + si:base + si + 1, :]
        h = jnp.maximum(acc + bias_ref[l:l + 1, :], 0.0)

    # --- softmax over each sample's 7 lanes ---------------------------------
    # group max (additive -inf mask kills out-of-group lanes)
    m = h
    for si, d in enumerate(SHIFTS):
        if d == 0:
            continue
        m = jnp.maximum(m, jnp.roll(h, d, axis=-1) + addmask_ref[si:si + 1, :])
    e = jnp.exp(h - m)
    # group sum (multiplicative 0/1 mask)
    s = e
    for si, d in enumerate(SHIFTS):
        if d == 0:
            continue
        s = s + jnp.roll(e, d, axis=-1) * summask_ref[si:si + 1, :]
    # exact normalization (review: approx reciprocal buys nothing here)
    o_ref[...] = (e / s).astype(o_ref.dtype)


# --------------------------------------------------------------------------
# Host-side helpers
# --------------------------------------------------------------------------
def _build_lane_tables(weights, biases):
    """Per-lane coefficient / bias / mask rows for the interleaved layout."""
    W = jnp.asarray(weights, jnp.float32)            # (L, 7, 7)  PyTorch (out, in)
    b = jnp.asarray(biases, jnp.float32)             # (L, 7)
    o = jnp.arange(LANES) % N_FEATURES               # output feature per lane

    coef_rows, sum_rows, add_rows = [], [], []
    for d in SHIFTS:
        i = o - d                                    # source feature per lane
        valid = (i >= 0) & (i < N_FEATURES)
        i_c = jnp.clip(i, 0, N_FEATURES - 1)
        coef_rows.append(jnp.where(valid[None, :], W[:, o, i_c], 0.0))   # (L, 896)
        sum_rows.append(jnp.where(valid, 1.0, 0.0))
        add_rows.append(jnp.where(valid, 0.0, -1e30))

    coef = jnp.stack(coef_rows, axis=1).reshape(NUM_LAYERS * N_SHIFTS, LANES)
    bias_rows = b[:, o]                              # (L, 896)
    summask = jnp.stack(sum_rows, axis=0)            # (13, 896)
    addmask = jnp.stack(add_rows, axis=0)            # (13, 896)
    return coef, bias_rows, summask, addmask


def _choose_block_rows(batch):
    """Rows (of 128 samples) per grid step: big tiles, but >= 4 grid steps
    when the batch allows it (v7x megacore + pipeline depth)."""
    rows_for_4_steps = pl.cdiv(batch, 4 * GROUPS_PER_ROW)
    rows = (rows_for_4_steps // 8) * 8               # multiple of 8 sublanes
    return max(8, min(MAX_BLOCK_ROWS, rows))


def _reference_forward(x, weights, biases):
    """Pure-JAX reference matching the PyTorch module (also small-batch path)."""
    out = x.astype(jnp.float32)
    for l in range(NUM_LAYERS):
        out = jnp.maximum(out @ weights[l].T + biases[l], 0.0)
    return jax.nn.softmax(out, axis=-1)


def net_forward(x, weights, biases):
    """x: (B, 7) f32; weights: (3, 7, 7) (out, in); biases: (3, 7)."""
    B, F = x.shape
    assert F == N_FEATURES

    # Small-batch fast path (review): launch + tiling overhead would dominate.
    if B < SMALL_BATCH_XLA:
        return _reference_forward(x, jnp.asarray(weights, jnp.float32),
                                  jnp.asarray(biases, jnp.float32))

    coef, bias_rows, summask, addmask = _build_lane_tables(weights, biases)

    block_rows = _choose_block_rows(B)
    tb = block_rows * GROUPS_PER_ROW                 # samples per grid step
    b_pad = pl.cdiv(B, tb) * tb

    xf = x.astype(jnp.float32)
    if b_pad != B:
        xf = jnp.pad(xf, ((0, b_pad - B), (0, 0)))
    # Row-major reshape: layout-preserving, no HBM relayout pass.
    xv = xf.reshape(b_pad // GROUPS_PER_ROW, LANES)

    grid = (b_pad // tb,)

    out_v = pl.pallas_call(
        _mlp_softmax_kernel,
        out_shape=jax.ShapeDtypeStruct(xv.shape, jnp.float32),
        grid=grid,
        in_specs=[
            pl.BlockSpec((block_rows, LANES), lambda i: (i, 0)),   # activations
            pl.BlockSpec(coef.shape, lambda i: (0, 0)),            # resident consts
            pl.BlockSpec(bias_rows.shape, lambda i: (0, 0)),
            pl.BlockSpec(addmask.shape, lambda i: (0, 0)),
            pl.BlockSpec(summask.shape, lambda i: (0, 0)),
        ],
        out_specs=pl.BlockSpec((block_rows, LANES), lambda i: (i, 0)),
        compiler_params=pltpu.CompilerParams(
            dimension_semantics=("parallel",),       # megacore sharding on v7x
            vmem_limit_bytes=32 * 1024 * 1024,       # headroom (usage ~<9 MiB)
        ),
    )(xv, coef, bias_rows, addmask, summask)

    out = out_v.reshape(b_pad, N_FEATURES)
    if b_pad != B:
        out = out[:B]
    return out


def make_params():
    """Deterministic init exactly as in Net.__init__: identity weight, zero bias."""
    n_nodes = [N_FEATURES] + HIDDEN_NODES + [OUTPUT_NODES]
    ws, bs = [], []
    for i in range(len(n_nodes) - 1):
        ws.append(jnp.eye(n_nodes[i + 1], n_nodes[i], dtype=jnp.float32))
        bs.append(jnp.zeros((n_nodes[i + 1],), dtype=jnp.float32))
    return jnp.stack(ws, axis=0), jnp.stack(bs, axis=0)


if __name__ == "__main__":
    key = jax.random.PRNGKey(0)
    k1, k2, k3 = jax.random.split(key, 3)

    # Batch sized to exercise the tiled kernel path (grid > 1) but still small.
    batch = 6144
    x = jax.random.normal(k1, (batch, N_FEATURES), dtype=jnp.float32)

    # 1) Module as specified: identity weights, zero biases.
    W0, b0 = make_params()
    out = jax.block_until_ready(net_forward(x, W0, b0))
    ref = _reference_forward(x, W0, b0)
    assert out.shape == (batch, OUTPUT_NODES)
    assert jnp.allclose(out, ref, atol=1e-5, rtol=1e-5), "mismatch vs reference"
    assert jnp.allclose(jnp.sum(out, axis=-1), 1.0, atol=1e-5), \
        "softmax rows must sum to 1"

    # 2) Random (non-symmetric) params + ragged batch (exercises padding path).
    w_rand = jax.random.normal(k2, (NUM_LAYERS, N_FEATURES, N_FEATURES),
                               dtype=jnp.float32)
    b_rand = 0.1 * jax.random.normal(k3, (NUM_LAYERS, N_FEATURES),
                                     dtype=jnp.float32)
    x_r = x[:5000]
    out_r = jax.block_until_ready(net_forward(x_r, w_rand, b_rand))
    ref_r = _reference_forward(x_r, w_rand, b_rand)
    assert jnp.allclose(out_r, ref_r, atol=1e-5, rtol=1e-5), \
        "mismatch vs reference (random params, ragged batch)"

    # 3) Small-batch fast path.
    x_s = x[:8]
    out_s = jax.block_until_ready(net_forward(x_s, w_rand, b_rand))
    ref_s = _reference_forward(x_s, w_rand, b_rand)
    assert out_s.shape == (8, OUTPUT_NODES)
    assert jnp.allclose(out_s, ref_s, atol=1e-5, rtol=1e-5), \
        "mismatch vs reference (small-batch path)"

    print("KERNEL_OK")
</pallas_src>

<mosaic_0001>
module attributes {stable_mosaic.version = 11 : i64} {
  func.func @_mlp_softmax_kernel(%arg0: i32, %arg1: memref<8x896xf32, #tpu.memory_space<vmem>>, %arg2: memref<39x896xf32, #tpu.memory_space<vmem>>, %arg3: memref<3x896xf32, #tpu.memory_space<vmem>>, %arg4: memref<13x896xf32, #tpu.memory_space<vmem>>, %arg5: memref<13x896xf32, #tpu.memory_space<vmem>>, %arg6: memref<8x896xf32, #tpu.memory_space<vmem>>) attributes {dimension_semantics = [#tpu.dimension_semantics<parallel>], iteration_bounds = array<i64: 6>, scalar_prefetch = 0 : i64, scratch_operands = 0 : i64, tpu.core_type = #tpu.core_type<tc>, window_params = [{transform_indices = @transform_0, window_bounds = array<i64: 8, 896>}, {pipeline_mode = #tpu.pipeline_mode<synchronous>, transform_indices = @transform_1, window_bounds = array<i64: 39, 896>}, {pipeline_mode = #tpu.pipeline_mode<synchronous>, transform_indices = @transform_2, window_bounds = array<i64: 3, 896>}, {pipeline_mode = #tpu.pipeline_mode<synchronous>, transform_indices = @transform_3, window_bounds = array<i64: 13, 896>}, {pipeline_mode = #tpu.pipeline_mode<synchronous>, transform_indices = @transform_4, window_bounds = array<i64: 13, 896>}, {transform_indices = @transform_5, window_bounds = array<i64: 8, 896>}]} {
    %c0 = arith.constant 0 : index
    %c0_0 = arith.constant 0 : index
    %0 = vector.load %arg1[%c0, %c0_0] : memref<8x896xf32, #tpu.memory_space<vmem>>, vector<8x896xf32>
    %c6 = arith.constant 6 : index
    %c0_1 = arith.constant 0 : index
    %1 = vector.load %arg2[%c6, %c0_1] : memref<39x896xf32, #tpu.memory_space<vmem>>, vector<1x896xf32>
    %2 = vector.broadcast %1 : vector<1x896xf32> to vector<8x896xf32>
    %3 = arith.mulf %0, %2 : vector<8x896xf32>
    %4 = vector.extract_strided_slice %0 {offsets = [0, 6], sizes = [8, 890], strides = [1, 1]} : vector<8x896xf32> to vector<8x890xf32>
    %5 = vector.extract_strided_slice %0 {offsets = [0, 0], sizes = [8, 6], strides = [1, 1]} : vector<8x896xf32> to vector<8x6xf32>
    %6 = tpu.concatenate %4, %5 in 1 : vector<8x890xf32>, vector<8x6xf32> -> vector<8x896xf32>
    %c0_2 = arith.constant 0 : index
    %c0_3 = arith.constant 0 : index
    %7 = vector.load %arg2[%c0_2, %c0_3] : memref<39x896xf32, #tpu.memory_space<vmem>>, vector<1x896xf32>
    %8 = vector.broadcast %7 : vector<1x896xf32> to vector<8x896xf32>
    %9 = arith.mulf %6, %8 : vector<8x896xf32>
    %10 = arith.addf %3, %9 : vector<8x896xf32>
    %11 = vector.extract_strided_slice %0 {offsets = [0, 5], sizes = [8, 891], strides = [1, 1]} : vector<8x896xf32> to vector<8x891xf32>
    %12 = vector.extract_strided_slice %0 {offsets = [0, 0], sizes = [8, 5], strides = [1, 1]} : vector<8x896xf32> to vector<8x5xf32>
    %13 = tpu.concatenate %11, %12 in 1 : vector<8x891xf32>, vector<8x5xf32> -> vector<8x896xf32>
    %c1 = arith.constant 1 : index
    %c0_4 = arith.constant 0 : index
    %14 = vector.load %arg2[%c1, %c0_4] : memref<39x896xf32, #tpu.memory_space<vmem>>, vector<1x896xf32>
    %15 = vector.broadcast %14 : vector<1x896xf32> to vector<8x896xf32>
    %16 = arith.mulf %13, %15 : vector<8x896xf32>
    %17 = arith.addf %10, %16 : vector<8x896xf32>
    %18 = vector.extract_strided_slice %0 {offsets = [0, 4], sizes = [8, 892], strides = [1, 1]} : vector<8x896xf32> to vector<8x892xf32>
    %19 = vector.extract_strided_slice %0 {offsets = [0, 0], sizes = [8, 4], strides = [1, 1]} : vector<8x896xf32> to vector<8x4xf32>
    %20 = tpu.concatenate %18, %19 in 1 : vector<8x892xf32>, vector<8x4xf32> -> vector<8x896xf32>
    %c2 = arith.constant 2 : index
    %c0_5 = arith.constant 0 : index
    %21 = vector.load %arg2[%c2, %c0_5] : memref<39x896xf32, #tpu.memory_space<vmem>>, vector<1x896xf32>
    %22 = vector.broadcast %21 : vector<1x896xf32> to vector<8x896xf32>
    %23 = arith.mulf %20, %22 : vector<8x896xf32>
    %24 = arith.addf %17, %23 : vector<8x896xf32>
    %25 = vector.extract_strided_slice %0 {offsets = [0, 3], sizes = [8, 893], strides = [1, 1]} : vector<8x896xf32> to vector<8x893xf32>
    %26 = vector.extract_strided_slice %0 {offsets = [0, 0], sizes = [8, 3], strides = [1, 1]} : vector<8x896xf32> to vector<8x3xf32>
    %27 = tpu.concatenate %25, %26 in 1 : vector<8x893xf32>, vector<8x3xf32> -> vector<8x896xf32>
    %c3 = arith.constant 3 : index
    %c0_6 = arith.constant 0 : index
    %28 = vector.load %arg2[%c3, %c0_6] : memref<39x896xf32, #tpu.memory_space<vmem>>, vector<1x896xf32>
    %29 = vector.broadcast %28 : vector<1x896xf32> to vector<8x896xf32>
    %30 = arith.mulf %27, %29 : vector<8x896xf32>
    %31 = arith.addf %24, %30 : vector<8x896xf32>
    %32 = vector.extract_strided_slice %0 {offsets = [0, 2], sizes = [8, 894], strides = [1, 1]} : vector<8x896xf32> to vector<8x894xf32>
    %33 = vector.extract_strided_slice %0 {offsets = [0, 0], sizes = [8, 2], strides = [1, 1]} : vector<8x896xf32> to vector<8x2xf32>
    %34 = tpu.concatenate %32, %33 in 1 : vector<8x894xf32>, vector<8x2xf32> -> vector<8x896xf32>
    %c4 = arith.constant 4 : index
    %c0_7 = arith.constant 0 : index
    %35 = vector.load %arg2[%c4, %c0_7] : memref<39x896xf32, #tpu.memory_space<vmem>>, vector<1x896xf32>
    %36 = vector.broadcast %35 : vector<1x896xf32> to vector<8x896xf32>
    %37 = arith.mulf %34, %36 : vector<8x896xf32>
    %38 = arith.addf %31, %37 : vector<8x896xf32>
    %39 = vector.extract_strided_slice %0 {offsets = [0, 1], sizes = [8, 895], strides = [1, 1]} : vector<8x896xf32> to vector<8x895xf32>
    %40 = vector.extract_strided_slice %0 {offsets = [0, 0], sizes = [8, 1], strides = [1, 1]} : vector<8x896xf32> to vector<8x1xf32>
    %41 = tpu.concatenate %39, %40 in 1 : vector<8x895xf32>, vector<8x1xf32> -> vector<8x896xf32>
    %c5 = arith.constant 5 : index
    %c0_8 = arith.constant 0 : index
    %42 = vector.load %arg2[%c5, %c0_8] : memref<39x896xf32, #tpu.memory_space<vmem>>, vector<1x896xf32>
    %43 = vector.broadcast %42 : vector<1x896xf32> to vector<8x896xf32>
    %44 = arith.mulf %41, %43 : vector<8x896xf32>
    %45 = arith.addf %38, %44 : vector<8x896xf32>
    %46 = vector.extract_strided_slice %0 {offsets = [0, 895], sizes = [8, 1], strides = [1, 1]} : vector<8x896xf32> to vector<8x1xf32>
    %47 = vector.extract_strided_slice %0 {offsets = [0, 0], sizes = [8, 895], strides = [1, 1]} : vector<8x896xf32> to vector<8x895xf32>
    %48 = tpu.concatenate %46, %47 in 1 : vector<8x1xf32>, vector<8x895xf32> -> vector<8x896xf32>
    %c7 = arith.constant 7 : index
    %c0_9 = arith.constant 0 : index
    %49 = vector.load %arg2[%c7, %c0_9] : memref<39x896xf32, #tpu.memory_space<vmem>>, vector<1x896xf32>
    %50 = vector.broadcast %49 : vector<1x896xf32> to vector<8x896xf32>
    %51 = arith.mulf %48, %50 : vector<8x896xf32>
    %52 = arith.addf %45, %51 : vector<8x896xf32>
    %53 = vector.extract_strided_slice %0 {offsets = [0, 894], sizes = [8, 2], strides = [1, 1]} : vector<8x896xf32> to vector<8x2xf32>
    %54 = vector.extract_strided_slice %0 {offsets = [0, 0], sizes = [8, 894], strides = [1, 1]} : vector<8x896xf32> to vector<8x894xf32>
    %55 = tpu.concatenate %53, %54 in 1 : vector<8x2xf32>, vector<8x894xf32> -> vector<8x896xf32>
    %c8 = arith.constant 8 : index
    %c0_10 = arith.constant 0 : index
    %56 = vector.load %arg2[%c8, %c0_10] : memref<39x896xf32, #tpu.memory_space<vmem>>, vector<1x896xf32>
    %57 = vector.broadcast %56 : vector<1x896xf32> to vector<8x896xf32>
    %58 = arith.mulf %55, %57 : vector<8x896xf32>
    %59 = arith.addf %52, %58 : vector<8x896xf32>
    %60 = vector.extract_strided_slice %0 {offsets = [0, 893], sizes = [8, 3], strides = [1, 1]} : vector<8x896xf32> to vector<8x3xf32>
    %61 = vector.extract_strided_slice %0 {offsets = [0, 0], sizes = [8, 893], strides = [1, 1]} : vector<8x896xf32> to vector<8x893xf32>
    %62 = tpu.concatenate %60, %61 in 1 : vector<8x3xf32>, vector<8x893xf32> -> vector<8x896xf32>
    %c9 = arith.constant 9 : index
    %c0_11 = arith.constant 0 : index
    %63 = vector.load %arg2[%c9, %c0_11] : memref<39x896xf32, #tpu.memory_space<vmem>>, vector<1x896xf32>
    %64 = vector.broadcast %63 : vector<1x896xf32> to vector<8x896xf32>
    %65 = arith.mulf %62, %64 : vector<8x896xf32>
    %66 = arith.addf %59, %65 : vector<8x896xf32>
    %67 = vector.extract_strided_slice %0 {offsets = [0, 892], sizes = [8, 4], strides = [1, 1]} : vector<8x896xf32> to vector<8x4xf32>
    %68 = vector.extract_strided_slice %0 {offsets = [0, 0], sizes = [8, 892], strides = [1, 1]} : vector<8x896xf32> to vector<8x892xf32>
    %69 = tpu.concatenate %67, %68 in 1 : vector<8x4xf32>, vector<8x892xf32> -> vector<8x896xf32>
    %c10 = arith.constant 10 : index
    %c0_12 = arith.constant 0 : index
    %70 = vector.load %arg2[%c10, %c0_12] : memref<39x896xf32, #tpu.memory_space<vmem>>, vector<1x896xf32>
    %71 = vector.broadcast %70 : vector<1x896xf32> to vector<8x896xf32>
    %72 = arith.mulf %69, %71 : vector<8x896xf32>
    %73 = arith.addf %66, %72 : vector<8x896xf32>
    %74 = vector.extract_strided_slice %0 {offsets = [0, 891], sizes = [8, 5], strides = [1, 1]} : vector<8x896xf32> to vector<8x5xf32>
    %75 = vector.extract_strided_slice %0 {offsets = [0, 0], sizes = [8, 891], strides = [1, 1]} : vector<8x896xf32> to vector<8x891xf32>
    %76 = tpu.concatenate %74, %75 in 1 : vector<8x5xf32>, vector<8x891xf32> -> vector<8x896xf32>
    %c11 = arith.constant 11 : index
    %c0_13 = arith.constant 0 : index
    %77 = vector.load %arg2[%c11, %c0_13] : memref<39x896xf32, #tpu.memory_space<vmem>>, vector<1x896xf32>
    %78 = vector.broadcast %77 : vector<1x896xf32> to vector<8x896xf32>
    %79 = arith.mulf %76, %78 : vector<8x896xf32>
    %80 = arith.addf %73, %79 : vector<8x896xf32>
    %81 = vector.extract_strided_slice %0 {offsets = [0, 890], sizes = [8, 6], strides = [1, 1]} : vector<8x896xf32> to vector<8x6xf32>
    %82 = vector.extract_strided_slice %0 {offsets = [0, 0], sizes = [8, 890], strides = [1, 1]} : vector<8x896xf32> to vector<8x890xf32>
    %83 = tpu.concatenate %81, %82 in 1 : vector<8x6xf32>, vector<8x890xf32> -> vector<8x896xf32>
    %c12 = arith.constant 12 : index
    %c0_14 = arith.constant 0 : index
    %84 = vector.load %arg2[%c12, %c0_14] : memref<39x896xf32, #tpu.memory_space<vmem>>, vector<1x896xf32>
    %85 = vector.broadcast %84 : vector<1x896xf32> to vector<8x896xf32>
    %86 = arith.mulf %83, %85 : vector<8x896xf32>
    %87 = arith.addf %80, %86 : vector<8x896xf32>
    %c0_15 = arith.constant 0 : index
    %c0_16 = arith.constant 0 : index
    %88 = vector.load %arg3[%c0_15, %c0_16] : memref<3x896xf32, #tpu.memory_space<vmem>>, vector<1x896xf32>
    %89 = vector.broadcast %88 : vector<1x896xf32> to vector<8x896xf32>
    %90 = arith.addf %87, %89 : vector<8x896xf32>
    %cst = arith.constant 0.000000e+00 : f32
    %91 = vector.broadcast %cst : f32 to vector<8x896xf32>
    %92 = arith.maximumf %90, %91 : vector<8x896xf32>
    %c19 = arith.constant 19 : index
    %c0_17 = arith.constant 0 : index
    %93 = vector.load %arg2[%c19, %c0_17] : memref<39x896xf32, #tpu.memory_space<vmem>>, vector<1x896xf32>
    %94 = vector.broadcast %93 : vector<1x896xf32> to vector<8x896xf32>
    %95 = arith.mulf %92, %94 : vector<8x896xf32>
    %96 = vector.extract_strided_slice %92 {offsets = [0, 6], sizes = [8, 890], strides = [1, 1]} : vector<8x896xf32> to vector<8x890xf32>
    %97 = vector.extract_strided_slice %92 {offsets = [0, 0], sizes = [8, 6], strides = [1, 1]} : vector<8x896xf32> to vector<8x6xf32>
    %98 = tpu.concatenate %96, %97 in 1 : vector<8x890xf32>, vector<8x6xf32> -> vector<8x896xf32>
    %c13 = arith.constant 13 : index
    %c0_18 = arith.constant 0 : index
    %99 = vector.load %arg2[%c13, %c0_18] : memref<39x896xf32, #tpu.memory_space<vmem>>, vector<1x896xf32>
    %100 = vector.broadcast %99 : vector<1x896xf32> to vector<8x896xf32>
    %101 = arith.mulf %98, %100 : vector<8x896xf32>
    %102 = arith.addf %95, %101 : vector<8x896xf32>
    %103 = vector.extract_strided_slice %92 {offsets = [0, 5], sizes = [8, 891], strides = [1, 1]} : vector<8x896xf32> to vector<8x891xf32>
    %104 = vector.extract_strided_slice %92 {offsets = [0, 0], sizes = [8, 5], strides = [1, 1]} : vector<8x896xf32> to vector<8x5xf32>
    %105 = tpu.concatenate %103, %104 in 1 : vector<8x891xf32>, vector<8x5xf32> -> vector<8x896xf32>
    %c14 = arith.constant 14 : index
    %c0_19 = arith.constant 0 : index
    %106 = vector.load %arg2[%c14, %c0_19] : memref<39x896xf32, #tpu.memory_space<vmem>>, vector<1x896xf32>
    %107 = vector.broadcast %106 : vector<1x896xf32> to vector<8x896xf32>
    %108 = arith.mulf %105, %107 : vector<8x896xf32>
    %109 = arith.addf %102, %108 : vector<8x896xf32>
    %110 = vector.extract_strided_slice %92 {offsets = [0, 4], sizes = [8, 892], strides = [1, 1]} : vector<8x896xf32> to vector<8x892xf32>
    %111 = vector.extract_strided_slice %92 {offsets = [0, 0], sizes = [8, 4], strides = [1, 1]} : vector<8x896xf32> to vector<8x4xf32>
    %112 = tpu.concatenate %110, %111 in 1 : vector<8x892xf32>, vector<8x4xf32> -> vector<8x896xf32>
    %c15 = arith.constant 15 : index
    %c0_20 = arith.constant 0 : index
    %113 = vector.load %arg2[%c15, %c0_20] : memref<39x896xf32, #tpu.memory_space<vmem>>, vector<1x896xf32>
    %114 = vector.broadcast %113 : vector<1x896xf32> to vector<8x896xf32>
    %115 = arith.mulf %112, %114 : vector<8x896xf32>
    %116 = arith.addf %109, %115 : vector<8x896xf32>
    %117 = vector.extract_strided_slice %92 {offsets = [0, 3], sizes = [8, 893], strides = [1, 1]} : vector<8x896xf32> to vector<8x893xf32>
    %118 = vector.extract_strided_slice %92 {offsets = [0, 0], sizes = [8, 3], strides = [1, 1]} : vector<8x896xf32> to vector<8x3xf32>
    %119 = tpu.concatenate %117, %118 in 1 : vector<8x893xf32>, vector<8x3xf32> -> vector<8x896xf32>
    %c16 = arith.constant 16 : index
    %c0_21 = arith.constant 0 : index
    %120 = vector.load %arg2[%c16, %c0_21] : memref<39x896xf32, #tpu.memory_space<vmem>>, vector<1x896xf32>
    %121 = vector.broadcast %120 : vector<1x896xf32> to vector<8x896xf32>
    %122 = arith.mulf %119, %121 : vector<8x896xf32>
    %123 = arith.addf %116, %122 : vector<8x896xf32>
    %124 = vector.extract_strided_slice %92 {offsets = [0, 2], sizes = [8, 894], strides = [1, 1]} : vector<8x896xf32> to vector<8x894xf32>
    %125 = vector.extract_strided_slice %92 {offsets = [0, 0], sizes = [8, 2], strides = [1, 1]} : vector<8x896xf32> to vector<8x2xf32>
    %126 = tpu.concatenate %124, %125 in 1 : vector<8x894xf32>, vector<8x2xf32> -> vector<8x896xf32>
    %c17 = arith.constant 17 : index
    %c0_22 = arith.constant 0 : index
    %127 = vector.load %arg2[%c17, %c0_22] : memref<39x896xf32, #tpu.memory_space<vmem>>, vector<1x896xf32>
    %128 = vector.broadcast %127 : vector<1x896xf32> to vector<8x896xf32>
    %129 = arith.mulf %126, %128 : vector<8x896xf32>
    %130 = arith.addf %123, %129 : vector<8x896xf32>
    %131 = vector.extract_strided_slice %92 {offsets = [0, 1], sizes = [8, 895], strides = [1, 1]} : vector<8x896xf32> to vector<8x895xf32>
    %132 = vector.extract_strided_slice %92 {offsets = [0, 0], sizes = [8, 1], strides = [1, 1]} : vector<8x896xf32> to vector<8x1xf32>
    %133 = tpu.concatenate %131, %132 in 1 : vector<8x895xf32>, vector<8x1xf32> -> vector<8x896xf32>
    %c18 = arith.constant 18 : index
    %c0_23 = arith.constant 0 : index
    %134 = vector.load %arg2[%c18, %c0_23] : memref<39x896xf32, #tpu.memory_space<vmem>>, vector<1x896xf32>
    %135 = vector.broadcast %134 : vector<1x896xf32> to vector<8x896xf32>
    %136 = arith.mulf %133, %135 : vector<8x896xf32>
    %137 = arith.addf %130, %136 : vector<8x896xf32>
    %138 = vector.extract_strided_slice %92 {offsets = [0, 895], sizes = [8, 1], strides = [1, 1]} : vector<8x896xf32> to vector<8x1xf32>
    %139 = vector.extract_strided_slice %92 {offsets = [0, 0], sizes = [8, 895], strides = [1, 1]} : vector<8x896xf32> to vector<8x895xf32>
    %140 = tpu.concatenate %138, %139 in 1 : vector<8x1xf32>, vector<8x895xf32> -> vector<8x896xf32>
    %c20 = arith.constant 20 : index
    %c0_24 = arith.constant 0 : index
    %141 = vector.load %arg2[%c20, %c0_24] : memref<39x896xf32, #tpu.memory_space<vmem>>, vector<1x896xf32>
    %142 = vector.broadcast %141 : vector<1x896xf32> to vector<8x896xf32>
    %143 = arith.mulf %140, %142 : vector<8x896xf32>
    %144 = arith.addf %137, %143 : vector<8x896xf32>
    %145 = vector.extract_strided_slice %92 {offsets = [0, 894], sizes = [8, 2], strides = [1, 1]} : vector<8x896xf32> to vector<8x2xf32>
    %146 = vector.extract_strided_slice %92 {offsets = [0, 0], sizes = [8, 894], strides = [1, 1]} : vector<8x896xf32> to vector<8x894xf32>
    %147 = tpu.concatenate %145, %146 in 1 : vector<8x2xf32>, vector<8x894xf32> -> vector<8x896xf32>
    %c21 = arith.constant 21 : index
    %c0_25 = arith.constant 0 : index
    %148 = vector.load %arg2[%c21, %c0_25] : memref<39x896xf32, #tpu.memory_space<vmem>>, vector<1x896xf32>
    %149 = vector.broadcast %148 : vector<1x896xf32> to vector<8x896xf32>
    %150 = arith.mulf %147, %149 : vector<8x896xf32>
    %151 = arith.addf %144, %150 : vector<8x896xf32>
    %152 = vector.extract_strided_slice %92 {offsets = [0, 893], sizes = [8, 3], strides = [1, 1]} : vector<8x896xf32> to vector<8x3xf32>
    %153 = vector.extract_strided_slice %92 {offsets = [0, 0], sizes = [8, 893], strides = [1, 1]} : vector<8x896xf32> to vector<8x893xf32>
    %154 = tpu.concatenate %152, %153 in 1 : vector<8x3xf32>, vector<8x893xf32> -> vector<8x896xf32>
    %c22 = arith.constant 22 : index
    %c0_26 = arith.constant 0 : index
    %155 = vector.load %arg2[%c22, %c0_26] : memref<39x896xf32, #tpu.memory_space<vmem>>, vector<1x896xf32>
    %156 = vector.broadcast %155 : vector<1x896xf32> to vector<8x896xf32>
    %157 = arith.mulf %154, %156 : vector<8x896xf32>
    %158 = arith.addf %151, %157 : vector<8x896xf32>
    %159 = vector.extract_strided_slice %92 {offsets = [0, 892], sizes = [8, 4], strides = [1, 1]} : vector<8x896xf32> to vector<8x4xf32>
    %160 = vector.extract_strided_slice %92 {offsets = [0, 0], sizes = [8, 892], strides = [1, 1]} : vector<8x896xf32> to vector<8x892xf32>
    %161 = tpu.concatenate %159, %160 in 1 : vector<8x4xf32>, vector<8x892xf32> -> vector<8x896xf32>
    %c23 = arith.constant 23 : index
    %c0_27 = arith.constant 0 : index
    %162 = vector.load %arg2[%c23, %c0_27] : memref<39x896xf32, #tpu.memory_space<vmem>>, vector<1x896xf32>
    %163 = vector.broadcast %162 : vector<1x896xf32> to vector<8x896xf32>
    %164 = arith.mulf %161, %163 : vector<8x896xf32>
    %165 = arith.addf %158, %164 : vector<8x896xf32>
    %166 = vector.extract_strided_slice %92 {offsets = [0, 891], sizes = [8, 5], strides = [1, 1]} : vector<8x896xf32> to vector<8x5xf32>
    %167 = vector.extract_strided_slice %92 {offsets = [0, 0], sizes = [8, 891], strides = [1, 1]} : vector<8x896xf32> to vector<8x891xf32>
    %168 = tpu.concatenate %166, %167 in 1 : vector<8x5xf32>, vector<8x891xf32> -> vector<8x896xf32>
    %c24 = arith.constant 24 : index
    %c0_28 = arith.constant 0 : index
    %169 = vector.load %arg2[%c24, %c0_28] : memref<39x896xf32, #tpu.memory_space<vmem>>, vector<1x896xf32>
    %170 = vector.broadcast %169 : vector<1x896xf32> to vector<8x896xf32>
    %171 = arith.mulf %168, %170 : vector<8x896xf32>
    %172 = arith.addf %165, %171 : vector<8x896xf32>
    %173 = vector.extract_strided_slice %92 {offsets = [0, 890], sizes = [8, 6], strides = [1, 1]} : vector<8x896xf32> to vector<8x6xf32>
    %174 = vector.extract_strided_slice %92 {offsets = [0, 0], sizes = [8, 890], strides = [1, 1]} : vector<8x896xf32> to vector<8x890xf32>
    %175 = tpu.concatenate %173, %174 in 1 : vector<8x6xf32>, vector<8x890xf32> -> vector<8x896xf32>
    %c25 = arith.constant 25 : index
    %c0_29 = arith.constant 0 : index
    %176 = vector.load %arg2[%c25, %c0_29] : memref<39x896xf32, #tpu.memory_space<vmem>>, vector<1x896xf32>
    %177 = vector.broadcast %176 : vector<1x896xf32> to vector<8x896xf32>
    %178 = arith.mulf %175, %177 : vector<8x896xf32>
    %179 = arith.addf %172, %178 : vector<8x896xf32>
    %c1_30 = arith.constant 1 : index
    %c0_31 = arith.constant 0 : index
    %180 = vector.load %arg3[%c1_30, %c0_31] : memref<3x896xf32, #tpu.memory_space<vmem>>, vector<1x896xf32>
    %181 = vector.broadcast %180 : vector<1x896xf32> to vector<8x896xf32>
    %182 = arith.addf %179, %181 : vector<8x896xf32>
    %cst_32 = arith.constant 0.000000e+00 : f32
    %183 = vector.broadcast %cst_32 : f32 to vector<8x896xf32>
    %184 = arith.maximumf %182, %183 : vector<8x896xf32>
    %c32 = arith.constant 32 : index
    %c0_33 = arith.constant 0 : index
    %185 = vector.load %arg2[%c32, %c0_33] : memref<39x896xf32, #tpu.memory_space<vmem>>, vector<1x896xf32>
    %186 = vector.broadcast %185 : vector<1x896xf32> to vector<8x896xf32>
    %187 = arith.mulf %184, %186 : vector<8x896xf32>
    %188 = vector.extract_strided_slice %184 {offsets = [0, 6], sizes = [8, 890], strides = [1, 1]} : vector<8x896xf32> to vector<8x890xf32>
    %189 = vector.extract_strided_slice %184 {offsets = [0, 0], sizes = [8, 6], strides = [1, 1]} : vector<8x896xf32> to vector<8x6xf32>
    %190 = tpu.concatenate %188, %189 in 1 : vector<8x890xf32>, vector<8x6xf32> -> vector<8x896xf32>
    %c26 = arith.constant 26 : index
    %c0_34 = arith.constant 0 : index
    %191 = vector.load %arg2[%c26, %c0_34] : memref<39x896xf32, #tpu.memory_space<vmem>>, vector<1x896xf32>
    %192 = vector.broadcast %191 : vector<1x896xf32> to vector<8x896xf32>
    %193 = arith.mulf %190, %192 : vector<8x896xf32>
    %194 = arith.addf %187, %193 : vector<8x896xf32>
    %195 = vector.extract_strided_slice %184 {offsets = [0, 5], sizes = [8, 891], strides = [1, 1]} : vector<8x896xf32> to vector<8x891xf32>
    %196 = vector.extract_strided_slice %184 {offsets = [0, 0], sizes = [8, 5], strides = [1, 1]} : vector<8x896xf32> to vector<8x5xf32>
    %197 = tpu.concatenate %195, %196 in 1 : vector<8x891xf32>, vector<8x5xf32> -> vector<8x896xf32>
    %c27 = arith.constant 27 : index
    %c0_35 = arith.constant 0 : index
    %198 = vector.load %arg2[%c27, %c0_35] : memref<39x896xf32, #tpu.memory_space<vmem>>, vector<1x896xf32>
    %199 = vector.broadcast %198 : vector<1x896xf32> to vector<8x896xf32>
    %200 = arith.mulf %197, %199 : vector<8x896xf32>
    %201 = arith.addf %194, %200 : vector<8x896xf32>
    %202 = vector.extract_strided_slice %184 {offsets = [0, 4], sizes = [8, 892], strides = [1, 1]} : vector<8x896xf32> to vector<8x892xf32>
    %203 = vector.extract_strided_slice %184 {offsets = [0, 0], sizes = [8, 4], strides = [1, 1]} : vector<8x896xf32> to vector<8x4xf32>
    %204 = tpu.concatenate %202, %203 in 1 : vector<8x892xf32>, vector<8x4xf32> -> vector<8x896xf32>
    %c28 = arith.constant 28 : index
    %c0_36 = arith.constant 0 : index
    %205 = vector.load %arg2[%c28, %c0_36] : memref<39x896xf32, #tpu.memory_space<vmem>>, vector<1x896xf32>
    %206 = vector.broadcast %205 : vector<1x896xf32> to vector<8x896xf32>
    %207 = arith.mulf %204, %206 : vector<8x896xf32>
    %208 = arith.addf %201, %207 : vector<8x896xf32>
    %209 = vector.extract_strided_slice %184 {offsets = [0, 3], sizes = [8, 893], strides = [1, 1]} : vector<8x896xf32> to vector<8x893xf32>
    %210 = vector.extract_strided_slice %184 {offsets = [0, 0], sizes = [8, 3], strides = [1, 1]} : vector<8x896xf32> to vector<8x3xf32>
    %211 = tpu.concatenate %209, %210 in 1 : vector<8x893xf32>, vector<8x3xf32> -> vector<8x896xf32>
    %c29 = arith.constant 29 : index
    %c0_37 = arith.constant 0 : index
    %212 = vector.load %arg2[%c29, %c0_37] : memref<39x896xf32, #tpu.memory_space<vmem>>, vector<1x896xf32>
    %213 = vector.broadcast %212 : vector<1x896xf32> to vector<8x896xf32>
    %214 = arith.mulf %211, %213 : vector<8x896xf32>
    %215 = arith.addf %208, %214 : vector<8x896xf32>
    %216 = vector.extract_strided_slice %184 {offsets = [0, 2], sizes = [8, 894], strides = [1, 1]} : vector<8x896xf32> to vector<8x894xf32>
    %217 = vector.extract_strided_slice %184 {offsets = [0, 0], sizes = [8, 2], strides = [1, 1]} : vector<8x896xf32> to vector<8x2xf32>
    %218 = tpu.concatenate %216, %217 in 1 : vector<8x894xf32>, vector<8x2xf32> -> vector<8x896xf32>
    %c30 = arith.constant 30 : index
    %c0_38 = arith.constant 0 : index
    %219 = vector.load %arg2[%c30, %c0_38] : memref<39x896xf32, #tpu.memory_space<vmem>>, vector<1x896xf32>
    %220 = vector.broadcast %219 : vector<1x896xf32> to vector<8x896xf32>
    %221 = arith.mulf %218, %220 : vector<8x896xf32>
    %222 = arith.addf %215, %221 : vector<8x896xf32>
    %223 = vector.extract_strided_slice %184 {offsets = [0, 1], sizes = [8, 895], strides = [1, 1]} : vector<8x896xf32> to vector<8x895xf32>
    %224 = vector.extract_strided_slice %184 {offsets = [0, 0], sizes = [8, 1], strides = [1, 1]} : vector<8x896xf32> to vector<8x1xf32>
    %225 = tpu.concatenate %223, %224 in 1 : vector<8x895xf32>, vector<8x1xf32> -> vector<8x896xf32>
    %c31 = arith.constant 31 : index
    %c0_39 = arith.constant 0 : index
    %226 = vector.load %arg2[%c31, %c0_39] : memref<39x896xf32, #tpu.memory_space<vmem>>, vector<1x896xf32>
    %227 = vector.broadcast %226 : vector<1x896xf32> to vector<8x896xf32>
    %228 = arith.mulf %225, %227 : vector<8x896xf32>
    %229 = arith.addf %222, %228 : vector<8x896xf32>
    %230 = vector.extract_strided_slice %184 {offsets = [0, 895], sizes = [8, 1], strides = [1, 1]} : vector<8x896xf32> to vector<8x1xf32>
    %231 = vector.extract_strided_slice %184 {offsets = [0, 0], sizes = [8, 895], strides = [1, 1]} : vector<8x896xf32> to vector<8x895xf32>
    %232 = tpu.concatenate %230, %231 in 1 : vector<8x1xf32>, vector<8x895xf32> -> vector<8x896xf32>
    %c33 = arith.constant 33 : index
    %c0_40 = arith.constant 0 : index
    %233 = vector.load %arg2[%c33, %c0_40] : memref<39x896xf32, #tpu.memory_space<vmem>>, vector<1x896xf32>
    %234 = vector.broadcast %233 : vector<1x896xf32> to vector<8x896xf32>
    %235 = arith.mulf %232, %234 : vector<8x896xf32>
    %236 = arith.addf %229, %235 : vector<8x896xf32>
    %237 = vector.extract_strided_slice %184 {offsets = [0, 894], sizes = [8, 2], strides = [1, 1]} : vector<8x896xf32> to vector<8x2xf32>
    %238 = vector.extract_strided_slice %184 {offsets = [0, 0], sizes = [8, 894], strides = [1, 1]} : vector<8x896xf32> to vector<8x894xf32>
    %239 = tpu.concatenate %237, %238 in 1 : vector<8x2xf32>, vector<8x894xf32> -> vector<8x896xf32>
    %c34 = arith.constant 34 : index
    %c0_41 = arith.constant 0 : index
    %240 = vector.load %arg2[%c34, %c0_41] : memref<39x896xf32, #tpu.memory_space<vmem>>, vector<1x896xf32>
    %241 = vector.broadcast %240 : vector<1x896xf32> to vector<8x896xf32>
    %242 = arith.mulf %239, %241 : vector<8x896xf32>
    %243 = arith.addf %236, %242 : vector<8x896xf32>
    %244 = vector.extract_strided_slice %184 {offsets = [0, 893], sizes = [8, 3], strides = [1, 1]} : vector<8x896xf32> to vector<8x3xf32>
    %245 = vector.extract_strided_slice %184 {offsets = [0, 0], sizes = [8, 893], strides = [1, 1]} : vector<8x896xf32> to vector<8x893xf32>
    %246 = tpu.concatenate %244, %245 in 1 : vector<8x3xf32>, vector<8x893xf32> -> vector<8x896xf32>
    %c35 = arith.constant 35 : index
    %c0_42 = arith.constant 0 : index
    %247 = vector.load %arg2[%c35, %c0_42] : memref<39x896xf32, #tpu.memory_space<vmem>>, vector<1x896xf32>
    %248 = vector.broadcast %247 : vector<1x896xf32> to vector<8x896xf32>
    %249 = arith.mulf %246, %248 : vector<8x896xf32>
    %250 = arith.addf %243, %249 : vector<8x896xf32>
    %251 = vector.extract_strided_slice %184 {offsets = [0, 892], sizes = [8, 4], strides = [1, 1]} : vector<8x896xf32> to vector<8x4xf32>
    %252 = vector.extract_strided_slice %184 {offsets = [0, 0], sizes = [8, 892], strides = [1, 1]} : vector<8x896xf32> to vector<8x892xf32>
    %253 = tpu.concatenate %251, %252 in 1 : vector<8x4xf32>, vector<8x892xf32> -> vector<8x896xf32>
    %c36 = arith.constant 36 : index
    %c0_43 = arith.constant 0 : index
    %254 = vector.load %arg2[%c36, %c0_43] : memref<39x896xf32, #tpu.memory_space<vmem>>, vector<1x896xf32>
    %255 = vector.broadcast %254 : vector<1x896xf32> to vector<8x896xf32>
    %256 = arith.mulf %253, %255 : vector<8x896xf32>
    %257 = arith.addf %250, %256 : vector<8x896xf32>
    %258 = vector.extract_strided_slice %184 {offsets = [0, 891], sizes = [8, 5], strides = [1, 1]} : vector<8x896xf32> to vector<8x5xf32>
    %259 = vector.extract_strided_slice %184 {offsets = [0, 0], sizes = [8, 891], strides = [1, 1]} : vector<8x896xf32> to vector<8x891xf32>
    %260 = tpu.concatenate %258, %259 in 1 : vector<8x5xf32>, vector<8x891xf32> -> vector<8x896xf32>
    %c37 = arith.constant 37 : index
    %c0_44 = arith.constant 0 : index
    %261 = vector.load %arg2[%c37, %c0_44] : memref<39x896xf32, #tpu.memory_space<vmem>>, vector<1x896xf32>
    %262 = vector.broadcast %261 : vector<1x896xf32> to vector<8x896xf32>
    %263 = arith.mulf %260, %262 : vector<8x896xf32>
    %264 = arith.addf %257, %263 : vector<8x896xf32>
    %265 = vector.extract_strided_slice %184 {offsets = [0, 890], sizes = [8, 6], strides = [1, 1]} : vector<8x896xf32> to vector<8x6xf32>
    %266 = vector.extract_strided_slice %184 {offsets = [0, 0], sizes = [8, 890], strides = [1, 1]} : vector<8x896xf32> to vector<8x890xf32>
    %267 = tpu.concatenate %265, %266 in 1 : vector<8x6xf32>, vector<8x890xf32> -> vector<8x896xf32>
    %c38 = arith.constant 38 : index
    %c0_45 = arith.constant 0 : index
    %268 = vector.load %arg2[%c38, %c0_45] : memref<39x896xf32, #tpu.memory_space<vmem>>, vector<1x896xf32>
    %269 = vector.broadcast %268 : vector<1x896xf32> to vector<8x896xf32>
    %270 = arith.mulf %267, %269 : vector<8x896xf32>
    %271 = arith.addf %264, %270 : vector<8x896xf32>
    %c2_46 = arith.constant 2 : index
    %c0_47 = arith.constant 0 : index
    %272 = vector.load %arg3[%c2_46, %c0_47] : memref<3x896xf32, #tpu.memory_space<vmem>>, vector<1x896xf32>
    %273 = vector.broadcast %272 : vector<1x896xf32> to vector<8x896xf32>
    %274 = arith.addf %271, %273 : vector<8x896xf32>
    %cst_48 = arith.constant 0.000000e+00 : f32
    %275 = vector.broadcast %cst_48 : f32 to vector<8x896xf32>
    %276 = arith.maximumf %274, %275 : vector<8x896xf32>
    %277 = vector.extract_strided_slice %276 {offsets = [0, 6], sizes = [8, 890], strides = [1, 1]} : vector<8x896xf32> to vector<8x890xf32>
    %278 = vector.extract_strided_slice %276 {offsets = [0, 0], sizes = [8, 6], strides = [1, 1]} : vector<8x896xf32> to vector<8x6xf32>
    %279 = tpu.concatenate %277, %278 in 1 : vector<8x890xf32>, vector<8x6xf32> -> vector<8x896xf32>
    %c0_49 = arith.constant 0 : index
    %c0_50 = arith.constant 0 : index
    %280 = vector.load %arg4[%c0_49, %c0_50] : memref<13x896xf32, #tpu.memory_space<vmem>>, vector<1x896xf32>
    %281 = vector.broadcast %280 : vector<1x896xf32> to vector<8x896xf32>
    %282 = arith.addf %279, %281 : vector<8x896xf32>
    %283 = arith.maximumf %276, %282 : vector<8x896xf32>
    %284 = vector.extract_strided_slice %276 {offsets = [0, 5], sizes = [8, 891], strides = [1, 1]} : vector<8x896xf32> to vector<8x891xf32>
    %285 = vector.extract_strided_slice %276 {offsets = [0, 0], sizes = [8, 5], strides = [1, 1]} : vector<8x896xf32> to vector<8x5xf32>
    %286 = tpu.concatenate %284, %285 in 1 : vector<8x891xf32>, vector<8x5xf32> -> vector<8x896xf32>
    %c1_51 = arith.constant 1 : index
    %c0_52 = arith.constant 0 : index
    %287 = vector.load %arg4[%c1_51, %c0_52] : memref<13x896xf32, #tpu.memory_space<vmem>>, vector<1x896xf32>
    %288 = vector.broadcast %287 : vector<1x896xf32> to vector<8x896xf32>
    %289 = arith.addf %286, %288 : vector<8x896xf32>
    %290 = arith.maximumf %283, %289 : vector<8x896xf32>
    %291 = vector.extract_strided_slice %276 {offsets = [0, 4], sizes = [8, 892], strides = [1, 1]} : vector<8x896xf32> to vector<8x892xf32>
    %292 = vector.extract_strided_slice %276 {offsets = [0, 0], sizes = [8, 4], strides = [1, 1]} : vector<8x896xf32> to vector<8x4xf32>
    %293 = tpu.concatenate %291, %292 in 1 : vector<8x892xf32>, vector<8x4xf32> -> vector<8x896xf32>
    %c2_53 = arith.constant 2 : index
    %c0_54 = arith.constant 0 : index
    %294 = vector.load %arg4[%c2_53, %c0_54] : memref<13x896xf32, #tpu.memory_space<vmem>>, vector<1x896xf32>
    %295 = vector.broadcast %294 : vector<1x896xf32> to vector<8x896xf32>
    %296 = arith.addf %293, %295 : vector<8x896xf32>
    %297 = arith.maximumf %290, %296 : vector<8x896xf32>
    %298 = vector.extract_strided_slice %276 {offsets = [0, 3], sizes = [8, 893], strides = [1, 1]} : vector<8x896xf32> to vector<8x893xf32>
    %299 = vector.extract_strided_slice %276 {offsets = [0, 0], sizes = [8, 3], strides = [1, 1]} : vector<8x896xf32> to vector<8x3xf32>
    %300 = tpu.concatenate %298, %299 in 1 : vector<8x893xf32>, vector<8x3xf32> -> vector<8x896xf32>
    %c3_55 = arith.constant 3 : index
    %c0_56 = arith.constant 0 : index
    %301 = vector.load %arg4[%c3_55, %c0_56] : memref<13x896xf32, #tpu.memory_space<vmem>>, vector<1x896xf32>
    %302 = vector.broadcast %301 : vector<1x896xf32> to vector<8x896xf32>
    %303 = arith.addf %300, %302 : vector<8x896xf32>
    %304 = arith.maximumf %297, %303 : vector<8x896xf32>
    %305 = vector.extract_strided_slice %276 {offsets = [0, 2], sizes = [8, 894], strides = [1, 1]} : vector<8x896xf32> to vector<8x894xf32>
    %306 = vector.extract_strided_slice %276 {offsets = [0, 0], sizes = [8, 2], strides = [1, 1]} : vector<8x896xf32> to vector<8x2xf32>
    %307 = tpu.concatenate %305, %306 in 1 : vector<8x894xf32>, vector<8x2xf32> -> vector<8x896xf32>
    %c4_57 = arith.constant 4 : index
    %c0_58 = arith.constant 0 : index
    %308 = vector.load %arg4[%c4_57, %c0_58] : memref<13x896xf32, #tpu.memory_space<vmem>>, vector<1x896xf32>
    %309 = vector.broadcast %308 : vector<1x896xf32> to vector<8x896xf32>
    %310 = arith.addf %307, %309 : vector<8x896xf32>
    %311 = arith.maximumf %304, %310 : vector<8x896xf32>
    %312 = vector.extract_strided_slice %276 {offsets = [0, 1], sizes = [8, 895], strides = [1, 1]} : vector<8x896xf32> to vector<8x895xf32>
    %313 = vector.extract_strided_slice %276 {offsets = [0, 0], sizes = [8, 1], strides = [1, 1]} : vector<8x896xf32> to vector<8x1xf32>
    %314 = tpu.concatenate %312, %313 in 1 : vector<8x895xf32>, vector<8x1xf32> -> vector<8x896xf32>
    %c5_59 = arith.constant 5 : index
    %c0_60 = arith.constant 0 : index
    %315 = vector.load %arg4[%c5_59, %c0_60] : memref<13x896xf32, #tpu.memory_space<vmem>>, vector<1x896xf32>
    %316 = vector.broadcast %315 : vector<1x896xf32> to vector<8x896xf32>
    %317 = arith.addf %314, %316 : vector<8x896xf32>
    %318 = arith.maximumf %311, %317 : vector<8x896xf32>
    %319 = vector.extract_strided_slice %276 {offsets = [0, 895], sizes = [8, 1], strides = [1, 1]} : vector<8x896xf32> to vector<8x1xf32>
    %320 = vector.extract_strided_slice %276 {offsets = [0, 0], sizes = [8, 895], strides = [1, 1]} : vector<8x896xf32> to vector<8x895xf32>
    %321 = tpu.concatenate %319, %320 in 1 : vector<8x1xf32>, vector<8x895xf32> -> vector<8x896xf32>
    %c7_61 = arith.constant 7 : index
    %c0_62 = arith.constant 0 : index
    %322 = vector.load %arg4[%c7_61, %c0_62] : memref<13x896xf32, #tpu.memory_space<vmem>>, vector<1x896xf32>
    %323 = vector.broadcast %322 : vector<1x896xf32> to vector<8x896xf32>
    %324 = arith.addf %321, %323 : vector<8x896xf32>
    %325 = arith.maximumf %318, %324 : vector<8x896xf32>
    %326 = vector.extract_strided_slice %276 {offsets = [0, 894], sizes = [8, 2], strides = [1, 1]} : vector<8x896xf32> to vector<8x2xf32>
    %327 = vector.extract_strided_slice %276 {offsets = [0, 0], sizes = [8, 894], strides = [1, 1]} : vector<8x896xf32> to vector<8x894xf32>
    %328 = tpu.concatenate %326, %327 in 1 : vector<8x2xf32>, vector<8x894xf32> -> vector<8x896xf32>
    %c8_63 = arith.constant 8 : index
    %c0_64 = arith.constant 0 : index
    %329 = vector.load %arg4[%c8_63, %c0_64] : memref<13x896xf32, #tpu.memory_space<vmem>>, vector<1x896xf32>
    %330 = vector.broadcast %329 : vector<1x896xf32> to vector<8x896xf32>
    %331 = arith.addf %328, %330 : vector<8x896xf32>
    %332 = arith.maximumf %325, %331 : vector<8x896xf32>
    %333 = vector.extract_strided_slice %276 {offsets = [0, 893], sizes = [8, 3], strides = [1, 1]} : vector<8x896xf32> to vector<8x3xf32>
    %334 = vector.extract_strided_slice %276 {offsets = [0, 0], sizes = [8, 893], strides = [1, 1]} : vector<8x896xf32> to vector<8x893xf32>
    %335 = tpu.concatenate %333, %334 in 1 : vector<8x3xf32>, vector<8x893xf32> -> vector<8x896xf32>
    %c9_65 = arith.constant 9 : index
    %c0_66 = arith.constant 0 : index
    %336 = vector.load %arg4[%c9_65, %c0_66] : memref<13x896xf32, #tpu.memory_space<vmem>>, vector<1x896xf32>
    %337 = vector.broadcast %336 : vector<1x896xf32> to vector<8x896xf32>
    %338 = arith.addf %335, %337 : vector<8x896xf32>
    %339 = arith.maximumf %332, %338 : vector<8x896xf32>
    %340 = vector.extract_strided_slice %276 {offsets = [0, 892], sizes = [8, 4], strides = [1, 1]} : vector<8x896xf32> to vector<8x4xf32>
    %341 = vector.extract_strided_slice %276 {offsets = [0, 0], sizes = [8, 892], strides = [1, 1]} : vector<8x896xf32> to vector<8x892xf32>
    %342 = tpu.concatenate %340, %341 in 1 : vector<8x4xf32>, vector<8x892xf32> -> vector<8x896xf32>
    %c10_67 = arith.constant 10 : index
    %c0_68 = arith.constant 0 : index
    %343 = vector.load %arg4[%c10_67, %c0_68] : memref<13x896xf32, #tpu.memory_space<vmem>>, vector<1x896xf32>
    %344 = vector.broadcast %343 : vector<1x896xf32> to vector<8x896xf32>
    %345 = arith.addf %342, %344 : vector<8x896xf32>
    %346 = arith.maximumf %339, %345 : vector<8x896xf32>
    %347 = vector.extract_strided_slice %276 {offsets = [0, 891], sizes = [8, 5], strides = [1, 1]} : vector<8x896xf32> to vector<8x5xf32>
    %348 = vector.extract_strided_slice %276 {offsets = [0, 0], sizes = [8, 891], strides = [1, 1]} : vector<8x896xf32> to vector<8x891xf32>
    %349 = tpu.concatenate %347, %348 in 1 : vector<8x5xf32>, vector<8x891xf32> -> vector<8x896xf32>
    %c11_69 = arith.constant 11 : index
    %c0_70 = arith.constant 0 : index
    %350 = vector.load %arg4[%c11_69, %c0_70] : memref<13x896xf32, #tpu.memory_space<vmem>>, vector<1x896xf32>
    %351 = vector.broadcast %350 : vector<1x896xf32> to vector<8x896xf32>
    %352 = arith.addf %349, %351 : vector<8x896xf32>
    %353 = arith.maximumf %346, %352 : vector<8x896xf32>
    %354 = vector.extract_strided_slice %276 {offsets = [0, 890], sizes = [8, 6], strides = [1, 1]} : vector<8x896xf32> to vector<8x6xf32>
    %355 = vector.extract_strided_slice %276 {offsets = [0, 0], sizes = [8, 890], strides = [1, 1]} : vector<8x896xf32> to vector<8x890xf32>
    %356 = tpu.concatenate %354, %355 in 1 : vector<8x6xf32>, vector<8x890xf32> -> vector<8x896xf32>
    %c12_71 = arith.constant 12 : index
    %c0_72 = arith.constant 0 : index
    %357 = vector.load %arg4[%c12_71, %c0_72] : memref<13x896xf32, #tpu.memory_space<vmem>>, vector<1x896xf32>
    %358 = vector.broadcast %357 : vector<1x896xf32> to vector<8x896xf32>
    %359 = arith.addf %356, %358 : vector<8x896xf32>
    %360 = arith.maximumf %353, %359 : vector<8x896xf32>
    %361 = arith.subf %276, %360 : vector<8x896xf32>
    %362 = math.exp %361 : vector<8x896xf32>
    %363 = vector.extract_strided_slice %362 {offsets = [0, 6], sizes = [8, 890], strides = [1, 1]} : vector<8x896xf32> to vector<8x890xf32>
    %364 = vector.extract_strided_slice %362 {offsets = [0, 0], sizes = [8, 6], strides = [1, 1]} : vector<8x896xf32> to vector<8x6xf32>
    %365 = tpu.concatenate %363, %364 in 1 : vector<8x890xf32>, vector<8x6xf32> -> vector<8x896xf32>
    %c0_73 = arith.constant 0 : index
    %c0_74 = arith.constant 0 : index
    %366 = vector.load %arg5[%c0_73, %c0_74] : memref<13x896xf32, #tpu.memory_space<vmem>>, vector<1x896xf32>
    %367 = vector.broadcast %366 : vector<1x896xf32> to vector<8x896xf32>
    %368 = arith.mulf %365, %367 : vector<8x896xf32>
    %369 = arith.addf %362, %368 : vector<8x896xf32>
    %370 = vector.extract_strided_slice %362 {offsets = [0, 5], sizes = [8, 891], strides = [1, 1]} : vector<8x896xf32> to vector<8x891xf32>
    %371 = vector.extract_strided_slice %362 {offsets = [0, 0], sizes = [8, 5], strides = [1, 1]} : vector<8x896xf32> to vector<8x5xf32>
    %372 = tpu.concatenate %370, %371 in 1 : vector<8x891xf32>, vector<8x5xf32> -> vector<8x896xf32>
    %c1_75 = arith.constant 1 : index
    %c0_76 = arith.constant 0 : index
    %373 = vector.load %arg5[%c1_75, %c0_76] : memref<13x896xf32, #tpu.memory_space<vmem>>, vector<1x896xf32>
    %374 = vector.broadcast %373 : vector<1x896xf32> to vector<8x896xf32>
    %375 = arith.mulf %372, %374 : vector<8x896xf32>
    %376 = arith.addf %369, %375 : vector<8x896xf32>
    %377 = vector.extract_strided_slice %362 {offsets = [0, 4], sizes = [8, 892], strides = [1, 1]} : vector<8x896xf32> to vector<8x892xf32>
    %378 = vector.extract_strided_slice %362 {offsets = [0, 0], sizes = [8, 4], strides = [1, 1]} : vector<8x896xf32> to vector<8x4xf32>
    %379 = tpu.concatenate %377, %378 in 1 : vector<8x892xf32>, vector<8x4xf32> -> vector<8x896xf32>
    %c2_77 = arith.constant 2 : index
    %c0_78 = arith.constant 0 : index
    %380 = vector.load %arg5[%c2_77, %c0_78] : memref<13x896xf32, #tpu.memory_space<vmem>>, vector<1x896xf32>
    %381 = vector.broadcast %380 : vector<1x896xf32> to vector<8x896xf32>
    %382 = arith.mulf %379, %381 : vector<8x896xf32>
    %383 = arith.addf %376, %382 : vector<8x896xf32>
    %384 = vector.extract_strided_slice %362 {offsets = [0, 3], sizes = [8, 893], strides = [1, 1]} : vector<8x896xf32> to vector<8x893xf32>
    %385 = vector.extract_strided_slice %362 {offsets = [0, 0], sizes = [8, 3], strides = [1, 1]} : vector<8x896xf32> to vector<8x3xf32>
    %386 = tpu.concatenate %384, %385 in 1 : vector<8x893xf32>, vector<8x3xf32> -> vector<8x896xf32>
    %c3_79 = arith.constant 3 : index
    %c0_80 = arith.constant 0 : index
    %387 = vector.load %arg5[%c3_79, %c0_80] : memref<13x896xf32, #tpu.memory_space<vmem>>, vector<1x896xf32>
    %388 = vector.broadcast %387 : vector<1x896xf32> to vector<8x896xf32>
    %389 = arith.mulf %386, %388 : vector<8x896xf32>
    %390 = arith.addf %383, %389 : vector<8x896xf32>
    %391 = vector.extract_strided_slice %362 {offsets = [0, 2], sizes = [8, 894], strides = [1, 1]} : vector<8x896xf32> to vector<8x894xf32>
    %392 = vector.extract_strided_slice %362 {offsets = [0, 0], sizes = [8, 2], strides = [1, 1]} : vector<8x896xf32> to vector<8x2xf32>
    %393 = tpu.concatenate %391, %392 in 1 : vector<8x894xf32>, vector<8x2xf32> -> vector<8x896xf32>
    %c4_81 = arith.constant 4 : index
    %c0_82 = arith.constant 0 : index
    %394 = vector.load %arg5[%c4_81, %c0_82] : memref<13x896xf32, #tpu.memory_space<vmem>>, vector<1x896xf32>
    %395 = vector.broadcast %394 : vector<1x896xf32> to vector<8x896xf32>
    %396 = arith.mulf %393, %395 : vector<8x896xf32>
    %397 = arith.addf %390, %396 : vector<8x896xf32>
    %398 = vector.extract_strided_slice %362 {offsets = [0, 1], sizes = [8, 895], strides = [1, 1]} : vector<8x896xf32> to vector<8x895xf32>
    %399 = vector.extract_strided_slice %362 {offsets = [0, 0], sizes = [8, 1], strides = [1, 1]} : vector<8x896xf32> to vector<8x1xf32>
    %400 = tpu.concatenate %398, %399 in 1 : vector<8x895xf32>, vector<8x1xf32> -> vector<8x896xf32>
    %c5_83 = arith.constant 5 : index
    %c0_84 = arith.constant 0 : index
    %401 = vector.load %arg5[%c5_83, %c0_84] : memref<13x896xf32, #tpu.memory_space<vmem>>, vector<1x896xf32>
    %402 = vector.broadcast %401 : vector<1x896xf32> to vector<8x896xf32>
    %403 = arith.mulf %400, %402 : vector<8x896xf32>
    %404 = arith.addf %397, %403 : vector<8x896xf32>
    %405 = vector.extract_strided_slice %362 {offsets = [0, 895], sizes = [8, 1], strides = [1, 1]} : vector<8x896xf32> to vector<8x1xf32>
    %406 = vector.extract_strided_slice %362 {offsets = [0, 0], sizes = [8, 895], strides = [1, 1]} : vector<8x896xf32> to vector<8x895xf32>
    %407 = tpu.concatenate %405, %406 in 1 : vector<8x1xf32>, vector<8x895xf32> -> vector<8x896xf32>
    %c7_85 = arith.constant 7 : index
    %c0_86 = arith.constant 0 : index
    %408 = vector.load %arg5[%c7_85, %c0_86] : memref<13x896xf32, #tpu.memory_space<vmem>>, vector<1x896xf32>
    %409 = vector.broadcast %408 : vector<1x896xf32> to vector<8x896xf32>
    %410 = arith.mulf %407, %409 : vector<8x896xf32>
    %411 = arith.addf %404, %410 : vector<8x896xf32>
    %412 = vector.extract_strided_slice %362 {offsets = [0, 894], sizes = [8, 2], strides = [1, 1]} : vector<8x896xf32> to vector<8x2xf32>
    %413 = vector.extract_strided_slice %362 {offsets = [0, 0], sizes = [8, 894], strides = [1, 1]} : vector<8x896xf32> to vector<8x894xf32>
    %414 = tpu.concatenate %412, %413 in 1 : vector<8x2xf32>, vector<8x894xf32> -> vector<8x896xf32>
    %c8_87 = arith.constant 8 : index
    %c0_88 = arith.constant 0 : index
    %415 = vector.load %arg5[%c8_87, %c0_88] : memref<13x896xf32, #tpu.memory_space<vmem>>, vector<1x896xf32>
    %416 = vector.broadcast %415 : vector<1x896xf32> to vector<8x896xf32>
    %417 = arith.mulf %414, %416 : vector<8x896xf32>
    %418 = arith.addf %411, %417 : vector<8x896xf32>
    %419 = vector.extract_strided_slice %362 {offsets = [0, 893], sizes = [8, 3], strides = [1, 1]} : vector<8x896xf32> to vector<8x3xf32>
    %420 = vector.extract_strided_slice %362 {offsets = [0, 0], sizes = [8, 893], strides = [1, 1]} : vector<8x896xf32> to vector<8x893xf32>
    %421 = tpu.concatenate %419, %420 in 1 : vector<8x3xf32>, vector<8x893xf32> -> vector<8x896xf32>
    %c9_89 = arith.constant 9 : index
    %c0_90 = arith.constant 0 : index
    %422 = vector.load %arg5[%c9_89, %c0_90] : memref<13x896xf32, #tpu.memory_space<vmem>>, vector<1x896xf32>
    %423 = vector.broadcast %422 : vector<1x896xf32> to vector<8x896xf32>
    %424 = arith.mulf %421, %423 : vector<8x896xf32>
    %425 = arith.addf %418, %424 : vector<8x896xf32>
    %426 = vector.extract_strided_slice %362 {offsets = [0, 892], sizes = [8, 4], strides = [1, 1]} : vector<8x896xf32> to vector<8x4xf32>
    %427 = vector.extract_strided_slice %362 {offsets = [0, 0], sizes = [8, 892], strides = [1, 1]} : vector<8x896xf32> to vector<8x892xf32>
    %428 = tpu.concatenate %426, %427 in 1 : vector<8x4xf32>, vector<8x892xf32> -> vector<8x896xf32>
    %c10_91 = arith.constant 10 : index
    %c0_92 = arith.constant 0 : index
    %429 = vector.load %arg5[%c10_91, %c0_92] : memref<13x896xf32, #tpu.memory_space<vmem>>, vector<1x896xf32>
    %430 = vector.broadcast %429 : vector<1x896xf32> to vector<8x896xf32>
    %431 = arith.mulf %428, %430 : vector<8x896xf32>
    %432 = arith.addf %425, %431 : vector<8x896xf32>
    %433 = vector.extract_strided_slice %362 {offsets = [0, 891], sizes = [8, 5], strides = [1, 1]} : vector<8x896xf32> to vector<8x5xf32>
    %434 = vector.extract_strided_slice %362 {offsets = [0, 0], sizes = [8, 891], strides = [1, 1]} : vector<8x896xf32> to vector<8x891xf32>
    %435 = tpu.concatenate %433, %434 in 1 : vector<8x5xf32>, vector<8x891xf32> -> vector<8x896xf32>
    %c11_93 = arith.constant 11 : index
    %c0_94 = arith.constant 0 : index
    %436 = vector.load %arg5[%c11_93, %c0_94] : memref<13x896xf32, #tpu.memory_space<vmem>>, vector<1x896xf32>
    %437 = vector.broadcast %436 : vector<1x896xf32> to vector<8x896xf32>
    %438 = arith.mulf %435, %437 : vector<8x896xf32>
    %439 = arith.addf %432, %438 : vector<8x896xf32>
    %440 = vector.extract_strided_slice %362 {offsets = [0, 890], sizes = [8, 6], strides = [1, 1]} : vector<8x896xf32> to vector<8x6xf32>
    %441 = vector.extract_strided_slice %362 {offsets = [0, 0], sizes = [8, 890], strides = [1, 1]} : vector<8x896xf32> to vector<8x890xf32>
    %442 = tpu.concatenate %440, %441 in 1 : vector<8x6xf32>, vector<8x890xf32> -> vector<8x896xf32>
    %c12_95 = arith.constant 12 : index
    %c0_96 = arith.constant 0 : index
    %443 = vector.load %arg5[%c12_95, %c0_96] : memref<13x896xf32, #tpu.memory_space<vmem>>, vector<1x896xf32>
    %444 = vector.broadcast %443 : vector<1x896xf32> to vector<8x896xf32>
    %445 = arith.mulf %442, %444 : vector<8x896xf32>
    %446 = arith.addf %439, %445 : vector<8x896xf32>
    %447 = arith.divf %362, %446 : vector<8x896xf32>
    %c0_97 = arith.constant 0 : index
    %c0_98 = arith.constant 0 : index
    %448 = vector.load %arg6[%c0_97, %c0_98] : memref<8x896xf32, #tpu.memory_space<vmem>>, vector<8x896xf32>
    tpu.vector_store %arg6[%c0_97, %c0_98], %447 {strides = array<i32>} : memref<8x896xf32, #tpu.memory_space<vmem>>, vector<8x896xf32>,
    return
  }
  func.func @transform_0(%arg0: i32) -> (i32, i32) {
    %c0_i32 = arith.constant 0 : i32
    %c0_i32_0 = arith.constant 0 : i32
    return %arg0, %c0_i32 : i32, i32
  }
  func.func @transform_1(%arg0: i32) -> (i32, i32) {
    %c0_i32 = arith.constant 0 : i32
    %c0_i32_0 = arith.constant 0 : i32
    %c0_i32_1 = arith.constant 0 : i32
    return %c0_i32, %c0_i32_0 : i32, i32
  }
  func.func @transform_2(%arg0: i32) -> (i32, i32) {
    %c0_i32 = arith.constant 0 : i32
    %c0_i32_0 = arith.constant 0 : i32
    %c0_i32_1 = arith.constant 0 : i32
    return %c0_i32, %c0_i32_0 : i32, i32
  }
  func.func @transform_3(%arg0: i32) -> (i32, i32) {
    %c0_i32 = arith.constant 0 : i32
    %c0_i32_0 = arith.constant 0 : i32
    %c0_i32_1 = arith.constant 0 : i32
    return %c0_i32, %c0_i32_0 : i32, i32
  }
  func.func @transform_4(%arg0: i32) -> (i32, i32) {
    %c0_i32 = arith.constant 0 : i32
    %c0_i32_0 = arith.constant 0 : i32
    %c0_i32_1 = arith.constant 0 : i32
    return %c0_i32, %c0_i32_0 : i32, i32
  }
  func.func @transform_5(%arg0: i32) -> (i32, i32) {
    %c0_i32 = arith.constant 0 : i32
    %c0_i32_0 = arith.constant 0 : i32
    return %arg0, %c0_i32 : i32, i32
  }
}

</mosaic_0001>

<llo_original>
// kernel: tpu_custom_call.1
$region0: #{tpu_custom_call.1}
  #allocation0 [shape = 'u32[]', space=smem, size = 0x4, offset = 0x4, fixed_abs, tag = 'smem constant byte address 0x4 - core index']
  #allocation1 [shape = 'u32[144,128]{1,0:T(1,128)}', space=vmem, size = 0x12000, scoped, tag = 'internal scratch']
  %s0 = inlined_call_operand.hbm [shape: f32[48,896], index: 0, kind: input, shape index: {}]
  %s1 = inlined_call_operand.hbm [shape: f32[39,896], index: 1, kind: input, shape index: {}]
  %s2 = inlined_call_operand.hbm [shape: f32[3,896], index: 2, kind: input, shape index: {}]
  %s3 = inlined_call_operand.hbm [shape: f32[13,896], index: 3, kind: input, shape index: {}]
  %s4 = inlined_call_operand.hbm [shape: f32[13,896], index: 4, kind: input, shape index: {}]
  %s5 = inlined_call_operand.hbm [shape: f32[48,896], index: 5, kind: output, shape index: {}]
  %s6 = sld [smem:[#allocation0]]
  $region73: #{tpu_custom_call.1} parent=0
    _
  %s8 = ssub.s32 1, %s6
  %s9 = scalar_select 0, %s8, %s6
  $region1: #{tpu_custom_call.1} parent=0
    #allocation2 [shape = 'u8[57344]{0}', space=vmem, size = 0xe000, scoped, tag = 'input window, operand 0']
    #allocation3 [shape = 's32[2]{0}', space=sflag, size = 0x8, scoped, tag = 'scoped memory for tpu_custom_call.1']
    #allocation4 [shape = 's32[2]{0}', space=sflag, size = 0x8, scoped, tag = 'scoped memory for tpu_custom_call.1']
    #allocation5 [shape = 'u8[143360]{0}', space=vmem, size = 0x23000, scoped, tag = 'input window, operand 1, single buffered']
    #allocation6 [shape = 's32[1]{0}', space=sflag, size = 0x4, scoped, tag = 'scoped memory for tpu_custom_call.1']
    #allocation7 [shape = 'u8[14336]{0}', space=vmem, size = 0x3800, scoped, tag = 'input window, operand 2, single buffered']
    #allocation8 [shape = 'u8[57344]{0}', space=vmem, size = 0xe000, scoped, tag = 'input window, operand 3, single buffered']
    #allocation9 [shape = 's32[1]{0}', space=sflag, size = 0x4, scoped, tag = 'scoped memory for tpu_custom_call.1']
    #allocation10 [shape = 'u8[57344]{0}', space=vmem, size = 0xe000, scoped, tag = 'input window, operand 4, single buffered']
    #allocation11 [shape = 'u8[57344]{0}', space=vmem, size = 0xe000, scoped, tag = 'output window, operand 0']
    %10 = vsyncpa [#allocation3], 0
    %s11 = scalar_lea.sflag [#allocation3], 1
    %12 = vsyncpa %s11, 0
    %13 = vsyncpa [#allocation6], 0
    %14 = vsyncpa [#allocation9], 0
    %15 = vsyncpa [#allocation4], 0
    %s16 = scalar_lea.sflag [#allocation4], 1
    %17 = vsyncpa %s16, 0
    loop: start=0, step=1, limit=8
    $region2: #{tpu_custom_call.1} parent=1 // loop_pre_header
      _
    $region3: #{tpu_custom_call.1} parent=1 // loop_header
      %s19 = sphi 0, %s23
      %p20 = scmp.ge.s32.totalorder %s19, 8
      %s29 = sphi 0, %s31
      %s32 = sphi 0, %s29
      %s33 = sphi 0, %s32
      %s49 = sphi 0, %s33
      %s53 = sphi 0, %s53
      %s55 = sphi 0, %s53
      %s56 = sphi 0, %s55
      %s70 = sphi 0, %s56
      %s74 = sphi 0, %s74
      %s76 = sphi 0, %s74
      %s77 = sphi 0, %s76
      %s91 = sphi 0, %s77
      %s95 = sphi 0, %s95
      %s97 = sphi 0, %s95
      %s98 = sphi 0, %s97
      %s112 = sphi 0, %s98
      %s116 = sphi 0, %s116
      %s118 = sphi 0, %s116
      %s119 = sphi 0, %s118
      %s133 = sphi 0, %s119
      %s139 = sphi 0, %s141
      %s142 = sphi 0, %s139
      %s143 = sphi 0, %s142
      %s159 = sphi 0, %s143
    $region4: #{tpu_custom_call.1} parent=1 // loop_header_branch
      %22 = sbr.rel (%p20) target = $region8
    $region5: #{tpu_custom_call.1} parent=1 // loop_body
      %s24 = ssub.s32 %s19, 1
      %s25 = ssub.s32 %s19, 2
      %s26 = sadd.s32 %s19, 1
      %s27 = ssub.s32 %s19, %s26
      %p28 = scmp.eq.s32.totalorder %s27, 0
      %s30 = sadd.s32 %s29, 1
      %s31 = scalar_select %p28, %s29, %s30
      %p34 = pneg %p28
      %p35 = scmp.eq.s32.totalorder %s19, 5
      %p36 = por %p34, %p35
      %p37 = scmp.ne.s32.totalorder %s29, %s32
      %p38 = scmp.eq.s32.totalorder %s19, 0
      %p39 = por %p37, %p38
      %p40 = scmp.ne.s32.totalorder %s29, %s32
      %p41 = scmp.eq.s32.totalorder %s24, 5
      %p42 = por %p40, %p41
      %p43 = scmp.ne.s32.totalorder %s32, %s33
      %p44 = scmp.eq.s32.totalorder %s24, 0
      %p45 = por %p43, %p44
      %p46 = scmp.ne.s32.totalorder %s32, %s33
      %p47 = scmp.eq.s32.totalorder %s25, 5
      %p48 = por %p46, %p47
      %p50 = scmp.ne.s32.totalorder %s33, %s49
      %p51 = scmp.eq.s32.totalorder %s25, 0
      %p52 = por %p50, %p51
      %s54 = sadd.s32 %s53, 1
      %p57 = scmp.eq.s32.totalorder %s19, 5
      %p58 = scmp.ne.s32.totalorder %s53, %s55
      %p59 = scmp.eq.s32.totalorder %s19, 0
      %p60 = por %p58, %p59
      %p61 = scmp.ne.s32.totalorder %s53, %s55
      %p62 = scmp.eq.s32.totalorder %s24, 5
      %p63 = por %p61, %p62
      %p64 = scmp.ne.s32.totalorder %s55, %s56
      %p65 = scmp.eq.s32.totalorder %s24, 0
      %p66 = por %p64, %p65
      %p67 = scmp.ne.s32.totalorder %s55, %s56
      %p68 = scmp.eq.s32.totalorder %s25, 5
      %p69 = por %p67, %p68
      %p71 = scmp.ne.s32.totalorder %s56, %s70
      %p72 = scmp.eq.s32.totalorder %s25, 0
      %p73 = por %p71, %p72
      %s75 = sadd.s32 %s74, 1
      %p78 = scmp.eq.s32.totalorder %s19, 5
      %p79 = scmp.ne.s32.totalorder %s74, %s76
      %p80 = scmp.eq.s32.totalorder %s19, 0
      %p81 = por %p79, %p80
      %p82 = scmp.ne.s32.totalorder %s74, %s76
      %p83 = scmp.eq.s32.totalorder %s24, 5
      %p84 = por %p82, %p83
      %p85 = scmp.ne.s32.totalorder %s76, %s77
      %p86 = scmp.eq.s32.totalorder %s24, 0
      %p87 = por %p85, %p86
      %p88 = scmp.ne.s32.totalorder %s76, %s77
      %p89 = scmp.eq.s32.totalorder %s25, 5
      %p90 = por %p88, %p89
      %p92 = scmp.ne.s32.totalorder %s77, %s91
      %p93 = scmp.eq.s32.totalorder %s25, 0
      %p94 = por %p92, %p93
      %s96 = sadd.s32 %s95, 1
      %p99 = scmp.eq.s32.totalorder %s19, 5
      %p100 = scmp.ne.s32.totalorder %s95, %s97
      %p101 = scmp.eq.s32.totalorder %s19, 0
      %p102 = por %p100, %p101
      %p103 = scmp.ne.s32.totalorder %s95, %s97
      %p104 = scmp.eq.s32.totalorder %s24, 5
      %p105 = por %p103, %p104
      %p106 = scmp.ne.s32.totalorder %s97, %s98
      %p107 = scmp.eq.s32.totalorder %s24, 0
      %p108 = por %p106, %p107
      %p109 = scmp.ne.s32.totalorder %s97, %s98
      %p110 = scmp.eq.s32.totalorder %s25, 5
      %p111 = por %p109, %p110
      %p113 = scmp.ne.s32.totalorder %s98, %s112
      %p114 = scmp.eq.s32.totalorder %s25, 0
      %p115 = por %p113, %p114
      %s117 = sadd.s32 %s116, 1
      %p120 = scmp.eq.s32.totalorder %s19, 5
      %p121 = scmp.ne.s32.totalorder %s116, %s118
      %p122 = scmp.eq.s32.totalorder %s19, 0
      %p123 = por %p121, %p122
      %p124 = scmp.ne.s32.totalorder %s116, %s118
      %p125 = scmp.eq.s32.totalorder %s24, 5
      %p126 = por %p124, %p125
      %p127 = scmp.ne.s32.totalorder %s118, %s119
      %p128 = scmp.eq.s32.totalorder %s24, 0
      %p129 = por %p127, %p128
      %p130 = scmp.ne.s32.totalorder %s118, %s119
      %p131 = scmp.eq.s32.totalorder %s25, 5
      %p132 = por %p130, %p131
      %p134 = scmp.ne.s32.totalorder %s119, %s133
      %p135 = scmp.eq.s32.totalorder %s25, 0
      %p136 = por %p134, %p135
      %s137 = ssub.s32 %s19, %s26
      %p138 = scmp.eq.s32.totalorder %s137, 0
      %s140 = sadd.s32 %s139, 1
      %s141 = scalar_select %p138, %s139, %s140
      %p144 = pneg %p138
      %p145 = scmp.eq.s32.totalorder %s19, 5
      %p146 = por %p144, %p145
      %p147 = scmp.ne.s32.totalorder %s139, %s142
      %p148 = scmp.eq.s32.totalorder %s19, 0
      %p149 = por %p147, %p148
      %p150 = scmp.ne.s32.totalorder %s139, %s142
      %p151 = scmp.eq.s32.totalorder %s24, 5
      %p152 = por %p150, %p151
      %p153 = scmp.ne.s32.totalorder %s142, %s143
      %p154 = scmp.eq.s32.totalorder %s24, 0
      %p155 = por %p153, %p154
      %p156 = scmp.ne.s32.totalorder %s142, %s143
      %p157 = scmp.eq.s32.totalorder %s25, 5
      %p158 = por %p156, %p157
      %p160 = scmp.ne.s32.totalorder %s143, %s159
      %p161 = scmp.eq.s32.totalorder %s25, 0
      %p162 = por %p160, %p161
      %p163 = scmp.le.s32.totalorder 1, %s19
      %p164 = scmp.lt.s32.totalorder %s19, 7
      %p165 = pnand %p163, %p164
      %p166 = pneg %p165
      // Predicated region
      $region9: #{tpu_custom_call.1} parent=5 // pred_check
        _
      $region10: #{tpu_custom_call.1} parent=5 // pred_check_branch
        %168 = sbr.rel (%p165) target = $region12
      $region11: #{tpu_custom_call.1} parent=5 // pred_region
        %s169 = ssub.s32 %s19, 1
        // Predicated region
        $region13: #{tpu_custom_call.1} parent=11 // pred_check
          %p170 = pneg %p66
        $region14: #{tpu_custom_call.1} parent=11 // pred_check_branch
          %172 = sbr.rel (%p170) target = $region16
        $region15: #{tpu_custom_call.1} parent=11 // pred_region
          %s174 = ssub.s32 4480, 4480
          %175 = vsyncadd [#allocation6], %s174
          %s176 = sshll.u32 [#allocation5], 4
          %s177 = int_to_ptr.vmem [resolvable:$true] %s176
          %182 = dma.hbm_to_vmem [thread:$0]  %s1, 4480, %s177, [#allocation6], 896, 896, 56
        $region16: #{tpu_custom_call.1} parent=11 // pred_fallthru
          _
        // Predicated region
        $region17: #{tpu_custom_call.1} parent=11 // pred_check
          %p183 = pneg %p87
        $region18: #{tpu_custom_call.1} parent=11 // pred_check_branch
          %185 = sbr.rel (%p183) target = $region20
        $region19: #{tpu_custom_call.1} parent=11 // pred_region
          %s187 = ssub.s32 448, 448
          %188 = vsyncadd [#allocation6], %s187
          %s190 = sshll.u32 [#allocation7], 4
          %s191 = int_to_ptr.vmem [resolvable:$true] %s190
          %193 = dma.hbm_to_vmem [thread:$0]  %s2, 448, %s191, [#allocation6]
        $region20: #{tpu_custom_call.1} parent=11 // pred_fallthru
          _
        // Predicated region
        $region21: #{tpu_custom_call.1} parent=11 // pred_check
          %p194 = pneg %p108
        $region22: #{tpu_custom_call.1} parent=11 // pred_check_branch
          %196 = sbr.rel (%p194) target = $region24
        $region23: #{tpu_custom_call.1} parent=11 // pred_region
          %s198 = ssub.s32 1792, 1792
          %199 = vsyncadd [#allocation9], %s198
          %s200 = sshll.u32 [#allocation8], 4
          %s201 = int_to_ptr.vmem [resolvable:$true] %s200
          %206 = dma.hbm_to_vmem [thread:$0]  %s3, 1792, %s201, [#allocation9], 896, 896, 56
        $region24: #{tpu_custom_call.1} parent=11 // pred_fallthru
          _
        // Predicated region
        $region25: #{tpu_custom_call.1} parent=11 // pred_check
          %p207 = pneg %p129
        $region26: #{tpu_custom_call.1} parent=11 // pred_check_branch
          %209 = sbr.rel (%p207) target = $region28
        $region27: #{tpu_custom_call.1} parent=11 // pred_region
          %s211 = ssub.s32 1792, 1792
          %212 = vsyncadd [#allocation9], %s211
          %s213 = sshll.u32 [#allocation10], 4
          %s214 = int_to_ptr.vmem [resolvable:$true] %s213
          %219 = dma.hbm_to_vmem [thread:$0]  %s4, 1792, %s214, [#allocation9], 896, 896, 56
        $region28: #{tpu_custom_call.1} parent=11 // pred_fallthru
          _
      $region12: #{tpu_custom_call.1} parent=5 // pred_fallthru
        _
      %p220 = scmp.lt.s32.totalorder %s19, 6
      // Predicated region
      $region29: #{tpu_custom_call.1} parent=5 // pred_check
        %p221 = pneg %p220
      $region30: #{tpu_custom_call.1} parent=5 // pred_check_branch
        %223 = sbr.rel (%p221) target = $region32
      $region31: #{tpu_custom_call.1} parent=5 // pred_region
        // Predicated region
        $region33: #{tpu_custom_call.1} parent=31 // pred_check
          %p224 = pneg %p39
        $region34: #{tpu_custom_call.1} parent=31 // pred_check_branch
          %226 = sbr.rel (%p224) target = $region36
        $region35: #{tpu_custom_call.1} parent=31 // pred_region
          %s227 = sand.u32 %s29, 1
          %s228 = scalar_lea.sflag [#allocation3], %s227
          %s229 = sand.u32 %s29, 1
          %s230 = smul.addr %s229, 56
          %s231 = scalar_lea.vmem [#allocation2], %s230
          %s233 = ssub.s32 896, 896
          %234 = vsyncadd %s228, %s233
          %s235 = smul.addr %s19, 7
          %s236 = smul.addr %s235, 128
          %s237 = scalar_lea.hbm %s0, %s236
          %s239 = sshll.u32 %s231, 4
          %s240 = int_to_ptr.vmem [resolvable:$true] %s239
          %242 = dma.hbm_to_vmem [thread:$0]  %s237, 896, %s240, %s228
        $region36: #{tpu_custom_call.1} parent=31 // pred_fallthru
          _
      $region32: #{tpu_custom_call.1} parent=5 // pred_fallthru
        _
      %p243 = scmp.le.s32.totalorder 1, %s19
      %p244 = scmp.lt.s32.totalorder %s19, 7
      %p245 = pnand %p243, %p244
      %p246 = pneg %p245
      // Predicated region
      $region37: #{tpu_custom_call.1} parent=5 // pred_check
        _
      $region38: #{tpu_custom_call.1} parent=5 // pred_check_branch
        %248 = sbr.rel (%p245) target = $region40
      $region39: #{tpu_custom_call.1} parent=5 // pred_region
        %s249 = ssub.s32 %s19, 1
        %s250 = sand.u32 %s32, 1
        %s251 = scalar_lea.sflag [#allocation3], %s250
        %s252 = sand.u32 %s32, 1
        %s253 = smul.addr %s252, 56
        %s254 = scalar_lea.vmem [#allocation2], %s253
        // Predicated region
        $region41: #{tpu_custom_call.1} parent=39 // pred_check
          %p255 = pneg %p45
        $region42: #{tpu_custom_call.1} parent=39 // pred_check_branch
          %257 = sbr.rel (%p255) target = $region44
        $region43: #{tpu_custom_call.1} parent=39 // pred_region
          %258 = dma.done %s251, 896
        $region44: #{tpu_custom_call.1} parent=39 // pred_fallthru
          _
        // Predicated region
        $region45: #{tpu_custom_call.1} parent=39 // pred_check
          %p259 = pneg %p66
        $region46: #{tpu_custom_call.1} parent=39 // pred_check_branch
          %261 = sbr.rel (%p259) target = $region48
        $region47: #{tpu_custom_call.1} parent=39 // pred_region
          %262 = dma.done [#allocation6], 4480
        $region48: #{tpu_custom_call.1} parent=39 // pred_fallthru
          _
        // Predicated region
        $region49: #{tpu_custom_call.1} parent=39 // pred_check
          %p263 = pneg %p87
        $region50: #{tpu_custom_call.1} parent=39 // pred_check_branch
          %265 = sbr.rel (%p263) target = $region52
        $region51: #{tpu_custom_call.1} parent=39 // pred_region
          %266 = dma.done [#allocation6], 448
        $region52: #{tpu_custom_call.1} parent=39 // pred_fallthru
          _
        // Predicated region
        $region53: #{tpu_custom_call.1} parent=39 // pred_check
          %p267 = pneg %p108
        $region54: #{tpu_custom_call.1} parent=39 // pred_check_branch
          %269 = sbr.rel (%p267) target = $region56
        $region55: #{tpu_custom_call.1} parent=39 // pred_region
          %270 = dma.done [#allocation9], 1792
        $region56: #{tpu_custom_call.1} parent=39 // pred_fallthru
          _
        // Predicated region
        $region57: #{tpu_custom_call.1} parent=39 // pred_check
          %p271 = pneg %p129
        $region58: #{tpu_custom_call.1} parent=39 // pred_check_branch
          %273 = sbr.rel (%p271) target = $region60
        $region59: #{tpu_custom_call.1} parent=39 // pred_region
          %274 = dma.done [#allocation9], 1792
        $region60: #{tpu_custom_call.1} parent=39 // pred_fallthru
          _
        %s275 = sand.u32 %s32, 1
        %s276 = scalar_lea.sflag [#allocation3], %s275
        %s277 = sand.u32 %s32, 1
        %s278 = smul.addr %s277, 56
        %s279 = scalar_lea.vmem [#allocation2], %s278
        %p280 = pneg %p45
        %p281 = pneg %p42
        %p282 = pneg %p66
        %p283 = pneg %p63
        %p284 = pneg %p87
        %p285 = pneg %p84
        %p286 = pneg %p108
        %p287 = pneg %p105
        %p288 = pneg %p129
        %p289 = pneg %p126
        %p290 = pneg %p155
        %p291 = pneg %p152
        %s292 = sand.u32 %s142, 1
        %s293 = scalar_lea.sflag [#allocation4], %s292
        %s294 = sand.u32 %s142, 1
        %s295 = smul.addr %s294, 56
        %s296 = scalar_lea.vmem [#allocation11], %s295
        %v297 = vld [vmem:[%s254] sm:$0xff]
        %v298 = vld [vmem:[%s254 + $0x8] sm:$0xff]
        %v299 = vld [vmem:[%s254 + $0x10] sm:$0xff]
        %v300 = vld [vmem:[%s254 + $0x18] sm:$0xff]
        %v301 = vld [vmem:[%s254 + $0x20] sm:$0xff]
        %v302 = vld [vmem:[%s254 + $0x28] sm:$0xff]
        %v303 = vld [vmem:[%s254 + $0x30] sm:$0xff]
        %s304 = scalar_lea.vmem [#allocation5], 6
        %v305 = vld [vmem:[%s304] ss:$8 sm:$0xf]
        %v306 = vld [vmem:[%s304] ss:$8 sm:$0xf0]
        %v307 = vor.u32 %v305, %v306
        %v309 = vlaneseq
        %v310 = vshrl.u32 %v309, 7
        %v311 = vsub.s32 0, %v310
        %v312 = vrot.slane %v307, %v311
        %v313 = vlaneseq
        %v314 = vshrl.u32 %v313, 7
        %v315 = vsub.s32 1, %v314
        %v316 = vrot.slane %v307, %v315
        %v317 = vlaneseq
        %v318 = vshrl.u32 %v317, 7
        %v319 = vsub.s32 2, %v318
        %v320 = vrot.slane %v307, %v319
        %v321 = vlaneseq
        %v322 = vshrl.u32 %v321, 7
        %v323 = vsub.s32 3, %v322
        %v324 = vrot.slane %v307, %v323
        %v325 = vlaneseq
        %v326 = vshrl.u32 %v325, 7
        %v327 = vsub.s32 4, %v326
        %v328 = vrot.slane %v307, %v327
        %v329 = vlaneseq
        %v330 = vshrl.u32 %v329, 7
        %v331 = vsub.s32 5, %v330
        %v332 = vrot.slane %v307, %v331
        %v333 = vlaneseq
        %v334 = vshrl.u32 %v333, 7
        %v335 = vsub.s32 6, %v334
        %v336 = vrot.slane %v307, %v335
        %v344 = vmul.f32 %v297, %v312
        %v345 = vmul.f32 %v298, %v316
        %v346 = vmul.f32 %v299, %v320
        %v347 = vmul.f32 %v300, %v324
        %v348 = vmul.f32 %v301, %v328
        %v349 = vmul.f32 %v302, %v332
        %v350 = vmul.f32 %v303, %v336
        %358 = vrot.lane.b32.xlu0 %v297, 122
        %v359 = vpop.permute.xlu0 %358
        %360 = vrot.lane.b32.xlu0 %v298, 122
        %v361 = vpop.permute.xlu0 %360
        %362 = vrot.lane.b32.xlu0 %v299, 122
        %v363 = vpop.permute.xlu0 %362
        %364 = vrot.lane.b32.xlu0 %v300, 122
        %v365 = vpop.permute.xlu0 %364
        %366 = vrot.lane.b32.xlu0 %v301, 122
        %v367 = vpop.permute.xlu0 %366
        %368 = vrot.lane.b32.xlu0 %v302, 122
        %v369 = vpop.permute.xlu0 %368
        %370 = vrot.lane.b32.xlu0 %v303, 122
        %v371 = vpop.permute.xlu0 %370
        %vm372 = vcmask 998400
        %v373 = vsel %vm372, %v359, %v361
        %v374 = vsel %vm372, %v361, %v363
        %v375 = vsel %vm372, %v363, %v365
        %v376 = vsel %vm372, %v365, %v367
        %v377 = vsel %vm372, %v367, %v369
        %v378 = vsel %vm372, %v369, %v371
        %v387 = vsel %vm372, %v371, %v359
        %v388 = vld [vmem:[#allocation5] ss:$8 sm:$0xf]
        %v389 = vld [vmem:[#allocation5] ss:$8 sm:$0xf0]
        %v390 = vor.u32 %v388, %v389
        %v392 = vlaneseq
        %v393 = vshrl.u32 %v392, 7
        %v394 = vsub.s32 0, %v393
        %v395 = vrot.slane %v390, %v394
        %v396 = vlaneseq
        %v397 = vshrl.u32 %v396, 7
        %v398 = vsub.s32 1, %v397
        %v399 = vrot.slane %v390, %v398
        %v400 = vlaneseq
        %v401 = vshrl.u32 %v400, 7
        %v402 = vsub.s32 2, %v401
        %v403 = vrot.slane %v390, %v402
        %v404 = vlaneseq
        %v405 = vshrl.u32 %v404, 7
        %v406 = vsub.s32 3, %v405
        %v407 = vrot.slane %v390, %v406
        %v408 = vlaneseq
        %v409 = vshrl.u32 %v408, 7
        %v410 = vsub.s32 4, %v409
        %v411 = vrot.slane %v390, %v410
        %v412 = vlaneseq
        %v413 = vshrl.u32 %v412, 7
        %v414 = vsub.s32 5, %v413
        %v415 = vrot.slane %v390, %v414
        %v416 = vlaneseq
        %v417 = vshrl.u32 %v416, 7
        %v418 = vsub.s32 6, %v417
        %v419 = vrot.slane %v390, %v418
        %v427 = vmul.f32 %v373, %v395
        %v428 = vmul.f32 %v374, %v399
        %v429 = vmul.f32 %v375, %v403
        %v430 = vmul.f32 %v376, %v407
        %v431 = vmul.f32 %v377, %v411
        %v432 = vmul.f32 %v378, %v415
        %v433 = vmul.f32 %v387, %v419
        %v434 = vadd.f32 %v344, %v427
        %v435 = vadd.f32 %v345, %v428
        %v436 = vadd.f32 %v346, %v429
        %v437 = vadd.f32 %v347, %v430
        %v438 = vadd.f32 %v348, %v431
        %v439 = vadd.f32 %v349, %v432
        %v440 = vadd.f32 %v350, %v433
        %441 = vrot.lane.b32.xlu0 %v297, 123
        %v442 = vpop.permute.xlu0 %441
        %443 = vrot.lane.b32.xlu0 %v298, 123
        %v444 = vpop.permute.xlu0 %443
        %445 = vrot.lane.b32.xlu0 %v299, 123
        %v446 = vpop.permute.xlu0 %445
        %447 = vrot.lane.b32.xlu0 %v300, 123
        %v448 = vpop.permute.xlu0 %447
        %449 = vrot.lane.b32.xlu0 %v301, 123
        %v450 = vpop.permute.xlu0 %449
        %451 = vrot.lane.b32.xlu0 %v302, 123
        %v452 = vpop.permute.xlu0 %451
        %453 = vrot.lane.b32.xlu0 %v303, 123
        %v454 = vpop.permute.xlu0 %453
        %vm455 = vcmask 1006592
        %v456 = vsel %vm455, %v442, %v444
        %v457 = vsel %vm455, %v444, %v446
        %v458 = vsel %vm455, %v446, %v448
        %v459 = vsel %vm455, %v448, %v450
        %v460 = vsel %vm455, %v450, %v452
        %v461 = vsel %vm455, %v452, %v454
        %v470 = vsel %vm455, %v454, %v442
        %s471 = scalar_lea.vmem [#allocation5], 1
        %v472 = vld [vmem:[%s471] ss:$8 sm:$0xf]
        %v473 = vld [vmem:[%s471] ss:$8 sm:$0xf0]
        %v474 = vor.u32 %v472, %v473
        %v476 = vlaneseq
        %v477 = vshrl.u32 %v476, 7
        %v478 = vsub.s32 0, %v477
        %v479 = vrot.slane %v474, %v478
        %v480 = vlaneseq
        %v481 = vshrl.u32 %v480, 7
        %v482 = vsub.s32 1, %v481
        %v483 = vrot.slane %v474, %v482
        %v484 = vlaneseq
        %v485 = vshrl.u32 %v484, 7
        %v486 = vsub.s32 2, %v485
        %v487 = vrot.slane %v474, %v486
        %v488 = vlaneseq
        %v489 = vshrl.u32 %v488, 7
        %v490 = vsub.s32 3, %v489
        %v491 = vrot.slane %v474, %v490
        %v492 = vlaneseq
        %v493 = vshrl.u32 %v492, 7
        %v494 = vsub.s32 4, %v493
        %v495 = vrot.slane %v474, %v494
        %v496 = vlaneseq
        %v497 = vshrl.u32 %v496, 7
        %v498 = vsub.s32 5, %v497
        %v499 = vrot.slane %v474, %v498
        %v500 = vlaneseq
        %v501 = vshrl.u32 %v500, 7
        %v502 = vsub.s32 6, %v501
        %v503 = vrot.slane %v474, %v502
        %v511 = vmul.f32 %v456, %v479
        %v512 = vmul.f32 %v457, %v483
        %v513 = vmul.f32 %v458, %v487
        %v514 = vmul.f32 %v459, %v491
        %v515 = vmul.f32 %v460, %v495
        %v516 = vmul.f32 %v461, %v499
        %v517 = vmul.f32 %v470, %v503
        %v518 = vadd.f32 %v434, %v511
        %v519 = vadd.f32 %v435, %v512
        %v520 = vadd.f32 %v436, %v513
        %v521 = vadd.f32 %v437, %v514
        %v522 = vadd.f32 %v438, %v515
        %v523 = vadd.f32 %v439, %v516
        %v524 = vadd.f32 %v440, %v517
        %525 = vrot.lane.b32.xlu0 %v297, 124
        %v526 = vpop.permute.xlu0 %525
        %527 = vrot.lane.b32.xlu0 %v298, 124
        %v528 = vpop.permute.xlu0 %527
        %529 = vrot.lane.b32.xlu0 %v299, 124
        %v530 = vpop.permute.xlu0 %529
        %531 = vrot.lane.b32.xlu0 %v300, 124
        %v532 = vpop.permute.xlu0 %531
        %533 = vrot.lane.b32.xlu0 %v301, 124
        %v534 = vpop.permute.xlu0 %533
        %535 = vrot.lane.b32.xlu0 %v302, 124
        %v536 = vpop.permute.xlu0 %535
        %537 = vrot.lane.b32.xlu0 %v303, 124
        %v538 = vpop.permute.xlu0 %537
        %vm539 = vcmask 1014784
        %v540 = vsel %vm539, %v526, %v528
        %v541 = vsel %vm539, %v528, %v530
        %v542 = vsel %vm539, %v530, %v532
        %v543 = vsel %vm539, %v532, %v534
        %v544 = vsel %vm539, %v534, %v536
        %v545 = vsel %vm539, %v536, %v538
        %v554 = vsel %vm539, %v538, %v526
        %s555 = scalar_lea.vmem [#allocation5], 2
        %v556 = vld [vmem:[%s555] ss:$8 sm:$0xf]
        %v557 = vld [vmem:[%s555] ss:$8 sm:$0xf0]
        %v558 = vor.u32 %v556, %v557
        %v560 = vlaneseq
        %v561 = vshrl.u32 %v560, 7
        %v562 = vsub.s32 0, %v561
        %v563 = vrot.slane %v558, %v562
        %v564 = vlaneseq
        %v565 = vshrl.u32 %v564, 7
        %v566 = vsub.s32 1, %v565
        %v567 = vrot.slane %v558, %v566
        %v568 = vlaneseq
        %v569 = vshrl.u32 %v568, 7
        %v570 = vsub.s32 2, %v569
        %v571 = vrot.slane %v558, %v570
        %v572 = vlaneseq
        %v573 = vshrl.u32 %v572, 7
        %v574 = vsub.s32 3, %v573
        %v575 = vrot.slane %v558, %v574
        %v576 = vlaneseq
        %v577 = vshrl.u32 %v576, 7
        %v578 = vsub.s32 4, %v577
        %v579 = vrot.slane %v558, %v578
        %v580 = vlaneseq
        %v581 = vshrl.u32 %v580, 7
        %v582 = vsub.s32 5, %v581
        %v583 = vrot.slane %v558, %v582
        %v584 = vlaneseq
        %v585 = vshrl.u32 %v584, 7
        %v586 = vsub.s32 6, %v585
        %v587 = vrot.slane %v558, %v586
        %v595 = vmul.f32 %v540, %v563
        %v596 = vmul.f32 %v541, %v567
        %v597 = vmul.f32 %v542, %v571
        %v598 = vmul.f32 %v543, %v575
        %v599 = vmul.f32 %v544, %v579
        %v600 = vmul.f32 %v545, %v583
        %v601 = vmul.f32 %v554, %v587
        %v602 = vadd.f32 %v518, %v595
        %v603 = vadd.f32 %v519, %v596
        %v604 = vadd.f32 %v520, %v597
        %v605 = vadd.f32 %v521, %v598
        %v606 = vadd.f32 %v522, %v599
        %v607 = vadd.f32 %v523, %v600
        %v608 = vadd.f32 %v524, %v601
        %609 = vrot.lane.b32.xlu0 %v297, 125
        %v610 = vpop.permute.xlu0 %609
        %611 = vrot.lane.b32.xlu0 %v298, 125
        %v612 = vpop.permute.xlu0 %611
        %613 = vrot.lane.b32.xlu0 %v299, 125
        %v614 = vpop.permute.xlu0 %613
        %615 = vrot.lane.b32.xlu0 %v300, 125
        %v616 = vpop.permute.xlu0 %615
        %617 = vrot.lane.b32.xlu0 %v301, 125
        %v618 = vpop.permute.xlu0 %617
        %619 = vrot.lane.b32.xlu0 %v302, 125
        %v620 = vpop.permute.xlu0 %619
        %621 = vrot.lane.b32.xlu0 %v303, 125
        %v622 = vpop.permute.xlu0 %621
        %vm623 = vcmask 1022976
        %v624 = vsel %vm623, %v610, %v612
        %v625 = vsel %vm623, %v612, %v614
        %v626 = vsel %vm623, %v614, %v616
        %v627 = vsel %vm623, %v616, %v618
        %v628 = vsel %vm623, %v618, %v620
        %v629 = vsel %vm623, %v620, %v622
        %v638 = vsel %vm623, %v622, %v610
        %s639 = scalar_lea.vmem [#allocation5], 3
        %v640 = vld [vmem:[%s639] ss:$8 sm:$0xf]
        %v641 = vld [vmem:[%s639] ss:$8 sm:$0xf0]
        %v642 = vor.u32 %v640, %v641
        %v644 = vlaneseq
        %v645 = vshrl.u32 %v644, 7
        %v646 = vsub.s32 0, %v645
        %v647 = vrot.slane %v642, %v646
        %v648 = vlaneseq
        %v649 = vshrl.u32 %v648, 7
        %v650 = vsub.s32 1, %v649
        %v651 = vrot.slane %v642, %v650
        %v652 = vlaneseq
        %v653 = vshrl.u32 %v652, 7
        %v654 = vsub.s32 2, %v653
        %v655 = vrot.slane %v642, %v654
        %v656 = vlaneseq
        %v657 = vshrl.u32 %v656, 7
        %v658 = vsub.s32 3, %v657
        %v659 = vrot.slane %v642, %v658
        %v660 = vlaneseq
        %v661 = vshrl.u32 %v660, 7
        %v662 = vsub.s32 4, %v661
        %v663 = vrot.slane %v642, %v662
        %v664 = vlaneseq
        %v665 = vshrl.u32 %v664, 7
        %v666 = vsub.s32 5, %v665
        %v667 = vrot.slane %v642, %v666
        %v668 = vlaneseq
        %v669 = vshrl.u32 %v668, 7
        %v670 = vsub.s32 6, %v669
        %v671 = vrot.slane %v642, %v670
        %v679 = vmul.f32 %v624, %v647
        %v680 = vmul.f32 %v625, %v651
        %v681 = vmul.f32 %v626, %v655
        %v682 = vmul.f32 %v627, %v659
        %v683 = vmul.f32 %v628, %v663
        %v684 = vmul.f32 %v629, %v667
        %v685 = vmul.f32 %v638, %v671
        %v686 = vadd.f32 %v602, %v679
        %v687 = vadd.f32 %v603, %v680
        %v688 = vadd.f32 %v604, %v681
        %v689 = vadd.f32 %v605, %v682
        %v690 = vadd.f32 %v606, %v683
        %v691 = vadd.f32 %v607, %v684
        %v692 = vadd.f32 %v608, %v685
        %693 = vrot.lane.b32.xlu0 %v297, 126
        %v694 = vpop.permute.xlu0 %693
        %695 = vrot.lane.b32.xlu0 %v298, 126
        %v696 = vpop.permute.xlu0 %695
        %697 = vrot.lane.b32.xlu0 %v299, 126
        %v698 = vpop.permute.xlu0 %697
        %699 = vrot.lane.b32.xlu0 %v300, 126
        %v700 = vpop.permute.xlu0 %699
        %701 = vrot.lane.b32.xlu0 %v301, 126
        %v702 = vpop.permute.xlu0 %701
        %703 = vrot.lane.b32.xlu0 %v302, 126
        %v704 = vpop.permute.xlu0 %703
        %705 = vrot.lane.b32.xlu0 %v303, 126
        %v706 = vpop.permute.xlu0 %705
        %vm707 = vcmask 1031168
        %v708 = vsel %vm707, %v694, %v696
        %v709 = vsel %vm707, %v696, %v698
        %v710 = vsel %vm707, %v698, %v700
        %v711 = vsel %vm707, %v700, %v702
        %v712 = vsel %vm707, %v702, %v704
        %v713 = vsel %vm707, %v704, %v706
        %v722 = vsel %vm707, %v706, %v694
        %s723 = scalar_lea.vmem [#allocation5], 4
        %v724 = vld [vmem:[%s723] ss:$8 sm:$0xf]
        %v725 = vld [vmem:[%s723] ss:$8 sm:$0xf0]
        %v726 = vor.u32 %v724, %v725
        %v728 = vlaneseq
        %v729 = vshrl.u32 %v728, 7
        %v730 = vsub.s32 0, %v729
        %v731 = vrot.slane %v726, %v730
        %v732 = vlaneseq
        %v733 = vshrl.u32 %v732, 7
        %v734 = vsub.s32 1, %v733
        %v735 = vrot.slane %v726, %v734
        %v736 = vlaneseq
        %v737 = vshrl.u32 %v736, 7
        %v738 = vsub.s32 2, %v737
        %v739 = vrot.slane %v726, %v738
        %v740 = vlaneseq
        %v741 = vshrl.u32 %v740, 7
        %v742 = vsub.s32 3, %v741
        %v743 = vrot.slane %v726, %v742
        %v744 = vlaneseq
        %v745 = vshrl.u32 %v744, 7
        %v746 = vsub.s32 4, %v745
        %v747 = vrot.slane %v726, %v746
        %v748 = vlaneseq
        %v749 = vshrl.u32 %v748, 7
        %v750 = vsub.s32 5, %v749
        %v751 = vrot.slane %v726, %v750
        %v752 = vlaneseq
        %v753 = vshrl.u32 %v752, 7
        %v754 = vsub.s32 6, %v753
        %v755 = vrot.slane %v726, %v754
        %v763 = vmul.f32 %v708, %v731
        %v764 = vmul.f32 %v709, %v735
        %v765 = vmul.f32 %v710, %v739
        %v766 = vmul.f32 %v711, %v743
        %v767 = vmul.f32 %v712, %v747
        %v768 = vmul.f32 %v713, %v751
        %v769 = vmul.f32 %v722, %v755
        %v770 = vadd.f32 %v686, %v763
        %v771 = vadd.f32 %v687, %v764
        %v772 = vadd.f32 %v688, %v765
        %v773 = vadd.f32 %v689, %v766
        %v774 = vadd.f32 %v690, %v767
        %v775 = vadd.f32 %v691, %v768
        %v776 = vadd.f32 %v692, %v769
        %777 = vrot.lane.b32.xlu0 %v297, 127
        %v778 = vpop.permute.xlu0 %777
        %779 = vrot.lane.b32.xlu0 %v298, 127
        %v780 = vpop.permute.xlu0 %779
        %781 = vrot.lane.b32.xlu0 %v299, 127
        %v782 = vpop.permute.xlu0 %781
        %783 = vrot.lane.b32.xlu0 %v300, 127
        %v784 = vpop.permute.xlu0 %783
        %785 = vrot.lane.b32.xlu0 %v301, 127
        %v786 = vpop.permute.xlu0 %785
        %787 = vrot.lane.b32.xlu0 %v302, 127
        %v788 = vpop.permute.xlu0 %787
        %789 = vrot.lane.b32.xlu0 %v303, 127
        %v790 = vpop.permute.xlu0 %789
        %vm791 = vcmask 1039360
        %v792 = vsel %vm791, %v778, %v780
        %v793 = vsel %vm791, %v780, %v782
        %v794 = vsel %vm791, %v782, %v784
        %v795 = vsel %vm791, %v784, %v786
        %v796 = vsel %vm791, %v786, %v788
        %v797 = vsel %vm791, %v788, %v790
        %v806 = vsel %vm791, %v790, %v778
        %s807 = scalar_lea.vmem [#allocation5], 5
        %v808 = vld [vmem:[%s807] ss:$8 sm:$0xf]
        %v809 = vld [vmem:[%s807] ss:$8 sm:$0xf0]
        %v810 = vor.u32 %v808, %v809
        %v812 = vlaneseq
        %v813 = vshrl.u32 %v812, 7
        %v814 = vsub.s32 0, %v813
        %v815 = vrot.slane %v810, %v814
        %v816 = vlaneseq
        %v817 = vshrl.u32 %v816, 7
        %v818 = vsub.s32 1, %v817
        %v819 = vrot.slane %v810, %v818
        %v820 = vlaneseq
        %v821 = vshrl.u32 %v820, 7
        %v822 = vsub.s32 2, %v821
        %v823 = vrot.slane %v810, %v822
        %v824 = vlaneseq
        %v825 = vshrl.u32 %v824, 7
        %v826 = vsub.s32 3, %v825
        %v827 = vrot.slane %v810, %v826
        %v828 = vlaneseq
        %v829 = vshrl.u32 %v828, 7
        %v830 = vsub.s32 4, %v829
        %v831 = vrot.slane %v810, %v830
        %v832 = vlaneseq
        %v833 = vshrl.u32 %v832, 7
        %v834 = vsub.s32 5, %v833
        %v835 = vrot.slane %v810, %v834
        %v836 = vlaneseq
        %v837 = vshrl.u32 %v836, 7
        %v838 = vsub.s32 6, %v837
        %v839 = vrot.slane %v810, %v838
        %v847 = vmul.f32 %v792, %v815
        %v848 = vmul.f32 %v793, %v819
        %v849 = vmul.f32 %v794, %v823
        %v850 = vmul.f32 %v795, %v827
        %v851 = vmul.f32 %v796, %v831
        %v852 = vmul.f32 %v797, %v835
        %v853 = vmul.f32 %v806, %v839
        %v854 = vadd.f32 %v770, %v847
        %v855 = vadd.f32 %v771, %v848
        %v856 = vadd.f32 %v772, %v849
        %v857 = vadd.f32 %v773, %v850
        %v858 = vadd.f32 %v774, %v851
        %v859 = vadd.f32 %v775, %v852
        %v860 = vadd.f32 %v776, %v853
        %861 = vrot.lane.b32.xlu0 %v303, 1
        %v862 = vpop.permute.xlu0 %861
        %864 = vrot.lane.b32.xlu0 %v297, 1
        %v865 = vpop.permute.xlu0 %864
        %866 = vrot.lane.b32.xlu0 %v298, 1
        %v867 = vpop.permute.xlu0 %866
        %868 = vrot.lane.b32.xlu0 %v299, 1
        %v869 = vpop.permute.xlu0 %868
        %870 = vrot.lane.b32.xlu0 %v300, 1
        %v871 = vpop.permute.xlu0 %870
        %872 = vrot.lane.b32.xlu0 %v301, 1
        %v873 = vpop.permute.xlu0 %872
        %874 = vrot.lane.b32.xlu0 %v302, 1
        %v875 = vpop.permute.xlu0 %874
        %vm876 = vcmask 7168
        %v877 = vsel %vm876, %v865, %v867
        %v878 = vsel %vm876, %v867, %v869
        %v879 = vsel %vm876, %v869, %v871
        %v880 = vsel %vm876, %v871, %v873
        %v881 = vsel %vm876, %v873, %v875
        %v882 = vsel %vm876, %v875, %v862
        %v890 = vsel %vm876, %v862, %v865
        %s891 = scalar_lea.vmem [#allocation5], 7
        %v892 = vld [vmem:[%s891] ss:$8 sm:$0xf]
        %v893 = vld [vmem:[%s891] ss:$8 sm:$0xf0]
        %v894 = vor.u32 %v892, %v893
        %v896 = vlaneseq
        %v897 = vshrl.u32 %v896, 7
        %v898 = vsub.s32 0, %v897
        %v899 = vrot.slane %v894, %v898
        %v900 = vlaneseq
        %v901 = vshrl.u32 %v900, 7
        %v902 = vsub.s32 1, %v901
        %v903 = vrot.slane %v894, %v902
        %v904 = vlaneseq
        %v905 = vshrl.u32 %v904, 7
        %v906 = vsub.s32 2, %v905
        %v907 = vrot.slane %v894, %v906
        %v908 = vlaneseq
        %v909 = vshrl.u32 %v908, 7
        %v910 = vsub.s32 3, %v909
        %v911 = vrot.slane %v894, %v910
        %v912 = vlaneseq
        %v913 = vshrl.u32 %v912, 7
        %v914 = vsub.s32 4, %v913
        %v915 = vrot.slane %v894, %v914
        %v916 = vlaneseq
        %v917 = vshrl.u32 %v916, 7
        %v918 = vsub.s32 5, %v917
        %v919 = vrot.slane %v894, %v918
        %v920 = vlaneseq
        %v921 = vshrl.u32 %v920, 7
        %v922 = vsub.s32 6, %v921
        %v923 = vrot.slane %v894, %v922
        %v931 = vmul.f32 %v890, %v899
        %v932 = vmul.f32 %v877, %v903
        %v933 = vmul.f32 %v878, %v907
        %v934 = vmul.f32 %v879, %v911
        %v935 = vmul.f32 %v880, %v915
        %v936 = vmul.f32 %v881, %v919
        %v937 = vmul.f32 %v882, %v923
        %v938 = vadd.f32 %v854, %v931
        %v939 = vadd.f32 %v855, %v932
        %v940 = vadd.f32 %v856, %v933
        %v941 = vadd.f32 %v857, %v934
        %v942 = vadd.f32 %v858, %v935
        %v943 = vadd.f32 %v859, %v936
        %v944 = vadd.f32 %v860, %v937
        %945 = vrot.lane.b32.xlu0 %v303, 2
        %v946 = vpop.permute.xlu0 %945
        %948 = vrot.lane.b32.xlu0 %v297, 2
        %v949 = vpop.permute.xlu0 %948
        %950 = vrot.lane.b32.xlu0 %v298, 2
        %v951 = vpop.permute.xlu0 %950
        %952 = vrot.lane.b32.xlu0 %v299, 2
        %v953 = vpop.permute.xlu0 %952
        %954 = vrot.lane.b32.xlu0 %v300, 2
        %v955 = vpop.permute.xlu0 %954
        %956 = vrot.lane.b32.xlu0 %v301, 2
        %v957 = vpop.permute.xlu0 %956
        %958 = vrot.lane.b32.xlu0 %v302, 2
        %v959 = vpop.permute.xlu0 %958
        %vm960 = vcmask 15360
        %v961 = vsel %vm960, %v949, %v951
        %v962 = vsel %vm960, %v951, %v953
        %v963 = vsel %vm960, %v953, %v955
        %v964 = vsel %vm960, %v955, %v957
        %v965 = vsel %vm960, %v957, %v959
        %v966 = vsel %vm960, %v959, %v946
        %v974 = vsel %vm960, %v946, %v949
        %s975 = scalar_lea.vmem [#allocation5], 56
        %v976 = vld [vmem:[%s975] ss:$8 sm:$0xf]
        %v977 = vld [vmem:[%s975] ss:$8 sm:$0xf0]
        %v978 = vor.u32 %v976, %v977
        %v980 = vlaneseq
        %v981 = vshrl.u32 %v980, 7
        %v982 = vsub.s32 0, %v981
        %v983 = vrot.slane %v978, %v982
        %v984 = vlaneseq
        %v985 = vshrl.u32 %v984, 7
        %v986 = vsub.s32 1, %v985
        %v987 = vrot.slane %v978, %v986
        %v988 = vlaneseq
        %v989 = vshrl.u32 %v988, 7
        %v990 = vsub.s32 2, %v989
        %v991 = vrot.slane %v978, %v990
        %v992 = vlaneseq
        %v993 = vshrl.u32 %v992, 7
        %v994 = vsub.s32 3, %v993
        %v995 = vrot.slane %v978, %v994
        %v996 = vlaneseq
        %v997 = vshrl.u32 %v996, 7
        %v998 = vsub.s32 4, %v997
        %v999 = vrot.slane %v978, %v998
        %v1000 = vlaneseq
        %v1001 = vshrl.u32 %v1000, 7
        %v1002 = vsub.s32 5, %v1001
        %v1003 = vrot.slane %v978, %v1002
        %v1004 = vlaneseq
        %v1005 = vshrl.u32 %v1004, 7
        %v1006 = vsub.s32 6, %v1005
        %v1007 = vrot.slane %v978, %v1006
        %v1015 = vmul.f32 %v974, %v983
        %v1016 = vmul.f32 %v961, %v987
        %v1017 = vmul.f32 %v962, %v991
        %v1018 = vmul.f32 %v963, %v995
        %v1019 = vmul.f32 %v964, %v999
        %v1020 = vmul.f32 %v965, %v1003
        %v1021 = vmul.f32 %v966, %v1007
        %v1022 = vadd.f32 %v938, %v1015
        %v1023 = vadd.f32 %v939, %v1016
        %v1024 = vadd.f32 %v940, %v1017
        %v1025 = vadd.f32 %v941, %v1018
        %v1026 = vadd.f32 %v942, %v1019
        %v1027 = vadd.f32 %v943, %v1020
        %v1028 = vadd.f32 %v944, %v1021
        %1029 = vrot.lane.b32.xlu0 %v303, 3
        %v1030 = vpop.permute.xlu0 %1029
        %1032 = vrot.lane.b32.xlu0 %v297, 3
        %v1033 = vpop.permute.xlu0 %1032
        %1034 = vrot.lane.b32.xlu0 %v298, 3
        %v1035 = vpop.permute.xlu0 %1034
        %1036 = vrot.lane.b32.xlu0 %v299, 3
        %v1037 = vpop.permute.xlu0 %1036
        %1038 = vrot.lane.b32.xlu0 %v300, 3
        %v1039 = vpop.permute.xlu0 %1038
        %1040 = vrot.lane.b32.xlu0 %v301, 3
        %v1041 = vpop.permute.xlu0 %1040
        %1042 = vrot.lane.b32.xlu0 %v302, 3
        %v1043 = vpop.permute.xlu0 %1042
        %vm1044 = vcmask 23552
        %v1045 = vsel %vm1044, %v1033, %v1035
        %v1046 = vsel %vm1044, %v1035, %v1037
        %v1047 = vsel %vm1044, %v1037, %v1039
        %v1048 = vsel %vm1044, %v1039, %v1041
        %v1049 = vsel %vm1044, %v1041, %v1043
        %v1050 = vsel %vm1044, %v1043, %v1030
        %v1058 = vsel %vm1044, %v1030, %v1033
        %s1059 = scalar_lea.vmem [#allocation5], 57
        %v1060 = vld [vmem:[%s1059] ss:$8 sm:$0xf]
        %v1061 = vld [vmem:[%s1059] ss:$8 sm:$0xf0]
        %v1062 = vor.u32 %v1060, %v1061
        %v1064 = vlaneseq
        %v1065 = vshrl.u32 %v1064, 7
        %v1066 = vsub.s32 0, %v1065
        %v1067 = vrot.slane %v1062, %v1066
        %v1068 = vlaneseq
        %v1069 = vshrl.u32 %v1068, 7
        %v1070 = vsub.s32 1, %v1069
        %v1071 = vrot.slane %v1062, %v1070
        %v1072 = vlaneseq
        %v1073 = vshrl.u32 %v1072, 7
        %v1074 = vsub.s32 2, %v1073
        %v1075 = vrot.slane %v1062, %v1074
        %v1076 = vlaneseq
        %v1077 = vshrl.u32 %v1076, 7
        %v1078 = vsub.s32 3, %v1077
        %v1079 = vrot.slane %v1062, %v1078
        %v1080 = vlaneseq
        %v1081 = vshrl.u32 %v1080, 7
        %v1082 = vsub.s32 4, %v1081
        %v1083 = vrot.slane %v1062, %v1082
        %v1084 = vlaneseq
        %v1085 = vshrl.u32 %v1084, 7
        %v1086 = vsub.s32 5, %v1085
        %v1087 = vrot.slane %v1062, %v1086
        %v1088 = vlaneseq
        %v1089 = vshrl.u32 %v1088, 7
        %v1090 = vsub.s32 6, %v1089
        %v1091 = vrot.slane %v1062, %v1090
        %v1099 = vmul.f32 %v1058, %v1067
        %v1100 = vmul.f32 %v1045, %v1071
        %v1101 = vmul.f32 %v1046, %v1075
        %v1102 = vmul.f32 %v1047, %v1079
        %v1103 = vmul.f32 %v1048, %v1083
        %v1104 = vmul.f32 %v1049, %v1087
        %v1105 = vmul.f32 %v1050, %v1091
        %v1106 = vadd.f32 %v1022, %v1099
        %v1107 = vadd.f32 %v1023, %v1100
        %v1108 = vadd.f32 %v1024, %v1101
        %v1109 = vadd.f32 %v1025, %v1102
        %v1110 = vadd.f32 %v1026, %v1103
        %v1111 = vadd.f32 %v1027, %v1104
        %v1112 = vadd.f32 %v1028, %v1105
        %1113 = vrot.lane.b32.xlu0 %v303, 4
        %v1114 = vpop.permute.xlu0 %1113
        %1116 = vrot.lane.b32.xlu0 %v297, 4
        %v1117 = vpop.permute.xlu0 %1116
        %1118 = vrot.lane.b32.xlu0 %v298, 4
        %v1119 = vpop.permute.xlu0 %1118
        %1120 = vrot.lane.b32.xlu0 %v299, 4
        %v1121 = vpop.permute.xlu0 %1120
        %1122 = vrot.lane.b32.xlu0 %v300, 4
        %v1123 = vpop.permute.xlu0 %1122
        %1124 = vrot.lane.b32.xlu0 %v301, 4
        %v1125 = vpop.permute.xlu0 %1124
        %1126 = vrot.lane.b32.xlu0 %v302, 4
        %v1127 = vpop.permute.xlu0 %1126
        %vm1128 = vcmask 31744
        %v1129 = vsel %vm1128, %v1117, %v1119
        %v1130 = vsel %vm1128, %v1119, %v1121
        %v1131 = vsel %vm1128, %v1121, %v1123
        %v1132 = vsel %vm1128, %v1123, %v1125
        %v1133 = vsel %vm1128, %v1125, %v1127
        %v1134 = vsel %vm1128, %v1127, %v1114
        %v1142 = vsel %vm1128, %v1114, %v1117
        %s1143 = scalar_lea.vmem [#allocation5], 58
        %v1144 = vld [vmem:[%s1143] ss:$8 sm:$0xf]
        %v1145 = vld [vmem:[%s1143] ss:$8 sm:$0xf0]
        %v1146 = vor.u32 %v1144, %v1145
        %v1148 = vlaneseq
        %v1149 = vshrl.u32 %v1148, 7
        %v1150 = vsub.s32 0, %v1149
        %v1151 = vrot.slane %v1146, %v1150
        %v1152 = vlaneseq
        %v1153 = vshrl.u32 %v1152, 7
        %v1154 = vsub.s32 1, %v1153
        %v1155 = vrot.slane %v1146, %v1154
        %v1156 = vlaneseq
        %v1157 = vshrl.u32 %v1156, 7
        %v1158 = vsub.s32 2, %v1157
        %v1159 = vrot.slane %v1146, %v1158
        %v1160 = vlaneseq
        %v1161 = vshrl.u32 %v1160, 7
        %v1162 = vsub.s32 3, %v1161
        %v1163 = vrot.slane %v1146, %v1162
        %v1164 = vlaneseq
        %v1165 = vshrl.u32 %v1164, 7
        %v1166 = vsub.s32 4, %v1165
        %v1167 = vrot.slane %v1146, %v1166
        %v1168 = vlaneseq
        %v1169 = vshrl.u32 %v1168, 7
        %v1170 = vsub.s32 5, %v1169
        %v1171 = vrot.slane %v1146, %v1170
        %v1172 = vlaneseq
        %v1173 = vshrl.u32 %v1172, 7
        %v1174 = vsub.s32 6, %v1173
        %v1175 = vrot.slane %v1146, %v1174
        %v1183 = vmul.f32 %v1142, %v1151
        %v1184 = vmul.f32 %v1129, %v1155
        %v1185 = vmul.f32 %v1130, %v1159
        %v1186 = vmul.f32 %v1131, %v1163
        %v1187 = vmul.f32 %v1132, %v1167
        %v1188 = vmul.f32 %v1133, %v1171
        %v1189 = vmul.f32 %v1134, %v1175
        %v1190 = vadd.f32 %v1106, %v1183
        %v1191 = vadd.f32 %v1107, %v1184
        %v1192 = vadd.f32 %v1108, %v1185
        %v1193 = vadd.f32 %v1109, %v1186
        %v1194 = vadd.f32 %v1110, %v1187
        %v1195 = vadd.f32 %v1111, %v1188
        %v1196 = vadd.f32 %v1112, %v1189
        %1197 = vrot.lane.b32.xlu0 %v303, 5
        %v1198 = vpop.permute.xlu0 %1197
        %1200 = vrot.lane.b32.xlu0 %v297, 5
        %v1201 = vpop.permute.xlu0 %1200
        %1202 = vrot.lane.b32.xlu0 %v298, 5
        %v1203 = vpop.permute.xlu0 %1202
        %1204 = vrot.lane.b32.xlu0 %v299, 5
        %v1205 = vpop.permute.xlu0 %1204
        %1206 = vrot.lane.b32.xlu0 %v300, 5
        %v1207 = vpop.permute.xlu0 %1206
        %1208 = vrot.lane.b32.xlu0 %v301, 5
        %v1209 = vpop.permute.xlu0 %1208
        %1210 = vrot.lane.b32.xlu0 %v302, 5
        %v1211 = vpop.permute.xlu0 %1210
        %vm1212 = vcmask 39936
        %v1213 = vsel %vm1212, %v1201, %v1203
        %v1214 = vsel %vm1212, %v1203, %v1205
        %v1215 = vsel %vm1212, %v1205, %v1207
        %v1216 = vsel %vm1212, %v1207, %v1209
        %v1217 = vsel %vm1212, %v1209, %v1211
        %v1218 = vsel %vm1212, %v1211, %v1198
        %v1226 = vsel %vm1212, %v1198, %v1201
        %s1227 = scalar_lea.vmem [#allocation5], 59
        %v1228 = vld [vmem:[%s1227] ss:$8 sm:$0xf]
        %v1229 = vld [vmem:[%s1227] ss:$8 sm:$0xf0]
        %v1230 = vor.u32 %v1228, %v1229
        %v1232 = vlaneseq
        %v1233 = vshrl.u32 %v1232, 7
        %v1234 = vsub.s32 0, %v1233
        %v1235 = vrot.slane %v1230, %v1234
        %v1236 = vlaneseq
        %v1237 = vshrl.u32 %v1236, 7
        %v1238 = vsub.s32 1, %v1237
        %v1239 = vrot.slane %v1230, %v1238
        %v1240 = vlaneseq
        %v1241 = vshrl.u32 %v1240, 7
        %v1242 = vsub.s32 2, %v1241
        %v1243 = vrot.slane %v1230, %v1242
        %v1244 = vlaneseq
        %v1245 = vshrl.u32 %v1244, 7
        %v1246 = vsub.s32 3, %v1245
        %v1247 = vrot.slane %v1230, %v1246
        %v1248 = vlaneseq
        %v1249 = vshrl.u32 %v1248, 7
        %v1250 = vsub.s32 4, %v1249
        %v1251 = vrot.slane %v1230, %v1250
        %v1252 = vlaneseq
        %v1253 = vshrl.u32 %v1252, 7
        %v1254 = vsub.s32 5, %v1253
        %v1255 = vrot.slane %v1230, %v1254
        %v1256 = vlaneseq
        %v1257 = vshrl.u32 %v1256, 7
        %v1258 = vsub.s32 6, %v1257
        %v1259 = vrot.slane %v1230, %v1258
        %v1267 = vmul.f32 %v1226, %v1235
        %v1268 = vmul.f32 %v1213, %v1239
        %v1269 = vmul.f32 %v1214, %v1243
        %v1270 = vmul.f32 %v1215, %v1247
        %v1271 = vmul.f32 %v1216, %v1251
        %v1272 = vmul.f32 %v1217, %v1255
        %v1273 = vmul.f32 %v1218, %v1259
        %v1274 = vadd.f32 %v1190, %v1267
        %v1275 = vadd.f32 %v1191, %v1268
        %v1276 = vadd.f32 %v1192, %v1269
        %v1277 = vadd.f32 %v1193, %v1270
        %v1278 = vadd.f32 %v1194, %v1271
        %v1279 = vadd.f32 %v1195, %v1272
        %v1280 = vadd.f32 %v1196, %v1273
        %1281 = vrot.lane.b32.xlu0 %v303, 6
        %v1282 = vpop.permute.xlu0 %1281
        %1284 = vrot.lane.b32.xlu0 %v297, 6
        %v1285 = vpop.permute.xlu0 %1284
        %1286 = vrot.lane.b32.xlu0 %v298, 6
        %v1287 = vpop.permute.xlu0 %1286
        %1288 = vrot.lane.b32.xlu0 %v299, 6
        %v1289 = vpop.permute.xlu0 %1288
        %1290 = vrot.lane.b32.xlu0 %v300, 6
        %v1291 = vpop.permute.xlu0 %1290
        %1292 = vrot.lane.b32.xlu0 %v301, 6
        %v1293 = vpop.permute.xlu0 %1292
        %1294 = vrot.lane.b32.xlu0 %v302, 6
        %v1295 = vpop.permute.xlu0 %1294
        %vm1296 = vcmask 48128
        %v1297 = vsel %vm1296, %v1285, %v1287
        %v1298 = vsel %vm1296, %v1287, %v1289
        %v1299 = vsel %vm1296, %v1289, %v1291
        %v1300 = vsel %vm1296, %v1291, %v1293
        %v1301 = vsel %vm1296, %v1293, %v1295
        %v1302 = vsel %vm1296, %v1295, %v1282
        %v1310 = vsel %vm1296, %v1282, %v1285
        %s1311 = scalar_lea.vmem [#allocation5], 60
        %v1312 = vld [vmem:[%s1311] ss:$8 sm:$0xf]
        %v1313 = vld [vmem:[%s1311] ss:$8 sm:$0xf0]
        %v1314 = vor.u32 %v1312, %v1313
        %v1316 = vlaneseq
        %v1317 = vshrl.u32 %v1316, 7
        %v1318 = vsub.s32 0, %v1317
        %v1319 = vrot.slane %v1314, %v1318
        %v1320 = vlaneseq
        %v1321 = vshrl.u32 %v1320, 7
        %v1322 = vsub.s32 1, %v1321
        %v1323 = vrot.slane %v1314, %v1322
        %v1324 = vlaneseq
        %v1325 = vshrl.u32 %v1324, 7
        %v1326 = vsub.s32 2, %v1325
        %v1327 = vrot.slane %v1314, %v1326
        %v1328 = vlaneseq
        %v1329 = vshrl.u32 %v1328, 7
        %v1330 = vsub.s32 3, %v1329
        %v1331 = vrot.slane %v1314, %v1330
        %v1332 = vlaneseq
        %v1333 = vshrl.u32 %v1332, 7
        %v1334 = vsub.s32 4, %v1333
        %v1335 = vrot.slane %v1314, %v1334
        %v1336 = vlaneseq
        %v1337 = vshrl.u32 %v1336, 7
        %v1338 = vsub.s32 5, %v1337
        %v1339 = vrot.slane %v1314, %v1338
        %v1340 = vlaneseq
        %v1341 = vshrl.u32 %v1340, 7
        %v1342 = vsub.s32 6, %v1341
        %v1343 = vrot.slane %v1314, %v1342
        %v1351 = vmul.f32 %v1310, %v1319
        %v1352 = vmul.f32 %v1297, %v1323
        %v1353 = vmul.f32 %v1298, %v1327
        %v1354 = vmul.f32 %v1299, %v1331
        %v1355 = vmul.f32 %v1300, %v1335
        %v1356 = vmul.f32 %v1301, %v1339
        %v1357 = vmul.f32 %v1302, %v1343
        %v1358 = vadd.f32 %v1274, %v1351
        %v1359 = vadd.f32 %v1275, %v1352
        %v1360 = vadd.f32 %v1276, %v1353
        %v1361 = vadd.f32 %v1277, %v1354
        %v1362 = vadd.f32 %v1278, %v1355
        %v1363 = vadd.f32 %v1279, %v1356
        %v1364 = vadd.f32 %v1280, %v1357
        %v1365 = vld [vmem:[#allocation7] ss:$4 sm:$0xff]
        %v1367 = vlaneseq
        %v1368 = vshrl.u32 %v1367, 7
        %v1369 = vsub.s32 0, %v1368
        %v1370 = vrot.slane %v1365, %v1369
        %v1371 = vlaneseq
        %v1372 = vshrl.u32 %v1371, 7
        %v1373 = vsub.s32 1, %v1372
        %v1374 = vrot.slane %v1365, %v1373
        %v1375 = vlaneseq
        %v1376 = vshrl.u32 %v1375, 7
        %v1377 = vsub.s32 2, %v1376
        %v1378 = vrot.slane %v1365, %v1377
        %v1379 = vlaneseq
        %v1380 = vshrl.u32 %v1379, 7
        %v1381 = vsub.s32 3, %v1380
        %v1382 = vrot.slane %v1365, %v1381
        %v1383 = vlaneseq
        %v1384 = vshrl.u32 %v1383, 7
        %v1385 = vsub.s32 4, %v1384
        %v1386 = vrot.slane %v1365, %v1385
        %v1387 = vlaneseq
        %v1388 = vshrl.u32 %v1387, 7
        %v1389 = vsub.s32 5, %v1388
        %v1390 = vrot.slane %v1365, %v1389
        %v1391 = vlaneseq
        %v1392 = vshrl.u32 %v1391, 7
        %v1393 = vsub.s32 6, %v1392
        %v1394 = vrot.slane %v1365, %v1393
        %v1402 = vadd.f32 %v1358, %v1370
        %v1403 = vadd.f32 %v1359, %v1374
        %v1404 = vadd.f32 %v1360, %v1378
        %v1405 = vadd.f32 %v1361, %v1382
        %v1406 = vadd.f32 %v1362, %v1386
        %v1407 = vadd.f32 %v1363, %v1390
        %v1408 = vadd.f32 %v1364, %v1394
        %v1409 = vmax.f32 %v1402, 0.0
        %v1410 = vmax.f32 %v1403, 0.0
        %v1411 = vmax.f32 %v1404, 0.0
        %v1412 = vmax.f32 %v1405, 0.0
        %v1413 = vmax.f32 %v1406, 0.0
        %v1414 = vmax.f32 %v1407, 0.0
        %v1415 = vmax.f32 %v1408, 0.0
        %s1416 = scalar_lea.vmem [#allocation5], 115
        %v1417 = vld [vmem:[%s1416] ss:$8 sm:$0xf]
        %v1418 = vld [vmem:[%s1416] ss:$8 sm:$0xf0]
        %v1419 = vor.u32 %v1417, %v1418
        %v1421 = vlaneseq
        %v1422 = vshrl.u32 %v1421, 7
        %v1423 = vsub.s32 0, %v1422
        %v1424 = vrot.slane %v1419, %v1423
        %v1425 = vlaneseq
        %v1426 = vshrl.u32 %v1425, 7
        %v1427 = vsub.s32 1, %v1426
        %v1428 = vrot.slane %v1419, %v1427
        %v1429 = vlaneseq
        %v1430 = vshrl.u32 %v1429, 7
        %v1431 = vsub.s32 2, %v1430
        %v1432 = vrot.slane %v1419, %v1431
        %v1433 = vlaneseq
        %v1434 = vshrl.u32 %v1433, 7
        %v1435 = vsub.s32 3, %v1434
        %v1436 = vrot.slane %v1419, %v1435
        %v1437 = vlaneseq
        %v1438 = vshrl.u32 %v1437, 7
        %v1439 = vsub.s32 4, %v1438
        %v1440 = vrot.slane %v1419, %v1439
        %v1441 = vlaneseq
        %v1442 = vshrl.u32 %v1441, 7
        %v1443 = vsub.s32 5, %v1442
        %v1444 = vrot.slane %v1419, %v1443
        %v1445 = vlaneseq
        %v1446 = vshrl.u32 %v1445, 7
        %v1447 = vsub.s32 6, %v1446
        %v1448 = vrot.slane %v1419, %v1447
        %v1456 = vmul.f32 %v1409, %v1424
        %v1457 = vmul.f32 %v1410, %v1428
        %v1458 = vmul.f32 %v1411, %v1432
        %v1459 = vmul.f32 %v1412, %v1436
        %v1460 = vmul.f32 %v1413, %v1440
        %v1461 = vmul.f32 %v1414, %v1444
        %v1462 = vmul.f32 %v1415, %v1448
        %1470 = vrot.lane.b32.xlu0 %v1409, 122
        %v1471 = vpop.permute.xlu0 %1470
        %1472 = vrot.lane.b32.xlu0 %v1410, 122
        %v1473 = vpop.permute.xlu0 %1472
        %1474 = vrot.lane.b32.xlu0 %v1411, 122
        %v1475 = vpop.permute.xlu0 %1474
        %1476 = vrot.lane.b32.xlu0 %v1412, 122
        %v1477 = vpop.permute.xlu0 %1476
        %1478 = vrot.lane.b32.xlu0 %v1413, 122
        %v1479 = vpop.permute.xlu0 %1478
        %1480 = vrot.lane.b32.xlu0 %v1414, 122
        %v1481 = vpop.permute.xlu0 %1480
        %1482 = vrot.lane.b32.xlu0 %v1415, 122
        %v1483 = vpop.permute.xlu0 %1482
        %v1484 = vsel %vm372, %v1471, %v1473
        %v1485 = vsel %vm372, %v1473, %v1475
        %v1486 = vsel %vm372, %v1475, %v1477
        %v1487 = vsel %vm372, %v1477, %v1479
        %v1488 = vsel %vm372, %v1479, %v1481
        %v1489 = vsel %vm372, %v1481, %v1483
        %v1498 = vsel %vm372, %v1483, %v1471
        %s1499 = scalar_lea.vmem [#allocation5], 61
        %v1500 = vld [vmem:[%s1499] ss:$8 sm:$0xf]
        %v1501 = vld [vmem:[%s1499] ss:$8 sm:$0xf0]
        %v1502 = vor.u32 %v1500, %v1501
        %v1504 = vlaneseq
        %v1505 = vshrl.u32 %v1504, 7
        %v1506 = vsub.s32 0, %v1505
        %v1507 = vrot.slane %v1502, %v1506
        %v1508 = vlaneseq
        %v1509 = vshrl.u32 %v1508, 7
        %v1510 = vsub.s32 1, %v1509
        %v1511 = vrot.slane %v1502, %v1510
        %v1512 = vlaneseq
        %v1513 = vshrl.u32 %v1512, 7
        %v1514 = vsub.s32 2, %v1513
        %v1515 = vrot.slane %v1502, %v1514
        %v1516 = vlaneseq
        %v1517 = vshrl.u32 %v1516, 7
        %v1518 = vsub.s32 3, %v1517
        %v1519 = vrot.slane %v1502, %v1518
        %v1520 = vlaneseq
        %v1521 = vshrl.u32 %v1520, 7
        %v1522 = vsub.s32 4, %v1521
        %v1523 = vrot.slane %v1502, %v1522
        %v1524 = vlaneseq
        %v1525 = vshrl.u32 %v1524, 7
        %v1526 = vsub.s32 5, %v1525
        %v1527 = vrot.slane %v1502, %v1526
        %v1528 = vlaneseq
        %v1529 = vshrl.u32 %v1528, 7
        %v1530 = vsub.s32 6, %v1529
        %v1531 = vrot.slane %v1502, %v1530
        %v1539 = vmul.f32 %v1484, %v1507
        %v1540 = vmul.f32 %v1485, %v1511
        %v1541 = vmul.f32 %v1486, %v1515
        %v1542 = vmul.f32 %v1487, %v1519
        %v1543 = vmul.f32 %v1488, %v1523
        %v1544 = vmul.f32 %v1489, %v1527
        %v1545 = vmul.f32 %v1498, %v1531
        %v1546 = vadd.f32 %v1456, %v1539
        %v1547 = vadd.f32 %v1457, %v1540
        %v1548 = vadd.f32 %v1458, %v1541
        %v1549 = vadd.f32 %v1459, %v1542
        %v1550 = vadd.f32 %v1460, %v1543
        %v1551 = vadd.f32 %v1461, %v1544
        %v1552 = vadd.f32 %v1462, %v1545
        %1553 = vrot.lane.b32.xlu0 %v1409, 123
        %v1554 = vpop.permute.xlu0 %1553
        %1555 = vrot.lane.b32.xlu0 %v1410, 123
        %v1556 = vpop.permute.xlu0 %1555
        %1557 = vrot.lane.b32.xlu0 %v1411, 123
        %v1558 = vpop.permute.xlu0 %1557
        %1559 = vrot.lane.b32.xlu0 %v1412, 123
        %v1560 = vpop.permute.xlu0 %1559
        %1561 = vrot.lane.b32.xlu0 %v1413, 123
        %v1562 = vpop.permute.xlu0 %1561
        %1563 = vrot.lane.b32.xlu0 %v1414, 123
        %v1564 = vpop.permute.xlu0 %1563
        %1565 = vrot.lane.b32.xlu0 %v1415, 123
        %v1566 = vpop.permute.xlu0 %1565
        %v1567 = vsel %vm455, %v1554, %v1556
        %v1568 = vsel %vm455, %v1556, %v1558
        %v1569 = vsel %vm455, %v1558, %v1560
        %v1570 = vsel %vm455, %v1560, %v1562
        %v1571 = vsel %vm455, %v1562, %v1564
        %v1572 = vsel %vm455, %v1564, %v1566
        %v1581 = vsel %vm455, %v1566, %v1554
        %s1582 = scalar_lea.vmem [#allocation5], 62
        %v1583 = vld [vmem:[%s1582] ss:$8 sm:$0xf]
        %v1584 = vld [vmem:[%s1582] ss:$8 sm:$0xf0]
        %v1585 = vor.u32 %v1583, %v1584
        %v1587 = vlaneseq
        %v1588 = vshrl.u32 %v1587, 7
        %v1589 = vsub.s32 0, %v1588
        %v1590 = vrot.slane %v1585, %v1589
        %v1591 = vlaneseq
        %v1592 = vshrl.u32 %v1591, 7
        %v1593 = vsub.s32 1, %v1592
        %v1594 = vrot.slane %v1585, %v1593
        %v1595 = vlaneseq
        %v1596 = vshrl.u32 %v1595, 7
        %v1597 = vsub.s32 2, %v1596
        %v1598 = vrot.slane %v1585, %v1597
        %v1599 = vlaneseq
        %v1600 = vshrl.u32 %v1599, 7
        %v1601 = vsub.s32 3, %v1600
        %v1602 = vrot.slane %v1585, %v1601
        %v1603 = vlaneseq
        %v1604 = vshrl.u32 %v1603, 7
        %v1605 = vsub.s32 4, %v1604
        %v1606 = vrot.slane %v1585, %v1605
        %v1607 = vlaneseq
        %v1608 = vshrl.u32 %v1607, 7
        %v1609 = vsub.s32 5, %v1608
        %v1610 = vrot.slane %v1585, %v1609
        %v1611 = vlaneseq
        %v1612 = vshrl.u32 %v1611, 7
        %v1613 = vsub.s32 6, %v1612
        %v1614 = vrot.slane %v1585, %v1613
        %v1622 = vmul.f32 %v1567, %v1590
        %v1623 = vmul.f32 %v1568, %v1594
        %v1624 = vmul.f32 %v1569, %v1598
        %v1625 = vmul.f32 %v1570, %v1602
        %v1626 = vmul.f32 %v1571, %v1606
        %v1627 = vmul.f32 %v1572, %v1610
        %v1628 = vmul.f32 %v1581, %v1614
        %v1629 = vadd.f32 %v1546, %v1622
        %v1630 = vadd.f32 %v1547, %v1623
        %v1631 = vadd.f32 %v1548, %v1624
        %v1632 = vadd.f32 %v1549, %v1625
        %v1633 = vadd.f32 %v1550, %v1626
        %v1634 = vadd.f32 %v1551, %v1627
        %v1635 = vadd.f32 %v1552, %v1628
        %1636 = vrot.lane.b32.xlu0 %v1409, 124
        %v1637 = vpop.permute.xlu0 %1636
        %1638 = vrot.lane.b32.xlu0 %v1410, 124
        %v1639 = vpop.permute.xlu0 %1638
        %1640 = vrot.lane.b32.xlu0 %v1411, 124
        %v1641 = vpop.permute.xlu0 %1640
        %1642 = vrot.lane.b32.xlu0 %v1412, 124
        %v1643 = vpop.permute.xlu0 %1642
        %1644 = vrot.lane.b32.xlu0 %v1413, 124
        %v1645 = vpop.permute.xlu0 %1644
        %1646 = vrot.lane.b32.xlu0 %v1414, 124
        %v1647 = vpop.permute.xlu0 %1646
        %1648 = vrot.lane.b32.xlu0 %v1415, 124
        %v1649 = vpop.permute.xlu0 %1648
        %v1650 = vsel %vm539, %v1637, %v1639
        %v1651 = vsel %vm539, %v1639, %v1641
        %v1652 = vsel %vm539, %v1641, %v1643
        %v1653 = vsel %vm539, %v1643, %v1645
        %v1654 = vsel %vm539, %v1645, %v1647
        %v1655 = vsel %vm539, %v1647, %v1649
        %v1664 = vsel %vm539, %v1649, %v1637
        %s1665 = scalar_lea.vmem [#allocation5], 63
        %v1666 = vld [vmem:[%s1665] ss:$8 sm:$0xf]
        %v1667 = vld [vmem:[%s1665] ss:$8 sm:$0xf0]
        %v1668 = vor.u32 %v1666, %v1667
        %v1670 = vlaneseq
        %v1671 = vshrl.u32 %v1670, 7
        %v1672 = vsub.s32 0, %v1671
        %v1673 = vrot.slane %v1668, %v1672
        %v1674 = vlaneseq
        %v1675 = vshrl.u32 %v1674, 7
        %v1676 = vsub.s32 1, %v1675
        %v1677 = vrot.slane %v1668, %v1676
        %v1678 = vlaneseq
        %v1679 = vshrl.u32 %v1678, 7
        %v1680 = vsub.s32 2, %v1679
        %v1681 = vrot.slane %v1668, %v1680
        %v1682 = vlaneseq
        %v1683 = vshrl.u32 %v1682, 7
        %v1684 = vsub.s32 3, %v1683
        %v1685 = vrot.slane %v1668, %v1684
        %v1686 = vlaneseq
        %v1687 = vshrl.u32 %v1686, 7
        %v1688 = vsub.s32 4, %v1687
        %v1689 = vrot.slane %v1668, %v1688
        %v1690 = vlaneseq
        %v1691 = vshrl.u32 %v1690, 7
        %v1692 = vsub.s32 5, %v1691
        %v1693 = vrot.slane %v1668, %v1692
        %v1694 = vlaneseq
        %v1695 = vshrl.u32 %v1694, 7
        %v1696 = vsub.s32 6, %v1695
        %v1697 = vrot.slane %v1668, %v1696
        %v1705 = vmul.f32 %v1650, %v1673
        %v1706 = vmul.f32 %v1651, %v1677
        %v1707 = vmul.f32 %v1652, %v1681
        %v1708 = vmul.f32 %v1653, %v1685
        %v1709 = vmul.f32 %v1654, %v1689
        %v1710 = vmul.f32 %v1655, %v1693
        %v1711 = vmul.f32 %v1664, %v1697
        %v1712 = vadd.f32 %v1629, %v1705
        %v1713 = vadd.f32 %v1630, %v1706
        %v1714 = vadd.f32 %v1631, %v1707
        %v1715 = vadd.f32 %v1632, %v1708
        %v1716 = vadd.f32 %v1633, %v1709
        %v1717 = vadd.f32 %v1634, %v1710
        %v1718 = vadd.f32 %v1635, %v1711
        %1719 = vrot.lane.b32.xlu0 %v1409, 125
        %v1720 = vpop.permute.xlu0 %1719
        %1721 = vrot.lane.b32.xlu0 %v1410, 125
        %v1722 = vpop.permute.xlu0 %1721
        %1723 = vrot.lane.b32.xlu0 %v1411, 125
        %v1724 = vpop.permute.xlu0 %1723
        %1725 = vrot.lane.b32.xlu0 %v1412, 125
        %v1726 = vpop.permute.xlu0 %1725
        %1727 = vrot.lane.b32.xlu0 %v1413, 125
        %v1728 = vpop.permute.xlu0 %1727
        %1729 = vrot.lane.b32.xlu0 %v1414, 125
        %v1730 = vpop.permute.xlu0 %1729
        %1731 = vrot.lane.b32.xlu0 %v1415, 125
        %v1732 = vpop.permute.xlu0 %1731
        %v1733 = vsel %vm623, %v1720, %v1722
        %v1734 = vsel %vm623, %v1722, %v1724
        %v1735 = vsel %vm623, %v1724, %v1726
        %v1736 = vsel %vm623, %v1726, %v1728
        %v1737 = vsel %vm623, %v1728, %v1730
        %v1738 = vsel %vm623, %v1730, %v1732
        %v1747 = vsel %vm623, %v1732, %v1720
        %s1748 = scalar_lea.vmem [#allocation5], 112
        %v1749 = vld [vmem:[%s1748] ss:$8 sm:$0xf]
        %v1750 = vld [vmem:[%s1748] ss:$8 sm:$0xf0]
        %v1751 = vor.u32 %v1749, %v1750
        %v1753 = vlaneseq
        %v1754 = vshrl.u32 %v1753, 7
        %v1755 = vsub.s32 0, %v1754
        %v1756 = vrot.slane %v1751, %v1755
        %v1757 = vlaneseq
        %v1758 = vshrl.u32 %v1757, 7
        %v1759 = vsub.s32 1, %v1758
        %v1760 = vrot.slane %v1751, %v1759
        %v1761 = vlaneseq
        %v1762 = vshrl.u32 %v1761, 7
        %v1763 = vsub.s32 2, %v1762
        %v1764 = vrot.slane %v1751, %v1763
        %v1765 = vlaneseq
        %v1766 = vshrl.u32 %v1765, 7
        %v1767 = vsub.s32 3, %v1766
        %v1768 = vrot.slane %v1751, %v1767
        %v1769 = vlaneseq
        %v1770 = vshrl.u32 %v1769, 7
        %v1771 = vsub.s32 4, %v1770
        %v1772 = vrot.slane %v1751, %v1771
        %v1773 = vlaneseq
        %v1774 = vshrl.u32 %v1773, 7
        %v1775 = vsub.s32 5, %v1774
        %v1776 = vrot.slane %v1751, %v1775
        %v1777 = vlaneseq
        %v1778 = vshrl.u32 %v1777, 7
        %v1779 = vsub.s32 6, %v1778
        %v1780 = vrot.slane %v1751, %v1779
        %v1788 = vmul.f32 %v1733, %v1756
        %v1789 = vmul.f32 %v1734, %v1760
        %v1790 = vmul.f32 %v1735, %v1764
        %v1791 = vmul.f32 %v1736, %v1768
        %v1792 = vmul.f32 %v1737, %v1772
        %v1793 = vmul.f32 %v1738, %v1776
        %v1794 = vmul.f32 %v1747, %v1780
        %v1795 = vadd.f32 %v1712, %v1788
        %v1796 = vadd.f32 %v1713, %v1789
        %v1797 = vadd.f32 %v1714, %v1790
        %v1798 = vadd.f32 %v1715, %v1791
        %v1799 = vadd.f32 %v1716, %v1792
        %v1800 = vadd.f32 %v1717, %v1793
        %v1801 = vadd.f32 %v1718, %v1794
        %1802 = vrot.lane.b32.xlu0 %v1409, 126
        %v1803 = vpop.permute.xlu0 %1802
        %1804 = vrot.lane.b32.xlu0 %v1410, 126
        %v1805 = vpop.permute.xlu0 %1804
        %1806 = vrot.lane.b32.xlu0 %v1411, 126
        %v1807 = vpop.permute.xlu0 %1806
        %1808 = vrot.lane.b32.xlu0 %v1412, 126
        %v1809 = vpop.permute.xlu0 %1808
        %1810 = vrot.lane.b32.xlu0 %v1413, 126
        %v1811 = vpop.permute.xlu0 %1810
        %1812 = vrot.lane.b32.xlu0 %v1414, 126
        %v1813 = vpop.permute.xlu0 %1812
        %1814 = vrot.lane.b32.xlu0 %v1415, 126
        %v1815 = vpop.permute.xlu0 %1814
        %v1816 = vsel %vm707, %v1803, %v1805
        %v1817 = vsel %vm707, %v1805, %v1807
        %v1818 = vsel %vm707, %v1807, %v1809
        %v1819 = vsel %vm707, %v1809, %v1811
        %v1820 = vsel %vm707, %v1811, %v1813
        %v1821 = vsel %vm707, %v1813, %v1815
        %v1830 = vsel %vm707, %v1815, %v1803
        %s1831 = scalar_lea.vmem [#allocation5], 113
        %v1832 = vld [vmem:[%s1831] ss:$8 sm:$0xf]
        %v1833 = vld [vmem:[%s1831] ss:$8 sm:$0xf0]
        %v1834 = vor.u32 %v1832, %v1833
        %v1836 = vlaneseq
        %v1837 = vshrl.u32 %v1836, 7
        %v1838 = vsub.s32 0, %v1837
        %v1839 = vrot.slane %v1834, %v1838
        %v1840 = vlaneseq
        %v1841 = vshrl.u32 %v1840, 7
        %v1842 = vsub.s32 1, %v1841
        %v1843 = vrot.slane %v1834, %v1842
        %v1844 = vlaneseq
        %v1845 = vshrl.u32 %v1844, 7
        %v1846 = vsub.s32 2, %v1845
        %v1847 = vrot.slane %v1834, %v1846
        %v1848 = vlaneseq
        %v1849 = vshrl.u32 %v1848, 7
        %v1850 = vsub.s32 3, %v1849
        %v1851 = vrot.slane %v1834, %v1850
        %v1852 = vlaneseq
        %v1853 = vshrl.u32 %v1852, 7
        %v1854 = vsub.s32 4, %v1853
        %v1855 = vrot.slane %v1834, %v1854
        %v1856 = vlaneseq
        %v1857 = vshrl.u32 %v1856, 7
        %v1858 = vsub.s32 5, %v1857
        %v1859 = vrot.slane %v1834, %v1858
        %v1860 = vlaneseq
        %v1861 = vshrl.u32 %v1860, 7
        %v1862 = vsub.s32 6, %v1861
        %v1863 = vrot.slane %v1834, %v1862
        %v1871 = vmul.f32 %v1816, %v1839
        %v1872 = vmul.f32 %v1817, %v1843
        %v1873 = vmul.f32 %v1818, %v1847
        %v1874 = vmul.f32 %v1819, %v1851
        %v1875 = vmul.f32 %v1820, %v1855
        %v1876 = vmul.f32 %v1821, %v1859
        %v1877 = vmul.f32 %v1830, %v1863
        %v1878 = vadd.f32 %v1795, %v1871
        %v1879 = vadd.f32 %v1796, %v1872
        %v1880 = vadd.f32 %v1797, %v1873
        %v1881 = vadd.f32 %v1798, %v1874
        %v1882 = vadd.f32 %v1799, %v1875
        %v1883 = vadd.f32 %v1800, %v1876
        %v1884 = vadd.f32 %v1801, %v1877
        %1885 = vrot.lane.b32.xlu0 %v1409, 127
        %v1886 = vpop.permute.xlu0 %1885
        %1887 = vrot.lane.b32.xlu0 %v1410, 127
        %v1888 = vpop.permute.xlu0 %1887
        %1889 = vrot.lane.b32.xlu0 %v1411, 127
        %v1890 = vpop.permute.xlu0 %1889
        %1891 = vrot.lane.b32.xlu0 %v1412, 127
        %v1892 = vpop.permute.xlu0 %1891
        %1893 = vrot.lane.b32.xlu0 %v1413, 127
        %v1894 = vpop.permute.xlu0 %1893
        %1895 = vrot.lane.b32.xlu0 %v1414, 127
        %v1896 = vpop.permute.xlu0 %1895
        %1897 = vrot.lane.b32.xlu0 %v1415, 127
        %v1898 = vpop.permute.xlu0 %1897
        %v1899 = vsel %vm791, %v1886, %v1888
        %v1900 = vsel %vm791, %v1888, %v1890
        %v1901 = vsel %vm791, %v1890, %v1892
        %v1902 = vsel %vm791, %v1892, %v1894
        %v1903 = vsel %vm791, %v1894, %v1896
        %v1904 = vsel %vm791, %v1896, %v1898
        %v1913 = vsel %vm791, %v1898, %v1886
        %s1914 = scalar_lea.vmem [#allocation5], 114
        %v1915 = vld [vmem:[%s1914] ss:$8 sm:$0xf]
        %v1916 = vld [vmem:[%s1914] ss:$8 sm:$0xf0]
        %v1917 = vor.u32 %v1915, %v1916
        %v1919 = vlaneseq
        %v1920 = vshrl.u32 %v1919, 7
        %v1921 = vsub.s32 0, %v1920
        %v1922 = vrot.slane %v1917, %v1921
        %v1923 = vlaneseq
        %v1924 = vshrl.u32 %v1923, 7
        %v1925 = vsub.s32 1, %v1924
        %v1926 = vrot.slane %v1917, %v1925
        %v1927 = vlaneseq
        %v1928 = vshrl.u32 %v1927, 7
        %v1929 = vsub.s32 2, %v1928
        %v1930 = vrot.slane %v1917, %v1929
        %v1931 = vlaneseq
        %v1932 = vshrl.u32 %v1931, 7
        %v1933 = vsub.s32 3, %v1932
        %v1934 = vrot.slane %v1917, %v1933
        %v1935 = vlaneseq
        %v1936 = vshrl.u32 %v1935, 7
        %v1937 = vsub.s32 4, %v1936
        %v1938 = vrot.slane %v1917, %v1937
        %v1939 = vlaneseq
        %v1940 = vshrl.u32 %v1939, 7
        %v1941 = vsub.s32 5, %v1940
        %v1942 = vrot.slane %v1917, %v1941
        %v1943 = vlaneseq
        %v1944 = vshrl.u32 %v1943, 7
        %v1945 = vsub.s32 6, %v1944
        %v1946 = vrot.slane %v1917, %v1945
        %v1954 = vmul.f32 %v1899, %v1922
        %v1955 = vmul.f32 %v1900, %v1926
        %v1956 = vmul.f32 %v1901, %v1930
        %v1957 = vmul.f32 %v1902, %v1934
        %v1958 = vmul.f32 %v1903, %v1938
        %v1959 = vmul.f32 %v1904, %v1942
        %v1960 = vmul.f32 %v1913, %v1946
        %v1961 = vadd.f32 %v1878, %v1954
        %v1962 = vadd.f32 %v1879, %v1955
        %v1963 = vadd.f32 %v1880, %v1956
        %v1964 = vadd.f32 %v1881, %v1957
        %v1965 = vadd.f32 %v1882, %v1958
        %v1966 = vadd.f32 %v1883, %v1959
        %v1967 = vadd.f32 %v1884, %v1960
        %1968 = vrot.lane.b32.xlu0 %v1415, 1
        %v1969 = vpop.permute.xlu0 %1968
        %1971 = vrot.lane.b32.xlu0 %v1409, 1
        %v1972 = vpop.permute.xlu0 %1971
        %1973 = vrot.lane.b32.xlu0 %v1410, 1
        %v1974 = vpop.permute.xlu0 %1973
        %1975 = vrot.lane.b32.xlu0 %v1411, 1
        %v1976 = vpop.permute.xlu0 %1975
        %1977 = vrot.lane.b32.xlu0 %v1412, 1
        %v1978 = vpop.permute.xlu0 %1977
        %1979 = vrot.lane.b32.xlu0 %v1413, 1
        %v1980 = vpop.permute.xlu0 %1979
        %1981 = vrot.lane.b32.xlu0 %v1414, 1
        %v1982 = vpop.permute.xlu0 %1981
        %v1983 = vsel %vm876, %v1972, %v1974
        %v1984 = vsel %vm876, %v1974, %v1976
        %v1985 = vsel %vm876, %v1976, %v1978
        %v1986 = vsel %vm876, %v1978, %v1980
        %v1987 = vsel %vm876, %v1980, %v1982
        %v1988 = vsel %vm876, %v1982, %v1969
        %v1996 = vsel %vm876, %v1969, %v1972
        %s1997 = scalar_lea.vmem [#allocation5], 116
        %v1998 = vld [vmem:[%s1997] ss:$8 sm:$0xf]
        %v1999 = vld [vmem:[%s1997] ss:$8 sm:$0xf0]
        %v2000 = vor.u32 %v1998, %v1999
        %v2002 = vlaneseq
        %v2003 = vshrl.u32 %v2002, 7
        %v2004 = vsub.s32 0, %v2003
        %v2005 = vrot.slane %v2000, %v2004
        %v2006 = vlaneseq
        %v2007 = vshrl.u32 %v2006, 7
        %v2008 = vsub.s32 1, %v2007
        %v2009 = vrot.slane %v2000, %v2008
        %v2010 = vlaneseq
        %v2011 = vshrl.u32 %v2010, 7
        %v2012 = vsub.s32 2, %v2011
        %v2013 = vrot.slane %v2000, %v2012
        %v2014 = vlaneseq
        %v2015 = vshrl.u32 %v2014, 7
        %v2016 = vsub.s32 3, %v2015
        %v2017 = vrot.slane %v2000, %v2016
        %v2018 = vlaneseq
        %v2019 = vshrl.u32 %v2018, 7
        %v2020 = vsub.s32 4, %v2019
        %v2021 = vrot.slane %v2000, %v2020
        %v2022 = vlaneseq
        %v2023 = vshrl.u32 %v2022, 7
        %v2024 = vsub.s32 5, %v2023
        %v2025 = vrot.slane %v2000, %v2024
        %v2026 = vlaneseq
        %v2027 = vshrl.u32 %v2026, 7
        %v2028 = vsub.s32 6, %v2027
        %v2029 = vrot.slane %v2000, %v2028
        %v2037 = vmul.f32 %v1996, %v2005
        %v2038 = vmul.f32 %v1983, %v2009
        %v2039 = vmul.f32 %v1984, %v2013
        %v2040 = vmul.f32 %v1985, %v2017
        %v2041 = vmul.f32 %v1986, %v2021
        %v2042 = vmul.f32 %v1987, %v2025
        %v2043 = vmul.f32 %v1988, %v2029
        %v2044 = vadd.f32 %v1961, %v2037
        %v2045 = vadd.f32 %v1962, %v2038
        %v2046 = vadd.f32 %v1963, %v2039
        %v2047 = vadd.f32 %v1964, %v2040
        %v2048 = vadd.f32 %v1965, %v2041
        %v2049 = vadd.f32 %v1966, %v2042
        %v2050 = vadd.f32 %v1967, %v2043
        %2051 = vrot.lane.b32.xlu0 %v1415, 2
        %v2052 = vpop.permute.xlu0 %2051
        %2054 = vrot.lane.b32.xlu0 %v1409, 2
        %v2055 = vpop.permute.xlu0 %2054
        %2056 = vrot.lane.b32.xlu0 %v1410, 2
        %v2057 = vpop.permute.xlu0 %2056
        %2058 = vrot.lane.b32.xlu0 %v1411, 2
        %v2059 = vpop.permute.xlu0 %2058
        %2060 = vrot.lane.b32.xlu0 %v1412, 2
        %v2061 = vpop.permute.xlu0 %2060
        %2062 = vrot.lane.b32.xlu0 %v1413, 2
        %v2063 = vpop.permute.xlu0 %2062
        %2064 = vrot.lane.b32.xlu0 %v1414, 2
        %v2065 = vpop.permute.xlu0 %2064
        %v2066 = vsel %vm960, %v2055, %v2057
        %v2067 = vsel %vm960, %v2057, %v2059
        %v2068 = vsel %vm960, %v2059, %v2061
        %v2069 = vsel %vm960, %v2061, %v2063
        %v2070 = vsel %vm960, %v2063, %v2065
        %v2071 = vsel %vm960, %v2065, %v2052
        %v2079 = vsel %vm960, %v2052, %v2055
        %s2080 = scalar_lea.vmem [#allocation5], 117
        %v2081 = vld [vmem:[%s2080] ss:$8 sm:$0xf]
        %v2082 = vld [vmem:[%s2080] ss:$8 sm:$0xf0]
        %v2083 = vor.u32 %v2081, %v2082
        %v2085 = vlaneseq
        %v2086 = vshrl.u32 %v2085, 7
        %v2087 = vsub.s32 0, %v2086
        %v2088 = vrot.slane %v2083, %v2087
        %v2089 = vlaneseq
        %v2090 = vshrl.u32 %v2089, 7
        %v2091 = vsub.s32 1, %v2090
        %v2092 = vrot.slane %v2083, %v2091
        %v2093 = vlaneseq
        %v2094 = vshrl.u32 %v2093, 7
        %v2095 = vsub.s32 2, %v2094
        %v2096 = vrot.slane %v2083, %v2095
        %v2097 = vlaneseq
        %v2098 = vshrl.u32 %v2097, 7
        %v2099 = vsub.s32 3, %v2098
        %v2100 = vrot.slane %v2083, %v2099
        %v2101 = vlaneseq
        %v2102 = vshrl.u32 %v2101, 7
        %v2103 = vsub.s32 4, %v2102
        %v2104 = vrot.slane %v2083, %v2103
        %v2105 = vlaneseq
        %v2106 = vshrl.u32 %v2105, 7
        %v2107 = vsub.s32 5, %v2106
        %v2108 = vrot.slane %v2083, %v2107
        %v2109 = vlaneseq
        %v2110 = vshrl.u32 %v2109, 7
        %v2111 = vsub.s32 6, %v2110
        %v2112 = vrot.slane %v2083, %v2111
        %v2120 = vmul.f32 %v2079, %v2088
        %v2121 = vmul.f32 %v2066, %v2092
        %v2122 = vmul.f32 %v2067, %v2096
        %v2123 = vmul.f32 %v2068, %v2100
        %v2124 = vmul.f32 %v2069, %v2104
        %v2125 = vmul.f32 %v2070, %v2108
        %v2126 = vmul.f32 %v2071, %v2112
        %v2127 = vadd.f32 %v2044, %v2120
        %v2128 = vadd.f32 %v2045, %v2121
        %v2129 = vadd.f32 %v2046, %v2122
        %v2130 = vadd.f32 %v2047, %v2123
        %v2131 = vadd.f32 %v2048, %v2124
        %v2132 = vadd.f32 %v2049, %v2125
        %v2133 = vadd.f32 %v2050, %v2126
        %2134 = vrot.lane.b32.xlu0 %v1415, 3
        %v2135 = vpop.permute.xlu0 %2134
        %2137 = vrot.lane.b32.xlu0 %v1409, 3
        %v2138 = vpop.permute.xlu0 %2137
        %2139 = vrot.lane.b32.xlu0 %v1410, 3
        %v2140 = vpop.permute.xlu0 %2139
        %2141 = vrot.lane.b32.xlu0 %v1411, 3
        %v2142 = vpop.permute.xlu0 %2141
        %2143 = vrot.lane.b32.xlu0 %v1412, 3
        %v2144 = vpop.permute.xlu0 %2143
        %2145 = vrot.lane.b32.xlu0 %v1413, 3
        %v2146 = vpop.permute.xlu0 %2145
        %2147 = vrot.lane.b32.xlu0 %v1414, 3
        %v2148 = vpop.permute.xlu0 %2147
        %v2149 = vsel %vm1044, %v2138, %v2140
        %v2150 = vsel %vm1044, %v2140, %v2142
        %v2151 = vsel %vm1044, %v2142, %v2144
        %v2152 = vsel %vm1044, %v2144, %v2146
        %v2153 = vsel %vm1044, %v2146, %v2148
        %v2154 = vsel %vm1044, %v2148, %v2135
        %v2162 = vsel %vm1044, %v2135, %v2138
        %s2163 = scalar_lea.vmem [#allocation5], 118
        %v2164 = vld [vmem:[%s2163] ss:$8 sm:$0xf]
        %v2165 = vld [vmem:[%s2163] ss:$8 sm:$0xf0]
        %v2166 = vor.u32 %v2164, %v2165
        %v2168 = vlaneseq
        %v2169 = vshrl.u32 %v2168, 7
        %v2170 = vsub.s32 0, %v2169
        %v2171 = vrot.slane %v2166, %v2170
        %v2172 = vlaneseq
        %v2173 = vshrl.u32 %v2172, 7
        %v2174 = vsub.s32 1, %v2173
        %v2175 = vrot.slane %v2166, %v2174
        %v2176 = vlaneseq
        %v2177 = vshrl.u32 %v2176, 7
        %v2178 = vsub.s32 2, %v2177
        %v2179 = vrot.slane %v2166, %v2178
        %v2180 = vlaneseq
        %v2181 = vshrl.u32 %v2180, 7
        %v2182 = vsub.s32 3, %v2181
        %v2183 = vrot.slane %v2166, %v2182
        %v2184 = vlaneseq
        %v2185 = vshrl.u32 %v2184, 7
        %v2186 = vsub.s32 4, %v2185
        %v2187 = vrot.slane %v2166, %v2186
        %v2188 = vlaneseq
        %v2189 = vshrl.u32 %v2188, 7
        %v2190 = vsub.s32 5, %v2189
        %v2191 = vrot.slane %v2166, %v2190
        %v2192 = vlaneseq
        %v2193 = vshrl.u32 %v2192, 7
        %v2194 = vsub.s32 6, %v2193
        %v2195 = vrot.slane %v2166, %v2194
        %v2203 = vmul.f32 %v2162, %v2171
        %v2204 = vmul.f32 %v2149, %v2175
        %v2205 = vmul.f32 %v2150, %v2179
        %v2206 = vmul.f32 %v2151, %v2183
        %v2207 = vmul.f32 %v2152, %v2187
        %v2208 = vmul.f32 %v2153, %v2191
        %v2209 = vmul.f32 %v2154, %v2195
        %v2210 = vadd.f32 %v2127, %v2203
        %v2211 = vadd.f32 %v2128, %v2204
        %v2212 = vadd.f32 %v2129, %v2205
        %v2213 = vadd.f32 %v2130, %v2206
        %v2214 = vadd.f32 %v2131, %v2207
        %v2215 = vadd.f32 %v2132, %v2208
        %v2216 = vadd.f32 %v2133, %v2209
        %2217 = vrot.lane.b32.xlu0 %v1415, 4
        %v2218 = vpop.permute.xlu0 %2217
        %2220 = vrot.lane.b32.xlu0 %v1409, 4
        %v2221 = vpop.permute.xlu0 %2220
        %2222 = vrot.lane.b32.xlu0 %v1410, 4
        %v2223 = vpop.permute.xlu0 %2222
        %2224 = vrot.lane.b32.xlu0 %v1411, 4
        %v2225 = vpop.permute.xlu0 %2224
        %2226 = vrot.lane.b32.xlu0 %v1412, 4
        %v2227 = vpop.permute.xlu0 %2226
        %2228 = vrot.lane.b32.xlu0 %v1413, 4
        %v2229 = vpop.permute.xlu0 %2228
        %2230 = vrot.lane.b32.xlu0 %v1414, 4
        %v2231 = vpop.permute.xlu0 %2230
        %v2232 = vsel %vm1128, %v2221, %v2223
        %v2233 = vsel %vm1128, %v2223, %v2225
        %v2234 = vsel %vm1128, %v2225, %v2227
        %v2235 = vsel %vm1128, %v2227, %v2229
        %v2236 = vsel %vm1128, %v2229, %v2231
        %v2237 = vsel %vm1128, %v2231, %v2218
        %v2245 = vsel %vm1128, %v2218, %v2221
        %s2246 = scalar_lea.vmem [#allocation5], 119
        %v2247 = vld [vmem:[%s2246] ss:$8 sm:$0xf]
        %v2248 = vld [vmem:[%s2246] ss:$8 sm:$0xf0]
        %v2249 = vor.u32 %v2247, %v2248
        %v2251 = vlaneseq
        %v2252 = vshrl.u32 %v2251, 7
        %v2253 = vsub.s32 0, %v2252
        %v2254 = vrot.slane %v2249, %v2253
        %v2255 = vlaneseq
        %v2256 = vshrl.u32 %v2255, 7
        %v2257 = vsub.s32 1, %v2256
        %v2258 = vrot.slane %v2249, %v2257
        %v2259 = vlaneseq
        %v2260 = vshrl.u32 %v2259, 7
        %v2261 = vsub.s32 2, %v2260
        %v2262 = vrot.slane %v2249, %v2261
        %v2263 = vlaneseq
        %v2264 = vshrl.u32 %v2263, 7
        %v2265 = vsub.s32 3, %v2264
        %v2266 = vrot.slane %v2249, %v2265
        %v2267 = vlaneseq
        %v2268 = vshrl.u32 %v2267, 7
        %v2269 = vsub.s32 4, %v2268
        %v2270 = vrot.slane %v2249, %v2269
        %v2271 = vlaneseq
        %v2272 = vshrl.u32 %v2271, 7
        %v2273 = vsub.s32 5, %v2272
        %v2274 = vrot.slane %v2249, %v2273
        %v2275 = vlaneseq
        %v2276 = vshrl.u32 %v2275, 7
        %v2277 = vsub.s32 6, %v2276
        %v2278 = vrot.slane %v2249, %v2277
        %v2286 = vmul.f32 %v2245, %v2254
        %v2287 = vmul.f32 %v2232, %v2258
        %v2288 = vmul.f32 %v2233, %v2262
        %v2289 = vmul.f32 %v2234, %v2266
        %v2290 = vmul.f32 %v2235, %v2270
        %v2291 = vmul.f32 %v2236, %v2274
        %v2292 = vmul.f32 %v2237, %v2278
        %v2293 = vadd.f32 %v2210, %v2286
        %v2294 = vadd.f32 %v2211, %v2287
        %v2295 = vadd.f32 %v2212, %v2288
        %v2296 = vadd.f32 %v2213, %v2289
        %v2297 = vadd.f32 %v2214, %v2290
        %v2298 = vadd.f32 %v2215, %v2291
        %v2299 = vadd.f32 %v2216, %v2292
        %2300 = vrot.lane.b32.xlu0 %v1415, 5
        %v2301 = vpop.permute.xlu0 %2300
        %2303 = vrot.lane.b32.xlu0 %v1409, 5
        %v2304 = vpop.permute.xlu0 %2303
        %2305 = vrot.lane.b32.xlu0 %v1410, 5
        %v2306 = vpop.permute.xlu0 %2305
        %2307 = vrot.lane.b32.xlu0 %v1411, 5
        %v2308 = vpop.permute.xlu0 %2307
        %2309 = vrot.lane.b32.xlu0 %v1412, 5
        %v2310 = vpop.permute.xlu0 %2309
        %2311 = vrot.lane.b32.xlu0 %v1413, 5
        %v2312 = vpop.permute.xlu0 %2311
        %2313 = vrot.lane.b32.xlu0 %v1414, 5
        %v2314 = vpop.permute.xlu0 %2313
        %v2315 = vsel %vm1212, %v2304, %v2306
        %v2316 = vsel %vm1212, %v2306, %v2308
        %v2317 = vsel %vm1212, %v2308, %v2310
        %v2318 = vsel %vm1212, %v2310, %v2312
        %v2319 = vsel %vm1212, %v2312, %v2314
        %v2320 = vsel %vm1212, %v2314, %v2301
        %v2328 = vsel %vm1212, %v2301, %v2304
        %s2329 = scalar_lea.vmem [#allocation5], 168
        %v2330 = vld [vmem:[%s2329] ss:$8 sm:$0xf]
        %v2331 = vld [vmem:[%s2329] ss:$8 sm:$0xf0]
        %v2332 = vor.u32 %v2330, %v2331
        %v2334 = vlaneseq
        %v2335 = vshrl.u32 %v2334, 7
        %v2336 = vsub.s32 0, %v2335
        %v2337 = vrot.slane %v2332, %v2336
        %v2338 = vlaneseq
        %v2339 = vshrl.u32 %v2338, 7
        %v2340 = vsub.s32 1, %v2339
        %v2341 = vrot.slane %v2332, %v2340
        %v2342 = vlaneseq
        %v2343 = vshrl.u32 %v2342, 7
        %v2344 = vsub.s32 2, %v2343
        %v2345 = vrot.slane %v2332, %v2344
        %v2346 = vlaneseq
        %v2347 = vshrl.u32 %v2346, 7
        %v2348 = vsub.s32 3, %v2347
        %v2349 = vrot.slane %v2332, %v2348
        %v2350 = vlaneseq
        %v2351 = vshrl.u32 %v2350, 7
        %v2352 = vsub.s32 4, %v2351
        %v2353 = vrot.slane %v2332, %v2352
        %v2354 = vlaneseq
        %v2355 = vshrl.u32 %v2354, 7
        %v2356 = vsub.s32 5, %v2355
        %v2357 = vrot.slane %v2332, %v2356
        %v2358 = vlaneseq
        %v2359 = vshrl.u32 %v2358, 7
        %v2360 = vsub.s32 6, %v2359
        %v2361 = vrot.slane %v2332, %v2360
        %v2369 = vmul.f32 %v2328, %v2337
        %v2370 = vmul.f32 %v2315, %v2341
        %v2371 = vmul.f32 %v2316, %v2345
        %v2372 = vmul.f32 %v2317, %v2349
        %v2373 = vmul.f32 %v2318, %v2353
        %v2374 = vmul.f32 %v2319, %v2357
        %v2375 = vmul.f32 %v2320, %v2361
        %v2376 = vadd.f32 %v2293, %v2369
        %v2377 = vadd.f32 %v2294, %v2370
        %v2378 = vadd.f32 %v2295, %v2371
        %v2379 = vadd.f32 %v2296, %v2372
        %v2380 = vadd.f32 %v2297, %v2373
        %v2381 = vadd.f32 %v2298, %v2374
        %v2382 = vadd.f32 %v2299, %v2375
        %2383 = vrot.lane.b32.xlu0 %v1415, 6
        %v2384 = vpop.permute.xlu0 %2383
        %2386 = vrot.lane.b32.xlu0 %v1409, 6
        %v2387 = vpop.permute.xlu0 %2386
        %2388 = vrot.lane.b32.xlu0 %v1410, 6
        %v2389 = vpop.permute.xlu0 %2388
        %2390 = vrot.lane.b32.xlu0 %v1411, 6
        %v2391 = vpop.permute.xlu0 %2390
        %2392 = vrot.lane.b32.xlu0 %v1412, 6
        %v2393 = vpop.permute.xlu0 %2392
        %2394 = vrot.lane.b32.xlu0 %v1413, 6
        %v2395 = vpop.permute.xlu0 %2394
        %2396 = vrot.lane.b32.xlu0 %v1414, 6
        %v2397 = vpop.permute.xlu0 %2396
        %v2398 = vsel %vm1296, %v2387, %v2389
        %v2399 = vsel %vm1296, %v2389, %v2391
        %v2400 = vsel %vm1296, %v2391, %v2393
        %v2401 = vsel %vm1296, %v2393, %v2395
        %v2402 = vsel %vm1296, %v2395, %v2397
        %v2403 = vsel %vm1296, %v2397, %v2384
        %v2411 = vsel %vm1296, %v2384, %v2387
        %s2412 = scalar_lea.vmem [#allocation5], 169
        %v2413 = vld [vmem:[%s2412] ss:$8 sm:$0xf]
        %v2414 = vld [vmem:[%s2412] ss:$8 sm:$0xf0]
        %v2415 = vor.u32 %v2413, %v2414
        %v2417 = vlaneseq
        %v2418 = vshrl.u32 %v2417, 7
        %v2419 = vsub.s32 0, %v2418
        %v2420 = vrot.slane %v2415, %v2419
        %v2421 = vlaneseq
        %v2422 = vshrl.u32 %v2421, 7
        %v2423 = vsub.s32 1, %v2422
        %v2424 = vrot.slane %v2415, %v2423
        %v2425 = vlaneseq
        %v2426 = vshrl.u32 %v2425, 7
        %v2427 = vsub.s32 2, %v2426
        %v2428 = vrot.slane %v2415, %v2427
        %v2429 = vlaneseq
        %v2430 = vshrl.u32 %v2429, 7
        %v2431 = vsub.s32 3, %v2430
        %v2432 = vrot.slane %v2415, %v2431
        %v2433 = vlaneseq
        %v2434 = vshrl.u32 %v2433, 7
        %v2435 = vsub.s32 4, %v2434
        %v2436 = vrot.slane %v2415, %v2435
        %v2437 = vlaneseq
        %v2438 = vshrl.u32 %v2437, 7
        %v2439 = vsub.s32 5, %v2438
        %v2440 = vrot.slane %v2415, %v2439
        %v2441 = vlaneseq
        %v2442 = vshrl.u32 %v2441, 7
        %v2443 = vsub.s32 6, %v2442
        %v2444 = vrot.slane %v2415, %v2443
        %v2452 = vmul.f32 %v2411, %v2420
        %v2453 = vmul.f32 %v2398, %v2424
        %v2454 = vmul.f32 %v2399, %v2428
        %v2455 = vmul.f32 %v2400, %v2432
        %v2456 = vmul.f32 %v2401, %v2436
        %v2457 = vmul.f32 %v2402, %v2440
        %v2458 = vmul.f32 %v2403, %v2444
        %v2459 = vadd.f32 %v2376, %v2452
        %v2460 = vadd.f32 %v2377, %v2453
        %v2461 = vadd.f32 %v2378, %v2454
        %v2462 = vadd.f32 %v2379, %v2455
        %v2463 = vadd.f32 %v2380, %v2456
        %v2464 = vadd.f32 %v2381, %v2457
        %v2465 = vadd.f32 %v2382, %v2458
        %s2466 = scalar_lea.vmem [#allocation7], 1
        %v2467 = vld [vmem:[%s2466] ss:$4 sm:$0xff]
        %v2469 = vlaneseq
        %v2470 = vshrl.u32 %v2469, 7
        %v2471 = vsub.s32 0, %v2470
        %v2472 = vrot.slane %v2467, %v2471
        %v2473 = vlaneseq
        %v2474 = vshrl.u32 %v2473, 7
        %v2475 = vsub.s32 1, %v2474
        %v2476 = vrot.slane %v2467, %v2475
        %v2477 = vlaneseq
        %v2478 = vshrl.u32 %v2477, 7
        %v2479 = vsub.s32 2, %v2478
        %v2480 = vrot.slane %v2467, %v2479
        %v2481 = vlaneseq
        %v2482 = vshrl.u32 %v2481, 7
        %v2483 = vsub.s32 3, %v2482
        %v2484 = vrot.slane %v2467, %v2483
        %v2485 = vlaneseq
        %v2486 = vshrl.u32 %v2485, 7
        %v2487 = vsub.s32 4, %v2486
        %v2488 = vrot.slane %v2467, %v2487
        %v2489 = vlaneseq
        %v2490 = vshrl.u32 %v2489, 7
        %v2491 = vsub.s32 5, %v2490
        %v2492 = vrot.slane %v2467, %v2491
        %v2493 = vlaneseq
        %v2494 = vshrl.u32 %v2493, 7
        %v2495 = vsub.s32 6, %v2494
        %v2496 = vrot.slane %v2467, %v2495
        %v2504 = vadd.f32 %v2459, %v2472
        %v2505 = vadd.f32 %v2460, %v2476
        %v2506 = vadd.f32 %v2461, %v2480
        %v2507 = vadd.f32 %v2462, %v2484
        %v2508 = vadd.f32 %v2463, %v2488
        %v2509 = vadd.f32 %v2464, %v2492
        %v2510 = vadd.f32 %v2465, %v2496
        %v2511 = vmax.f32 %v2504, 0.0
        %v2512 = vmax.f32 %v2505, 0.0
        %v2513 = vmax.f32 %v2506, 0.0
        %v2514 = vmax.f32 %v2507, 0.0
        %v2515 = vmax.f32 %v2508, 0.0
        %v2516 = vmax.f32 %v2509, 0.0
        %v2517 = vmax.f32 %v2510, 0.0
        %s2518 = scalar_lea.vmem [#allocation5], 224
        %v2519 = vld [vmem:[%s2518] ss:$8 sm:$0xf]
        %v2520 = vld [vmem:[%s2518] ss:$8 sm:$0xf0]
        %v2521 = vor.u32 %v2519, %v2520
        %v2523 = vlaneseq
        %v2524 = vshrl.u32 %v2523, 7
        %v2525 = vsub.s32 0, %v2524
        %v2526 = vrot.slane %v2521, %v2525
        %v2527 = vlaneseq
        %v2528 = vshrl.u32 %v2527, 7
        %v2529 = vsub.s32 1, %v2528
        %v2530 = vrot.slane %v2521, %v2529
        %v2531 = vlaneseq
        %v2532 = vshrl.u32 %v2531, 7
        %v2533 = vsub.s32 2, %v2532
        %v2534 = vrot.slane %v2521, %v2533
        %v2535 = vlaneseq
        %v2536 = vshrl.u32 %v2535, 7
        %v2537 = vsub.s32 3, %v2536
        %v2538 = vrot.slane %v2521, %v2537
        %v2539 = vlaneseq
        %v2540 = vshrl.u32 %v2539, 7
        %v2541 = vsub.s32 4, %v2540
        %v2542 = vrot.slane %v2521, %v2541
        %v2543 = vlaneseq
        %v2544 = vshrl.u32 %v2543, 7
        %v2545 = vsub.s32 5, %v2544
        %v2546 = vrot.slane %v2521, %v2545
        %v2547 = vlaneseq
        %v2548 = vshrl.u32 %v2547, 7
        %v2549 = vsub.s32 6, %v2548
        %v2550 = vrot.slane %v2521, %v2549
        %v2558 = vmul.f32 %v2511, %v2526
        %v2559 = vmul.f32 %v2512, %v2530
        %v2560 = vmul.f32 %v2513, %v2534
        %v2561 = vmul.f32 %v2514, %v2538
        %v2562 = vmul.f32 %v2515, %v2542
        %v2563 = vmul.f32 %v2516, %v2546
        %v2564 = vmul.f32 %v2517, %v2550
        %2572 = vrot.lane.b32.xlu0 %v2511, 122
        %v2573 = vpop.permute.xlu0 %2572
        %2574 = vrot.lane.b32.xlu0 %v2512, 122
        %v2575 = vpop.permute.xlu0 %2574
        %2576 = vrot.lane.b32.xlu0 %v2513, 122
        %v2577 = vpop.permute.xlu0 %2576
        %2578 = vrot.lane.b32.xlu0 %v2514, 122
        %v2579 = vpop.permute.xlu0 %2578
        %2580 = vrot.lane.b32.xlu0 %v2515, 122
        %v2581 = vpop.permute.xlu0 %2580
        %2582 = vrot.lane.b32.xlu0 %v2516, 122
        %v2583 = vpop.permute.xlu0 %2582
        %2584 = vrot.lane.b32.xlu0 %v2517, 122
        %v2585 = vpop.permute.xlu0 %2584
        %v2586 = vsel %vm372, %v2573, %v2575
        %v2587 = vsel %vm372, %v2575, %v2577
        %v2588 = vsel %vm372, %v2577, %v2579
        %v2589 = vsel %vm372, %v2579, %v2581
        %v2590 = vsel %vm372, %v2581, %v2583
        %v2591 = vsel %vm372, %v2583, %v2585
        %v2600 = vsel %vm372, %v2585, %v2573
        %s2601 = scalar_lea.vmem [#allocation5], 170
        %v2602 = vld [vmem:[%s2601] ss:$8 sm:$0xf]
        %v2603 = vld [vmem:[%s2601] ss:$8 sm:$0xf0]
        %v2604 = vor.u32 %v2602, %v2603
        %v2606 = vlaneseq
        %v2607 = vshrl.u32 %v2606, 7
        %v2608 = vsub.s32 0, %v2607
        %v2609 = vrot.slane %v2604, %v2608
        %v2610 = vlaneseq
        %v2611 = vshrl.u32 %v2610, 7
        %v2612 = vsub.s32 1, %v2611
        %v2613 = vrot.slane %v2604, %v2612
        %v2614 = vlaneseq
        %v2615 = vshrl.u32 %v2614, 7
        %v2616 = vsub.s32 2, %v2615
        %v2617 = vrot.slane %v2604, %v2616
        %v2618 = vlaneseq
        %v2619 = vshrl.u32 %v2618, 7
        %v2620 = vsub.s32 3, %v2619
        %v2621 = vrot.slane %v2604, %v2620
        %v2622 = vlaneseq
        %v2623 = vshrl.u32 %v2622, 7
        %v2624 = vsub.s32 4, %v2623
        %v2625 = vrot.slane %v2604, %v2624
        %v2626 = vlaneseq
        %v2627 = vshrl.u32 %v2626, 7
        %v2628 = vsub.s32 5, %v2627
        %v2629 = vrot.slane %v2604, %v2628
        %v2630 = vlaneseq
        %v2631 = vshrl.u32 %v2630, 7
        %v2632 = vsub.s32 6, %v2631
        %v2633 = vrot.slane %v2604, %v2632
        %v2641 = vmul.f32 %v2586, %v2609
        %v2642 = vmul.f32 %v2587, %v2613
        %v2643 = vmul.f32 %v2588, %v2617
        %v2644 = vmul.f32 %v2589, %v2621
        %v2645 = vmul.f32 %v2590, %v2625
        %v2646 = vmul.f32 %v2591, %v2629
        %v2647 = vmul.f32 %v2600, %v2633
        %v2648 = vadd.f32 %v2558, %v2641
        %v2649 = vadd.f32 %v2559, %v2642
        %v2650 = vadd.f32 %v2560, %v2643
        %v2651 = vadd.f32 %v2561, %v2644
        %v2652 = vadd.f32 %v2562, %v2645
        %v2653 = vadd.f32 %v2563, %v2646
        %v2654 = vadd.f32 %v2564, %v2647
        %2655 = vrot.lane.b32.xlu0 %v2511, 123
        %v2656 = vpop.permute.xlu0 %2655
        %2657 = vrot.lane.b32.xlu0 %v2512, 123
        %v2658 = vpop.permute.xlu0 %2657
        %2659 = vrot.lane.b32.xlu0 %v2513, 123
        %v2660 = vpop.permute.xlu0 %2659
        %2661 = vrot.lane.b32.xlu0 %v2514, 123
        %v2662 = vpop.permute.xlu0 %2661
        %2663 = vrot.lane.b32.xlu0 %v2515, 123
        %v2664 = vpop.permute.xlu0 %2663
        %2665 = vrot.lane.b32.xlu0 %v2516, 123
        %v2666 = vpop.permute.xlu0 %2665
        %2667 = vrot.lane.b32.xlu0 %v2517, 123
        %v2668 = vpop.permute.xlu0 %2667
        %v2669 = vsel %vm455, %v2656, %v2658
        %v2670 = vsel %vm455, %v2658, %v2660
        %v2671 = vsel %vm455, %v2660, %v2662
        %v2672 = vsel %vm455, %v2662, %v2664
        %v2673 = vsel %vm455, %v2664, %v2666
        %v2674 = vsel %vm455, %v2666, %v2668
        %v2683 = vsel %vm455, %v2668, %v2656
        %s2684 = scalar_lea.vmem [#allocation5], 171
        %v2685 = vld [vmem:[%s2684] ss:$8 sm:$0xf]
        %v2686 = vld [vmem:[%s2684] ss:$8 sm:$0xf0]
        %v2687 = vor.u32 %v2685, %v2686
        %v2689 = vlaneseq
        %v2690 = vshrl.u32 %v2689, 7
        %v2691 = vsub.s32 0, %v2690
        %v2692 = vrot.slane %v2687, %v2691
        %v2693 = vlaneseq
        %v2694 = vshrl.u32 %v2693, 7
        %v2695 = vsub.s32 1, %v2694
        %v2696 = vrot.slane %v2687, %v2695
        %v2697 = vlaneseq
        %v2698 = vshrl.u32 %v2697, 7
        %v2699 = vsub.s32 2, %v2698
        %v2700 = vrot.slane %v2687, %v2699
        %v2701 = vlaneseq
        %v2702 = vshrl.u32 %v2701, 7
        %v2703 = vsub.s32 3, %v2702
        %v2704 = vrot.slane %v2687, %v2703
        %v2705 = vlaneseq
        %v2706 = vshrl.u32 %v2705, 7
        %v2707 = vsub.s32 4, %v2706
        %v2708 = vrot.slane %v2687, %v2707
        %v2709 = vlaneseq
        %v2710 = vshrl.u32 %v2709, 7
        %v2711 = vsub.s32 5, %v2710
        %v2712 = vrot.slane %v2687, %v2711
        %v2713 = vlaneseq
        %v2714 = vshrl.u32 %v2713, 7
        %v2715 = vsub.s32 6, %v2714
        %v2716 = vrot.slane %v2687, %v2715
        %v2724 = vmul.f32 %v2669, %v2692
        %v2725 = vmul.f32 %v2670, %v2696
        %v2726 = vmul.f32 %v2671, %v2700
        %v2727 = vmul.f32 %v2672, %v2704
        %v2728 = vmul.f32 %v2673, %v2708
        %v2729 = vmul.f32 %v2674, %v2712
        %v2730 = vmul.f32 %v2683, %v2716
        %v2731 = vadd.f32 %v2648, %v2724
        %v2732 = vadd.f32 %v2649, %v2725
        %v2733 = vadd.f32 %v2650, %v2726
        %v2734 = vadd.f32 %v2651, %v2727
        %v2735 = vadd.f32 %v2652, %v2728
        %v2736 = vadd.f32 %v2653, %v2729
        %v2737 = vadd.f32 %v2654, %v2730
        %2738 = vrot.lane.b32.xlu0 %v2511, 124
        %v2739 = vpop.permute.xlu0 %2738
        %2740 = vrot.lane.b32.xlu0 %v2512, 124
        %v2741 = vpop.permute.xlu0 %2740
        %2742 = vrot.lane.b32.xlu0 %v2513, 124
        %v2743 = vpop.permute.xlu0 %2742
        %2744 = vrot.lane.b32.xlu0 %v2514, 124
        %v2745 = vpop.permute.xlu0 %2744
        %2746 = vrot.lane.b32.xlu0 %v2515, 124
        %v2747 = vpop.permute.xlu0 %2746
        %2748 = vrot.lane.b32.xlu0 %v2516, 124
        %v2749 = vpop.permute.xlu0 %2748
        %2750 = vrot.lane.b32.xlu0 %v2517, 124
        %v2751 = vpop.permute.xlu0 %2750
        %v2752 = vsel %vm539, %v2739, %v2741
        %v2753 = vsel %vm539, %v2741, %v2743
        %v2754 = vsel %vm539, %v2743, %v2745
        %v2755 = vsel %vm539, %v2745, %v2747
        %v2756 = vsel %vm539, %v2747, %v2749
        %v2757 = vsel %vm539, %v2749, %v2751
        %v2766 = vsel %vm539, %v2751, %v2739
        %s2767 = scalar_lea.vmem [#allocation5], 172
        %v2768 = vld [vmem:[%s2767] ss:$8 sm:$0xf]
        %v2769 = vld [vmem:[%s2767] ss:$8 sm:$0xf0]
        %v2770 = vor.u32 %v2768, %v2769
        %v2772 = vlaneseq
        %v2773 = vshrl.u32 %v2772, 7
        %v2774 = vsub.s32 0, %v2773
        %v2775 = vrot.slane %v2770, %v2774
        %v2776 = vlaneseq
        %v2777 = vshrl.u32 %v2776, 7
        %v2778 = vsub.s32 1, %v2777
        %v2779 = vrot.slane %v2770, %v2778
        %v2780 = vlaneseq
        %v2781 = vshrl.u32 %v2780, 7
        %v2782 = vsub.s32 2, %v2781
        %v2783 = vrot.slane %v2770, %v2782
        %v2784 = vlaneseq
        %v2785 = vshrl.u32 %v2784, 7
        %v2786 = vsub.s32 3, %v2785
        %v2787 = vrot.slane %v2770, %v2786
        %v2788 = vlaneseq
        %v2789 = vshrl.u32 %v2788, 7
        %v2790 = vsub.s32 4, %v2789
        %v2791 = vrot.slane %v2770, %v2790
        %v2792 = vlaneseq
        %v2793 = vshrl.u32 %v2792, 7
        %v2794 = vsub.s32 5, %v2793
        %v2795 = vrot.slane %v2770, %v2794
        %v2796 = vlaneseq
        %v2797 = vshrl.u32 %v2796, 7
        %v2798 = vsub.s32 6, %v2797
        %v2799 = vrot.slane %v2770, %v2798
        %v2807 = vmul.f32 %v2752, %v2775
        %v2808 = vmul.f32 %v2753, %v2779
        %v2809 = vmul.f32 %v2754, %v2783
        %v2810 = vmul.f32 %v2755, %v2787
        %v2811 = vmul.f32 %v2756, %v2791
        %v2812 = vmul.f32 %v2757, %v2795
        %v2813 = vmul.f32 %v2766, %v2799
        %v2814 = vadd.f32 %v2731, %v2807
        %v2815 = vadd.f32 %v2732, %v2808
        %v2816 = vadd.f32 %v2733, %v2809
        %v2817 = vadd.f32 %v2734, %v2810
        %v2818 = vadd.f32 %v2735, %v2811
        %v2819 = vadd.f32 %v2736, %v2812
        %v2820 = vadd.f32 %v2737, %v2813
        %2821 = vrot.lane.b32.xlu0 %v2511, 125
        %v2822 = vpop.permute.xlu0 %2821
        %2823 = vrot.lane.b32.xlu0 %v2512, 125
        %v2824 = vpop.permute.xlu0 %2823
        %2825 = vrot.lane.b32.xlu0 %v2513, 125
        %v2826 = vpop.permute.xlu0 %2825
        %2827 = vrot.lane.b32.xlu0 %v2514, 125
        %v2828 = vpop.permute.xlu0 %2827
        %2829 = vrot.lane.b32.xlu0 %v2515, 125
        %v2830 = vpop.permute.xlu0 %2829
        %2831 = vrot.lane.b32.xlu0 %v2516, 125
        %v2832 = vpop.permute.xlu0 %2831
        %2833 = vrot.lane.b32.xlu0 %v2517, 125
        %v2834 = vpop.permute.xlu0 %2833
        %v2835 = vsel %vm623, %v2822, %v2824
        %v2836 = vsel %vm623, %v2824, %v2826
        %v2837 = vsel %vm623, %v2826, %v2828
        %v2838 = vsel %vm623, %v2828, %v2830
        %v2839 = vsel %vm623, %v2830, %v2832
        %v2840 = vsel %vm623, %v2832, %v2834
        %v2849 = vsel %vm623, %v2834, %v2822
        %s2850 = scalar_lea.vmem [#allocation5], 173
        %v2851 = vld [vmem:[%s2850] ss:$8 sm:$0xf]
        %v2852 = vld [vmem:[%s2850] ss:$8 sm:$0xf0]
        %v2853 = vor.u32 %v2851, %v2852
        %v2855 = vlaneseq
        %v2856 = vshrl.u32 %v2855, 7
        %v2857 = vsub.s32 0, %v2856
        %v2858 = vrot.slane %v2853, %v2857
        %v2859 = vlaneseq
        %v2860 = vshrl.u32 %v2859, 7
        %v2861 = vsub.s32 1, %v2860
        %v2862 = vrot.slane %v2853, %v2861
        %v2863 = vlaneseq
        %v2864 = vshrl.u32 %v2863, 7
        %v2865 = vsub.s32 2, %v2864
        %v2866 = vrot.slane %v2853, %v2865
        %v2867 = vlaneseq
        %v2868 = vshrl.u32 %v2867, 7
        %v2869 = vsub.s32 3, %v2868
        %v2870 = vrot.slane %v2853, %v2869
        %v2871 = vlaneseq
        %v2872 = vshrl.u32 %v2871, 7
        %v2873 = vsub.s32 4, %v2872
        %v2874 = vrot.slane %v2853, %v2873
        %v2875 = vlaneseq
        %v2876 = vshrl.u32 %v2875, 7
        %v2877 = vsub.s32 5, %v2876
        %v2878 = vrot.slane %v2853, %v2877
        %v2879 = vlaneseq
        %v2880 = vshrl.u32 %v2879, 7
        %v2881 = vsub.s32 6, %v2880
        %v2882 = vrot.slane %v2853, %v2881
        %v2890 = vmul.f32 %v2835, %v2858
        %v2891 = vmul.f32 %v2836, %v2862
        %v2892 = vmul.f32 %v2837, %v2866
        %v2893 = vmul.f32 %v2838, %v2870
        %v2894 = vmul.f32 %v2839, %v2874
        %v2895 = vmul.f32 %v2840, %v2878
        %v2896 = vmul.f32 %v2849, %v2882
        %v2897 = vadd.f32 %v2814, %v2890
        %v2898 = vadd.f32 %v2815, %v2891
        %v2899 = vadd.f32 %v2816, %v2892
        %v2900 = vadd.f32 %v2817, %v2893
        %v2901 = vadd.f32 %v2818, %v2894
        %v2902 = vadd.f32 %v2819, %v2895
        %v2903 = vadd.f32 %v2820, %v2896
        %2904 = vrot.lane.b32.xlu0 %v2511, 126
        %v2905 = vpop.permute.xlu0 %2904
        %2906 = vrot.lane.b32.xlu0 %v2512, 126
        %v2907 = vpop.permute.xlu0 %2906
        %2908 = vrot.lane.b32.xlu0 %v2513, 126
        %v2909 = vpop.permute.xlu0 %2908
        %2910 = vrot.lane.b32.xlu0 %v2514, 126
        %v2911 = vpop.permute.xlu0 %2910
        %2912 = vrot.lane.b32.xlu0 %v2515, 126
        %v2913 = vpop.permute.xlu0 %2912
        %2914 = vrot.lane.b32.xlu0 %v2516, 126
        %v2915 = vpop.permute.xlu0 %2914
        %2916 = vrot.lane.b32.xlu0 %v2517, 126
        %v2917 = vpop.permute.xlu0 %2916
        %v2918 = vsel %vm707, %v2905, %v2907
        %v2919 = vsel %vm707, %v2907, %v2909
        %v2920 = vsel %vm707, %v2909, %v2911
        %v2921 = vsel %vm707, %v2911, %v2913
        %v2922 = vsel %vm707, %v2913, %v2915
        %v2923 = vsel %vm707, %v2915, %v2917
        %v2932 = vsel %vm707, %v2917, %v2905
        %s2933 = scalar_lea.vmem [#allocation5], 174
        %v2934 = vld [vmem:[%s2933] ss:$8 sm:$0xf]
        %v2935 = vld [vmem:[%s2933] ss:$8 sm:$0xf0]
        %v2936 = vor.u32 %v2934, %v2935
        %v2938 = vlaneseq
        %v2939 = vshrl.u32 %v2938, 7
        %v2940 = vsub.s32 0, %v2939
        %v2941 = vrot.slane %v2936, %v2940
        %v2942 = vlaneseq
        %v2943 = vshrl.u32 %v2942, 7
        %v2944 = vsub.s32 1, %v2943
        %v2945 = vrot.slane %v2936, %v2944
        %v2946 = vlaneseq
        %v2947 = vshrl.u32 %v2946, 7
        %v2948 = vsub.s32 2, %v2947
        %v2949 = vrot.slane %v2936, %v2948
        %v2950 = vlaneseq
        %v2951 = vshrl.u32 %v2950, 7
        %v2952 = vsub.s32 3, %v2951
        %v2953 = vrot.slane %v2936, %v2952
        %v2954 = vlaneseq
        %v2955 = vshrl.u32 %v2954, 7
        %v2956 = vsub.s32 4, %v2955
        %v2957 = vrot.slane %v2936, %v2956
        %v2958 = vlaneseq
        %v2959 = vshrl.u32 %v2958, 7
        %v2960 = vsub.s32 5, %v2959
        %v2961 = vrot.slane %v2936, %v2960
        %v2962 = vlaneseq
        %v2963 = vshrl.u32 %v2962, 7
        %v2964 = vsub.s32 6, %v2963
        %v2965 = vrot.slane %v2936, %v2964
        %v2973 = vmul.f32 %v2918, %v2941
        %v2974 = vmul.f32 %v2919, %v2945
        %v2975 = vmul.f32 %v2920, %v2949
        %v2976 = vmul.f32 %v2921, %v2953
        %v2977 = vmul.f32 %v2922, %v2957
        %v2978 = vmul.f32 %v2923, %v2961
        %v2979 = vmul.f32 %v2932, %v2965
        %v2980 = vadd.f32 %v2897, %v2973
        %v2981 = vadd.f32 %v2898, %v2974
        %v2982 = vadd.f32 %v2899, %v2975
        %v2983 = vadd.f32 %v2900, %v2976
        %v2984 = vadd.f32 %v2901, %v2977
        %v2985 = vadd.f32 %v2902, %v2978
        %v2986 = vadd.f32 %v2903, %v2979
        %2987 = vrot.lane.b32.xlu0 %v2511, 127
        %v2988 = vpop.permute.xlu0 %2987
        %2989 = vrot.lane.b32.xlu0 %v2512, 127
        %v2990 = vpop.permute.xlu0 %2989
        %2991 = vrot.lane.b32.xlu0 %v2513, 127
        %v2992 = vpop.permute.xlu0 %2991
        %2993 = vrot.lane.b32.xlu0 %v2514, 127
        %v2994 = vpop.permute.xlu0 %2993
        %2995 = vrot.lane.b32.xlu0 %v2515, 127
        %v2996 = vpop.permute.xlu0 %2995
        %2997 = vrot.lane.b32.xlu0 %v2516, 127
        %v2998 = vpop.permute.xlu0 %2997
        %2999 = vrot.lane.b32.xlu0 %v2517, 127
        %v3000 = vpop.permute.xlu0 %2999
        %v3001 = vsel %vm791, %v2988, %v2990
        %v3002 = vsel %vm791, %v2990, %v2992
        %v3003 = vsel %vm791, %v2992, %v2994
        %v3004 = vsel %vm791, %v2994, %v2996
        %v3005 = vsel %vm791, %v2996, %v2998
        %v3006 = vsel %vm791, %v2998, %v3000
        %v3015 = vsel %vm791, %v3000, %v2988
        %s3016 = scalar_lea.vmem [#allocation5], 175
        %v3017 = vld [vmem:[%s3016] ss:$8 sm:$0xf]
        %v3018 = vld [vmem:[%s3016] ss:$8 sm:$0xf0]
        %v3019 = vor.u32 %v3017, %v3018
        %v3021 = vlaneseq
        %v3022 = vshrl.u32 %v3021, 7
        %v3023 = vsub.s32 0, %v3022
        %v3024 = vrot.slane %v3019, %v3023
        %v3025 = vlaneseq
        %v3026 = vshrl.u32 %v3025, 7
        %v3027 = vsub.s32 1, %v3026
        %v3028 = vrot.slane %v3019, %v3027
        %v3029 = vlaneseq
        %v3030 = vshrl.u32 %v3029, 7
        %v3031 = vsub.s32 2, %v3030
        %v3032 = vrot.slane %v3019, %v3031
        %v3033 = vlaneseq
        %v3034 = vshrl.u32 %v3033, 7
        %v3035 = vsub.s32 3, %v3034
        %v3036 = vrot.slane %v3019, %v3035
        %v3037 = vlaneseq
        %v3038 = vshrl.u32 %v3037, 7
        %v3039 = vsub.s32 4, %v3038
        %v3040 = vrot.slane %v3019, %v3039
        %v3041 = vlaneseq
        %v3042 = vshrl.u32 %v3041, 7
        %v3043 = vsub.s32 5, %v3042
        %v3044 = vrot.slane %v3019, %v3043
        %v3045 = vlaneseq
        %v3046 = vshrl.u32 %v3045, 7
        %v3047 = vsub.s32 6, %v3046
        %v3048 = vrot.slane %v3019, %v3047
        %v3056 = vmul.f32 %v3001, %v3024
        %v3057 = vmul.f32 %v3002, %v3028
        %v3058 = vmul.f32 %v3003, %v3032
        %v3059 = vmul.f32 %v3004, %v3036
        %v3060 = vmul.f32 %v3005, %v3040
        %v3061 = vmul.f32 %v3006, %v3044
        %v3062 = vmul.f32 %v3015, %v3048
        %v3063 = vadd.f32 %v2980, %v3056
        %v3064 = vadd.f32 %v2981, %v3057
        %v3065 = vadd.f32 %v2982, %v3058
        %v3066 = vadd.f32 %v2983, %v3059
        %v3067 = vadd.f32 %v2984, %v3060
        %v3068 = vadd.f32 %v2985, %v3061
        %v3069 = vadd.f32 %v2986, %v3062
        %3070 = vrot.lane.b32.xlu0 %v2517, 1
        %v3071 = vpop.permute.xlu0 %3070
        %3073 = vrot.lane.b32.xlu0 %v2511, 1
        %v3074 = vpop.permute.xlu0 %3073
        %3075 = vrot.lane.b32.xlu0 %v2512, 1
        %v3076 = vpop.permute.xlu0 %3075
        %3077 = vrot.lane.b32.xlu0 %v2513, 1
        %v3078 = vpop.permute.xlu0 %3077
        %3079 = vrot.lane.b32.xlu0 %v2514, 1
        %v3080 = vpop.permute.xlu0 %3079
        %3081 = vrot.lane.b32.xlu0 %v2515, 1
        %v3082 = vpop.permute.xlu0 %3081
        %3083 = vrot.lane.b32.xlu0 %v2516, 1
        %v3084 = vpop.permute.xlu0 %3083
        %v3085 = vsel %vm876, %v3074, %v3076
        %v3086 = vsel %vm876, %v3076, %v3078
        %v3087 = vsel %vm876, %v3078, %v3080
        %v3088 = vsel %vm876, %v3080, %v3082
        %v3089 = vsel %vm876, %v3082, %v3084
        %v3090 = vsel %vm876, %v3084, %v3071
        %v3098 = vsel %vm876, %v3071, %v3074
        %s3099 = scalar_lea.vmem [#allocation5], 225
        %v3100 = vld [vmem:[%s3099] ss:$8 sm:$0xf]
        %v3101 = vld [vmem:[%s3099] ss:$8 sm:$0xf0]
        %v3102 = vor.u32 %v3100, %v3101
        %v3104 = vlaneseq
        %v3105 = vshrl.u32 %v3104, 7
        %v3106 = vsub.s32 0, %v3105
        %v3107 = vrot.slane %v3102, %v3106
        %v3108 = vlaneseq
        %v3109 = vshrl.u32 %v3108, 7
        %v3110 = vsub.s32 1, %v3109
        %v3111 = vrot.slane %v3102, %v3110
        %v3112 = vlaneseq
        %v3113 = vshrl.u32 %v3112, 7
        %v3114 = vsub.s32 2, %v3113
        %v3115 = vrot.slane %v3102, %v3114
        %v3116 = vlaneseq
        %v3117 = vshrl.u32 %v3116, 7
        %v3118 = vsub.s32 3, %v3117
        %v3119 = vrot.slane %v3102, %v3118
        %v3120 = vlaneseq
        %v3121 = vshrl.u32 %v3120, 7
        %v3122 = vsub.s32 4, %v3121
        %v3123 = vrot.slane %v3102, %v3122
        %v3124 = vlaneseq
        %v3125 = vshrl.u32 %v3124, 7
        %v3126 = vsub.s32 5, %v3125
        %v3127 = vrot.slane %v3102, %v3126
        %v3128 = vlaneseq
        %v3129 = vshrl.u32 %v3128, 7
        %v3130 = vsub.s32 6, %v3129
        %v3131 = vrot.slane %v3102, %v3130
        %v3139 = vmul.f32 %v3098, %v3107
        %v3140 = vmul.f32 %v3085, %v3111
        %v3141 = vmul.f32 %v3086, %v3115
        %v3142 = vmul.f32 %v3087, %v3119
        %v3143 = vmul.f32 %v3088, %v3123
        %v3144 = vmul.f32 %v3089, %v3127
        %v3145 = vmul.f32 %v3090, %v3131
        %v3146 = vadd.f32 %v3063, %v3139
        %v3147 = vadd.f32 %v3064, %v3140
        %v3148 = vadd.f32 %v3065, %v3141
        %v3149 = vadd.f32 %v3066, %v3142
        %v3150 = vadd.f32 %v3067, %v3143
        %v3151 = vadd.f32 %v3068, %v3144
        %v3152 = vadd.f32 %v3069, %v3145
        %3153 = vrot.lane.b32.xlu0 %v2517, 2
        %v3154 = vpop.permute.xlu0 %3153
        %3156 = vrot.lane.b32.xlu0 %v2511, 2
        %v3157 = vpop.permute.xlu0 %3156
        %3158 = vrot.lane.b32.xlu0 %v2512, 2
        %v3159 = vpop.permute.xlu0 %3158
        %3160 = vrot.lane.b32.xlu0 %v2513, 2
        %v3161 = vpop.permute.xlu0 %3160
        %3162 = vrot.lane.b32.xlu0 %v2514, 2
        %v3163 = vpop.permute.xlu0 %3162
        %3164 = vrot.lane.b32.xlu0 %v2515, 2
        %v3165 = vpop.permute.xlu0 %3164
        %3166 = vrot.lane.b32.xlu0 %v2516, 2
        %v3167 = vpop.permute.xlu0 %3166
        %v3168 = vsel %vm960, %v3157, %v3159
        %v3169 = vsel %vm960, %v3159, %v3161
        %v3170 = vsel %vm960, %v3161, %v3163
        %v3171 = vsel %vm960, %v3163, %v3165
        %v3172 = vsel %vm960, %v3165, %v3167
        %v3173 = vsel %vm960, %v3167, %v3154
        %v3181 = vsel %vm960, %v3154, %v3157
        %s3182 = scalar_lea.vmem [#allocation5], 226
        %v3183 = vld [vmem:[%s3182] ss:$8 sm:$0xf]
        %v3184 = vld [vmem:[%s3182] ss:$8 sm:$0xf0]
        %v3185 = vor.u32 %v3183, %v3184
        %v3187 = vlaneseq
        %v3188 = vshrl.u32 %v3187, 7
        %v3189 = vsub.s32 0, %v3188
        %v3190 = vrot.slane %v3185, %v3189
        %v3191 = vlaneseq
        %v3192 = vshrl.u32 %v3191, 7
        %v3193 = vsub.s32 1, %v3192
        %v3194 = vrot.slane %v3185, %v3193
        %v3195 = vlaneseq
        %v3196 = vshrl.u32 %v3195, 7
        %v3197 = vsub.s32 2, %v3196
        %v3198 = vrot.slane %v3185, %v3197
        %v3199 = vlaneseq
        %v3200 = vshrl.u32 %v3199, 7
        %v3201 = vsub.s32 3, %v3200
        %v3202 = vrot.slane %v3185, %v3201
        %v3203 = vlaneseq
        %v3204 = vshrl.u32 %v3203, 7
        %v3205 = vsub.s32 4, %v3204
        %v3206 = vrot.slane %v3185, %v3205
        %v3207 = vlaneseq
        %v3208 = vshrl.u32 %v3207, 7
        %v3209 = vsub.s32 5, %v3208
        %v3210 = vrot.slane %v3185, %v3209
        %v3211 = vlaneseq
        %v3212 = vshrl.u32 %v3211, 7
        %v3213 = vsub.s32 6, %v3212
        %v3214 = vrot.slane %v3185, %v3213
        %v3222 = vmul.f32 %v3181, %v3190
        %v3223 = vmul.f32 %v3168, %v3194
        %v3224 = vmul.f32 %v3169, %v3198
        %v3225 = vmul.f32 %v3170, %v3202
        %v3226 = vmul.f32 %v3171, %v3206
        %v3227 = vmul.f32 %v3172, %v3210
        %v3228 = vmul.f32 %v3173, %v3214
        %v3229 = vadd.f32 %v3146, %v3222
        %v3230 = vadd.f32 %v3147, %v3223
        %v3231 = vadd.f32 %v3148, %v3224
        %v3232 = vadd.f32 %v3149, %v3225
        %v3233 = vadd.f32 %v3150, %v3226
        %v3234 = vadd.f32 %v3151, %v3227
        %v3235 = vadd.f32 %v3152, %v3228
        %3236 = vrot.lane.b32.xlu0 %v2517, 3
        %v3237 = vpop.permute.xlu0 %3236
        %3239 = vrot.lane.b32.xlu0 %v2511, 3
        %v3240 = vpop.permute.xlu0 %3239
        %3241 = vrot.lane.b32.xlu0 %v2512, 3
        %v3242 = vpop.permute.xlu0 %3241
        %3243 = vrot.lane.b32.xlu0 %v2513, 3
        %v3244 = vpop.permute.xlu0 %3243
        %3245 = vrot.lane.b32.xlu0 %v2514, 3
        %v3246 = vpop.permute.xlu0 %3245
        %3247 = vrot.lane.b32.xlu0 %v2515, 3
        %v3248 = vpop.permute.xlu0 %3247
        %3249 = vrot.lane.b32.xlu0 %v2516, 3
        %v3250 = vpop.permute.xlu0 %3249
        %v3251 = vsel %vm1044, %v3240, %v3242
        %v3252 = vsel %vm1044, %v3242, %v3244
        %v3253 = vsel %vm1044, %v3244, %v3246
        %v3254 = vsel %vm1044, %v3246, %v3248
        %v3255 = vsel %vm1044, %v3248, %v3250
        %v3256 = vsel %vm1044, %v3250, %v3237
        %v3264 = vsel %vm1044, %v3237, %v3240
        %s3265 = scalar_lea.vmem [#allocation5], 227
        %v3266 = vld [vmem:[%s3265] ss:$8 sm:$0xf]
        %v3267 = vld [vmem:[%s3265] ss:$8 sm:$0xf0]
        %v3268 = vor.u32 %v3266, %v3267
        %v3270 = vlaneseq
        %v3271 = vshrl.u32 %v3270, 7
        %v3272 = vsub.s32 0, %v3271
        %v3273 = vrot.slane %v3268, %v3272
        %v3274 = vlaneseq
        %v3275 = vshrl.u32 %v3274, 7
        %v3276 = vsub.s32 1, %v3275
        %v3277 = vrot.slane %v3268, %v3276
        %v3278 = vlaneseq
        %v3279 = vshrl.u32 %v3278, 7
        %v3280 = vsub.s32 2, %v3279
        %v3281 = vrot.slane %v3268, %v3280
        %v3282 = vlaneseq
        %v3283 = vshrl.u32 %v3282, 7
        %v3284 = vsub.s32 3, %v3283
        %v3285 = vrot.slane %v3268, %v3284
        %v3286 = vlaneseq
        %v3287 = vshrl.u32 %v3286, 7
        %v3288 = vsub.s32 4, %v3287
        %v3289 = vrot.slane %v3268, %v3288
        %v3290 = vlaneseq
        %v3291 = vshrl.u32 %v3290, 7
        %v3292 = vsub.s32 5, %v3291
        %v3293 = vrot.slane %v3268, %v3292
        %v3294 = vlaneseq
        %v3295 = vshrl.u32 %v3294, 7
        %v3296 = vsub.s32 6, %v3295
        %v3297 = vrot.slane %v3268, %v3296
        %v3305 = vmul.f32 %v3264, %v3273
        %v3306 = vmul.f32 %v3251, %v3277
        %v3307 = vmul.f32 %v3252, %v3281
        %v3308 = vmul.f32 %v3253, %v3285
        %v3309 = vmul.f32 %v3254, %v3289
        %v3310 = vmul.f32 %v3255, %v3293
        %v3311 = vmul.f32 %v3256, %v3297
        %v3312 = vadd.f32 %v3229, %v3305
        %v3313 = vadd.f32 %v3230, %v3306
        %v3314 = vadd.f32 %v3231, %v3307
        %v3315 = vadd.f32 %v3232, %v3308
        %v3316 = vadd.f32 %v3233, %v3309
        %v3317 = vadd.f32 %v3234, %v3310
        %v3318 = vadd.f32 %v3235, %v3311
        %3319 = vrot.lane.b32.xlu0 %v2517, 4
        %v3320 = vpop.permute.xlu0 %3319
        %3322 = vrot.lane.b32.xlu0 %v2511, 4
        %v3323 = vpop.permute.xlu0 %3322
        %3324 = vrot.lane.b32.xlu0 %v2512, 4
        %v3325 = vpop.permute.xlu0 %3324
        %3326 = vrot.lane.b32.xlu0 %v2513, 4
        %v3327 = vpop.permute.xlu0 %3326
        %3328 = vrot.lane.b32.xlu0 %v2514, 4
        %v3329 = vpop.permute.xlu0 %3328
        %3330 = vrot.lane.b32.xlu0 %v2515, 4
        %v3331 = vpop.permute.xlu0 %3330
        %3332 = vrot.lane.b32.xlu0 %v2516, 4
        %v3333 = vpop.permute.xlu0 %3332
        %v3334 = vsel %vm1128, %v3323, %v3325
        %v3335 = vsel %vm1128, %v3325, %v3327
        %v3336 = vsel %vm1128, %v3327, %v3329
        %v3337 = vsel %vm1128, %v3329, %v3331
        %v3338 = vsel %vm1128, %v3331, %v3333
        %v3339 = vsel %vm1128, %v3333, %v3320
        %v3347 = vsel %vm1128, %v3320, %v3323
        %s3348 = scalar_lea.vmem [#allocation5], 228
        %v3349 = vld [vmem:[%s3348] ss:$8 sm:$0xf]
        %v3350 = vld [vmem:[%s3348] ss:$8 sm:$0xf0]
        %v3351 = vor.u32 %v3349, %v3350
        %v3353 = vlaneseq
        %v3354 = vshrl.u32 %v3353, 7
        %v3355 = vsub.s32 0, %v3354
        %v3356 = vrot.slane %v3351, %v3355
        %v3357 = vlaneseq
        %v3358 = vshrl.u32 %v3357, 7
        %v3359 = vsub.s32 1, %v3358
        %v3360 = vrot.slane %v3351, %v3359
        %v3361 = vlaneseq
        %v3362 = vshrl.u32 %v3361, 7
        %v3363 = vsub.s32 2, %v3362
        %v3364 = vrot.slane %v3351, %v3363
        %v3365 = vlaneseq
        %v3366 = vshrl.u32 %v3365, 7
        %v3367 = vsub.s32 3, %v3366
        %v3368 = vrot.slane %v3351, %v3367
        %v3369 = vlaneseq
        %v3370 = vshrl.u32 %v3369, 7
        %v3371 = vsub.s32 4, %v3370
        %v3372 = vrot.slane %v3351, %v3371
        %v3373 = vlaneseq
        %v3374 = vshrl.u32 %v3373, 7
        %v3375 = vsub.s32 5, %v3374
        %v3376 = vrot.slane %v3351, %v3375
        %v3377 = vlaneseq
        %v3378 = vshrl.u32 %v3377, 7
        %v3379 = vsub.s32 6, %v3378
        %v3380 = vrot.slane %v3351, %v3379
        %v3388 = vmul.f32 %v3347, %v3356
        %v3389 = vmul.f32 %v3334, %v3360
        %v3390 = vmul.f32 %v3335, %v3364
        %v3391 = vmul.f32 %v3336, %v3368
        %v3392 = vmul.f32 %v3337, %v3372
        %v3393 = vmul.f32 %v3338, %v3376
        %v3394 = vmul.f32 %v3339, %v3380
        %v3395 = vadd.f32 %v3312, %v3388
        %v3396 = vadd.f32 %v3313, %v3389
        %v3397 = vadd.f32 %v3314, %v3390
        %v3398 = vadd.f32 %v3315, %v3391
        %v3399 = vadd.f32 %v3316, %v3392
        %v3400 = vadd.f32 %v3317, %v3393
        %v3401 = vadd.f32 %v3318, %v3394
        %3402 = vrot.lane.b32.xlu0 %v2517, 5
        %v3403 = vpop.permute.xlu0 %3402
        %3405 = vrot.lane.b32.xlu0 %v2511, 5
        %v3406 = vpop.permute.xlu0 %3405
        %3407 = vrot.lane.b32.xlu0 %v2512, 5
        %v3408 = vpop.permute.xlu0 %3407
        %3409 = vrot.lane.b32.xlu0 %v2513, 5
        %v3410 = vpop.permute.xlu0 %3409
        %3411 = vrot.lane.b32.xlu0 %v2514, 5
        %v3412 = vpop.permute.xlu0 %3411
        %3413 = vrot.lane.b32.xlu0 %v2515, 5
        %v3414 = vpop.permute.xlu0 %3413
        %3415 = vrot.lane.b32.xlu0 %v2516, 5
        %v3416 = vpop.permute.xlu0 %3415
        %v3417 = vsel %vm1212, %v3406, %v3408
        %v3418 = vsel %vm1212, %v3408, %v3410
        %v3419 = vsel %vm1212, %v3410, %v3412
        %v3420 = vsel %vm1212, %v3412, %v3414
        %v3421 = vsel %vm1212, %v3414, %v3416
        %v3422 = vsel %vm1212, %v3416, %v3403
        %v3430 = vsel %vm1212, %v3403, %v3406
        %s3431 = scalar_lea.vmem [#allocation5], 229
        %v3432 = vld [vmem:[%s3431] ss:$8 sm:$0xf]
        %v3433 = vld [vmem:[%s3431] ss:$8 sm:$0xf0]
        %v3434 = vor.u32 %v3432, %v3433
        %v3436 = vlaneseq
        %v3437 = vshrl.u32 %v3436, 7
        %v3438 = vsub.s32 0, %v3437
        %v3439 = vrot.slane %v3434, %v3438
        %v3440 = vlaneseq
        %v3441 = vshrl.u32 %v3440, 7
        %v3442 = vsub.s32 1, %v3441
        %v3443 = vrot.slane %v3434, %v3442
        %v3444 = vlaneseq
        %v3445 = vshrl.u32 %v3444, 7
        %v3446 = vsub.s32 2, %v3445
        %v3447 = vrot.slane %v3434, %v3446
        %v3448 = vlaneseq
        %v3449 = vshrl.u32 %v3448, 7
        %v3450 = vsub.s32 3, %v3449
        %v3451 = vrot.slane %v3434, %v3450
        %v3452 = vlaneseq
        %v3453 = vshrl.u32 %v3452, 7
        %v3454 = vsub.s32 4, %v3453
        %v3455 = vrot.slane %v3434, %v3454
        %v3456 = vlaneseq
        %v3457 = vshrl.u32 %v3456, 7
        %v3458 = vsub.s32 5, %v3457
        %v3459 = vrot.slane %v3434, %v3458
        %v3460 = vlaneseq
        %v3461 = vshrl.u32 %v3460, 7
        %v3462 = vsub.s32 6, %v3461
        %v3463 = vrot.slane %v3434, %v3462
        %v3471 = vmul.f32 %v3430, %v3439
        %v3472 = vmul.f32 %v3417, %v3443
        %v3473 = vmul.f32 %v3418, %v3447
        %v3474 = vmul.f32 %v3419, %v3451
        %v3475 = vmul.f32 %v3420, %v3455
        %v3476 = vmul.f32 %v3421, %v3459
        %v3477 = vmul.f32 %v3422, %v3463
        %v3478 = vadd.f32 %v3395, %v3471
        %v3479 = vadd.f32 %v3396, %v3472
        %v3480 = vadd.f32 %v3397, %v3473
        %v3481 = vadd.f32 %v3398, %v3474
        %v3482 = vadd.f32 %v3399, %v3475
        %v3483 = vadd.f32 %v3400, %v3476
        %v3484 = vadd.f32 %v3401, %v3477
        %3485 = vrot.lane.b32.xlu0 %v2517, 6
        %v3486 = vpop.permute.xlu0 %3485
        %3488 = vrot.lane.b32.xlu0 %v2511, 6
        %v3489 = vpop.permute.xlu0 %3488
        %3490 = vrot.lane.b32.xlu0 %v2512, 6
        %v3491 = vpop.permute.xlu0 %3490
        %3492 = vrot.lane.b32.xlu0 %v2513, 6
        %v3493 = vpop.permute.xlu0 %3492
        %3494 = vrot.lane.b32.xlu0 %v2514, 6
        %v3495 = vpop.permute.xlu0 %3494
        %3496 = vrot.lane.b32.xlu0 %v2515, 6
        %v3497 = vpop.permute.xlu0 %3496
        %3498 = vrot.lane.b32.xlu0 %v2516, 6
        %v3499 = vpop.permute.xlu0 %3498
        %v3500 = vsel %vm1296, %v3489, %v3491
        %v3501 = vsel %vm1296, %v3491, %v3493
        %v3502 = vsel %vm1296, %v3493, %v3495
        %v3503 = vsel %vm1296, %v3495, %v3497
        %v3504 = vsel %vm1296, %v3497, %v3499
        %v3505 = vsel %vm1296, %v3499, %v3486
        %v3513 = vsel %vm1296, %v3486, %v3489
        %s3514 = scalar_lea.vmem [#allocation5], 230
        %v3515 = vld [vmem:[%s3514] ss:$8 sm:$0xf]
        %v3516 = vld [vmem:[%s3514] ss:$8 sm:$0xf0]
        %v3517 = vor.u32 %v3515, %v3516
        %v3519 = vlaneseq
        %v3520 = vshrl.u32 %v3519, 7
        %v3521 = vsub.s32 0, %v3520
        %v3522 = vrot.slane %v3517, %v3521
        %v3523 = vlaneseq
        %v3524 = vshrl.u32 %v3523, 7
        %v3525 = vsub.s32 1, %v3524
        %v3526 = vrot.slane %v3517, %v3525
        %v3527 = vlaneseq
        %v3528 = vshrl.u32 %v3527, 7
        %v3529 = vsub.s32 2, %v3528
        %v3530 = vrot.slane %v3517, %v3529
        %v3531 = vlaneseq
        %v3532 = vshrl.u32 %v3531, 7
        %v3533 = vsub.s32 3, %v3532
        %v3534 = vrot.slane %v3517, %v3533
        %v3535 = vlaneseq
        %v3536 = vshrl.u32 %v3535, 7
        %v3537 = vsub.s32 4, %v3536
        %v3538 = vrot.slane %v3517, %v3537
        %v3539 = vlaneseq
        %v3540 = vshrl.u32 %v3539, 7
        %v3541 = vsub.s32 5, %v3540
        %v3542 = vrot.slane %v3517, %v3541
        %v3543 = vlaneseq
        %v3544 = vshrl.u32 %v3543, 7
        %v3545 = vsub.s32 6, %v3544
        %v3546 = vrot.slane %v3517, %v3545
        %v3554 = vmul.f32 %v3513, %v3522
        %v3555 = vmul.f32 %v3500, %v3526
        %v3556 = vmul.f32 %v3501, %v3530
        %v3557 = vmul.f32 %v3502, %v3534
        %v3558 = vmul.f32 %v3503, %v3538
        %v3559 = vmul.f32 %v3504, %v3542
        %v3560 = vmul.f32 %v3505, %v3546
        %v3561 = vadd.f32 %v3478, %v3554
        %v3562 = vadd.f32 %v3479, %v3555
        %v3563 = vadd.f32 %v3480, %v3556
        %v3564 = vadd.f32 %v3481, %v3557
        %v3565 = vadd.f32 %v3482, %v3558
        %v3566 = vadd.f32 %v3483, %v3559
        %v3567 = vadd.f32 %v3484, %v3560
        %s3568 = scalar_lea.vmem [#allocation7], 2
        %v3569 = vld [vmem:[%s3568] ss:$4 sm:$0xff]
        %v3571 = vlaneseq
        %v3572 = vshrl.u32 %v3571, 7
        %v3573 = vsub.s32 0, %v3572
        %v3574 = vrot.slane %v3569, %v3573
        %v3575 = vlaneseq
        %v3576 = vshrl.u32 %v3575, 7
        %v3577 = vsub.s32 1, %v3576
        %v3578 = vrot.slane %v3569, %v3577
        %v3579 = vlaneseq
        %v3580 = vshrl.u32 %v3579, 7
        %v3581 = vsub.s32 2, %v3580
        %v3582 = vrot.slane %v3569, %v3581
        %v3583 = vlaneseq
        %v3584 = vshrl.u32 %v3583, 7
        %v3585 = vsub.s32 3, %v3584
        %v3586 = vrot.slane %v3569, %v3585
        %v3587 = vlaneseq
        %v3588 = vshrl.u32 %v3587, 7
        %v3589 = vsub.s32 4, %v3588
        %v3590 = vrot.slane %v3569, %v3589
        %v3591 = vlaneseq
        %v3592 = vshrl.u32 %v3591, 7
        %v3593 = vsub.s32 5, %v3592
        %v3594 = vrot.slane %v3569, %v3593
        %v3595 = vlaneseq
        %v3596 = vshrl.u32 %v3595, 7
        %v3597 = vsub.s32 6, %v3596
        %v3598 = vrot.slane %v3569, %v3597
        %v3606 = vadd.f32 %v3561, %v3574
        %v3607 = vadd.f32 %v3562, %v3578
        %v3608 = vadd.f32 %v3563, %v3582
        %v3609 = vadd.f32 %v3564, %v3586
        %v3610 = vadd.f32 %v3565, %v3590
        %v3611 = vadd.f32 %v3566, %v3594
        %v3612 = vadd.f32 %v3567, %v3598
        %v3613 = vmax.f32 %v3606, 0.0
        %v3614 = vmax.f32 %v3607, 0.0
        %v3615 = vmax.f32 %v3608, 0.0
        %v3616 = vmax.f32 %v3609, 0.0
        %v3617 = vmax.f32 %v3610, 0.0
        %v3618 = vmax.f32 %v3611, 0.0
        %v3619 = vmax.f32 %v3612, 0.0
        %3627 = vrot.lane.b32.xlu0 %v3613, 122
        %v3628 = vpop.permute.xlu0 %3627
        %3629 = vrot.lane.b32.xlu0 %v3614, 122
        %v3630 = vpop.permute.xlu0 %3629
        %3631 = vrot.lane.b32.xlu0 %v3615, 122
        %v3632 = vpop.permute.xlu0 %3631
        %3633 = vrot.lane.b32.xlu0 %v3616, 122
        %v3634 = vpop.permute.xlu0 %3633
        %3635 = vrot.lane.b32.xlu0 %v3617, 122
        %v3636 = vpop.permute.xlu0 %3635
        %3637 = vrot.lane.b32.xlu0 %v3618, 122
        %v3638 = vpop.permute.xlu0 %3637
        %3639 = vrot.lane.b32.xlu0 %v3619, 122
        %v3640 = vpop.permute.xlu0 %3639
        %v3641 = vsel %vm372, %v3628, %v3630
        %v3642 = vsel %vm372, %v3630, %v3632
        %v3643 = vsel %vm372, %v3632, %v3634
        %v3644 = vsel %vm372, %v3634, %v3636
        %v3645 = vsel %vm372, %v3636, %v3638
        %v3646 = vsel %vm372, %v3638, %v3640
        %v3655 = vsel %vm372, %v3640, %v3628
        %v3656 = vld [vmem:[#allocation8] ss:$8 sm:$0xf]
        %v3657 = vld [vmem:[#allocation8] ss:$8 sm:$0xf0]
        %v3658 = vor.u32 %v3656, %v3657
        %v3660 = vlaneseq
        %v3661 = vshrl.u32 %v3660, 7
        %v3662 = vsub.s32 0, %v3661
        %v3663 = vrot.slane %v3658, %v3662
        %v3664 = vlaneseq
        %v3665 = vshrl.u32 %v3664, 7
        %v3666 = vsub.s32 1, %v3665
        %v3667 = vrot.slane %v3658, %v3666
        %v3668 = vlaneseq
        %v3669 = vshrl.u32 %v3668, 7
        %v3670 = vsub.s32 2, %v3669
        %v3671 = vrot.slane %v3658, %v3670
        %v3672 = vlaneseq
        %v3673 = vshrl.u32 %v3672, 7
        %v3674 = vsub.s32 3, %v3673
        %v3675 = vrot.slane %v3658, %v3674
        %v3676 = vlaneseq
        %v3677 = vshrl.u32 %v3676, 7
        %v3678 = vsub.s32 4, %v3677
        %v3679 = vrot.slane %v3658, %v3678
        %v3680 = vlaneseq
        %v3681 = vshrl.u32 %v3680, 7
        %v3682 = vsub.s32 5, %v3681
        %v3683 = vrot.slane %v3658, %v3682
        %v3684 = vlaneseq
        %v3685 = vshrl.u32 %v3684, 7
        %v3686 = vsub.s32 6, %v3685
        %v3687 = vrot.slane %v3658, %v3686
        %v3695 = vadd.f32 %v3641, %v3663
        %v3696 = vadd.f32 %v3642, %v3667
        %v3697 = vadd.f32 %v3643, %v3671
        %v3698 = vadd.f32 %v3644, %v3675
        %v3699 = vadd.f32 %v3645, %v3679
        %v3700 = vadd.f32 %v3646, %v3683
        %v3701 = vadd.f32 %v3655, %v3687
        %v3702 = vmax.f32 %v3613, %v3695
        %v3703 = vmax.f32 %v3614, %v3696
        %v3704 = vmax.f32 %v3615, %v3697
        %v3705 = vmax.f32 %v3616, %v3698
        %v3706 = vmax.f32 %v3617, %v3699
        %v3707 = vmax.f32 %v3618, %v3700
        %v3708 = vmax.f32 %v3619, %v3701
        %3709 = vrot.lane.b32.xlu0 %v3613, 123
        %v3710 = vpop.permute.xlu0 %3709
        %3711 = vrot.lane.b32.xlu0 %v3614, 123
        %v3712 = vpop.permute.xlu0 %3711
        %3713 = vrot.lane.b32.xlu0 %v3615, 123
        %v3714 = vpop.permute.xlu0 %3713
        %3715 = vrot.lane.b32.xlu0 %v3616, 123
        %v3716 = vpop.permute.xlu0 %3715
        %3717 = vrot.lane.b32.xlu0 %v3617, 123
        %v3718 = vpop.permute.xlu0 %3717
        %3719 = vrot.lane.b32.xlu0 %v3618, 123
        %v3720 = vpop.permute.xlu0 %3719
        %3721 = vrot.lane.b32.xlu0 %v3619, 123
        %v3722 = vpop.permute.xlu0 %3721
        %v3723 = vsel %vm455, %v3710, %v3712
        %v3724 = vsel %vm455, %v3712, %v3714
        %v3725 = vsel %vm455, %v3714, %v3716
        %v3726 = vsel %vm455, %v3716, %v3718
        %v3727 = vsel %vm455, %v3718, %v3720
        %v3728 = vsel %vm455, %v3720, %v3722
        %v3737 = vsel %vm455, %v3722, %v3710
        %s3738 = scalar_lea.vmem [#allocation8], 1
        %v3739 = vld [vmem:[%s3738] ss:$8 sm:$0xf]
        %v3740 = vld [vmem:[%s3738] ss:$8 sm:$0xf0]
        %v3741 = vor.u32 %v3739, %v3740
        %v3743 = vlaneseq
        %v3744 = vshrl.u32 %v3743, 7
        %v3745 = vsub.s32 0, %v3744
        %v3746 = vrot.slane %v3741, %v3745
        %v3747 = vlaneseq
        %v3748 = vshrl.u32 %v3747, 7
        %v3749 = vsub.s32 1, %v3748
        %v3750 = vrot.slane %v3741, %v3749
        %v3751 = vlaneseq
        %v3752 = vshrl.u32 %v3751, 7
        %v3753 = vsub.s32 2, %v3752
        %v3754 = vrot.slane %v3741, %v3753
        %v3755 = vlaneseq
        %v3756 = vshrl.u32 %v3755, 7
        %v3757 = vsub.s32 3, %v3756
        %v3758 = vrot.slane %v3741, %v3757
        %v3759 = vlaneseq
        %v3760 = vshrl.u32 %v3759, 7
        %v3761 = vsub.s32 4, %v3760
        %v3762 = vrot.slane %v3741, %v3761
        %v3763 = vlaneseq
        %v3764 = vshrl.u32 %v3763, 7
        %v3765 = vsub.s32 5, %v3764
        %v3766 = vrot.slane %v3741, %v3765
        %v3767 = vlaneseq
        %v3768 = vshrl.u32 %v3767, 7
        %v3769 = vsub.s32 6, %v3768
        %v3770 = vrot.slane %v3741, %v3769
        %v3778 = vadd.f32 %v3723, %v3746
        %v3779 = vadd.f32 %v3724, %v3750
        %v3780 = vadd.f32 %v3725, %v3754
        %v3781 = vadd.f32 %v3726, %v3758
        %v3782 = vadd.f32 %v3727, %v3762
        %v3783 = vadd.f32 %v3728, %v3766
        %v3784 = vadd.f32 %v3737, %v3770
        %v3785 = vmax.f32 %v3702, %v3778
        %v3786 = vmax.f32 %v3703, %v3779
        %v3787 = vmax.f32 %v3704, %v3780
        %v3788 = vmax.f32 %v3705, %v3781
        %v3789 = vmax.f32 %v3706, %v3782
        %v3790 = vmax.f32 %v3707, %v3783
        %v3791 = vmax.f32 %v3708, %v3784
        %3792 = vrot.lane.b32.xlu0 %v3613, 124
        %v3793 = vpop.permute.xlu0 %3792
        %3794 = vrot.lane.b32.xlu0 %v3614, 124
        %v3795 = vpop.permute.xlu0 %3794
        %3796 = vrot.lane.b32.xlu0 %v3615, 124
        %v3797 = vpop.permute.xlu0 %3796
        %3798 = vrot.lane.b32.xlu0 %v3616, 124
        %v3799 = vpop.permute.xlu0 %3798
        %3800 = vrot.lane.b32.xlu0 %v3617, 124
        %v3801 = vpop.permute.xlu0 %3800
        %3802 = vrot.lane.b32.xlu0 %v3618, 124
        %v3803 = vpop.permute.xlu0 %3802
        %3804 = vrot.lane.b32.xlu0 %v3619, 124
        %v3805 = vpop.permute.xlu0 %3804
        %v3806 = vsel %vm539, %v3793, %v3795
        %v3807 = vsel %vm539, %v3795, %v3797
        %v3808 = vsel %vm539, %v3797, %v3799
        %v3809 = vsel %vm539, %v3799, %v3801
        %v3810 = vsel %vm539, %v3801, %v3803
        %v3811 = vsel %vm539, %v3803, %v3805
        %v3820 = vsel %vm539, %v3805, %v3793
        %s3821 = scalar_lea.vmem [#allocation8], 2
        %v3822 = vld [vmem:[%s3821] ss:$8 sm:$0xf]
        %v3823 = vld [vmem:[%s3821] ss:$8 sm:$0xf0]
        %v3824 = vor.u32 %v3822, %v3823
        %v3826 = vlaneseq
        %v3827 = vshrl.u32 %v3826, 7
        %v3828 = vsub.s32 0, %v3827
        %v3829 = vrot.slane %v3824, %v3828
        %v3830 = vlaneseq
        %v3831 = vshrl.u32 %v3830, 7
        %v3832 = vsub.s32 1, %v3831
        %v3833 = vrot.slane %v3824, %v3832
        %v3834 = vlaneseq
        %v3835 = vshrl.u32 %v3834, 7
        %v3836 = vsub.s32 2, %v3835
        %v3837 = vrot.slane %v3824, %v3836
        %v3838 = vlaneseq
        %v3839 = vshrl.u32 %v3838, 7
        %v3840 = vsub.s32 3, %v3839
        %v3841 = vrot.slane %v3824, %v3840
        %v3842 = vlaneseq
        %v3843 = vshrl.u32 %v3842, 7
        %v3844 = vsub.s32 4, %v3843
        %v3845 = vrot.slane %v3824, %v3844
        %v3846 = vlaneseq
        %v3847 = vshrl.u32 %v3846, 7
        %v3848 = vsub.s32 5, %v3847
        %v3849 = vrot.slane %v3824, %v3848
        %v3850 = vlaneseq
        %v3851 = vshrl.u32 %v3850, 7
        %v3852 = vsub.s32 6, %v3851
        %v3853 = vrot.slane %v3824, %v3852
        %v3861 = vadd.f32 %v3806, %v3829
        %v3862 = vadd.f32 %v3807, %v3833
        %v3863 = vadd.f32 %v3808, %v3837
        %v3864 = vadd.f32 %v3809, %v3841
        %v3865 = vadd.f32 %v3810, %v3845
        %v3866 = vadd.f32 %v3811, %v3849
        %v3867 = vadd.f32 %v3820, %v3853
        %v3868 = vmax.f32 %v3785, %v3861
        %v3869 = vmax.f32 %v3786, %v3862
        %v3870 = vmax.f32 %v3787, %v3863
        %v3871 = vmax.f32 %v3788, %v3864
        %v3872 = vmax.f32 %v3789, %v3865
        %v3873 = vmax.f32 %v3790, %v3866
        %v3874 = vmax.f32 %v3791, %v3867
        %3875 = vrot.lane.b32.xlu0 %v3613, 125
        %v3876 = vpop.permute.xlu0 %3875
        %3877 = vrot.lane.b32.xlu0 %v3614, 125
        %v3878 = vpop.permute.xlu0 %3877
        %3879 = vrot.lane.b32.xlu0 %v3615, 125
        %v3880 = vpop.permute.xlu0 %3879
        %3881 = vrot.lane.b32.xlu0 %v3616, 125
        %v3882 = vpop.permute.xlu0 %3881
        %3883 = vrot.lane.b32.xlu0 %v3617, 125
        %v3884 = vpop.permute.xlu0 %3883
        %3885 = vrot.lane.b32.xlu0 %v3618, 125
        %v3886 = vpop.permute.xlu0 %3885
        %3887 = vrot.lane.b32.xlu0 %v3619, 125
        %v3888 = vpop.permute.xlu0 %3887
        %v3889 = vsel %vm623, %v3876, %v3878
        %v3890 = vsel %vm623, %v3878, %v3880
        %v3891 = vsel %vm623, %v3880, %v3882
        %v3892 = vsel %vm623, %v3882, %v3884
        %v3893 = vsel %vm623, %v3884, %v3886
        %v3894 = vsel %vm623, %v3886, %v3888
        %v3903 = vsel %vm623, %v3888, %v3876
        %s3904 = scalar_lea.vmem [#allocation8], 3
        %v3905 = vld [vmem:[%s3904] ss:$8 sm:$0xf]
        %v3906 = vld [vmem:[%s3904] ss:$8 sm:$0xf0]
        %v3907 = vor.u32 %v3905, %v3906
        %v3909 = vlaneseq
        %v3910 = vshrl.u32 %v3909, 7
        %v3911 = vsub.s32 0, %v3910
        %v3912 = vrot.slane %v3907, %v3911
        %v3913 = vlaneseq
        %v3914 = vshrl.u32 %v3913, 7
        %v3915 = vsub.s32 1, %v3914
        %v3916 = vrot.slane %v3907, %v3915
        %v3917 = vlaneseq
        %v3918 = vshrl.u32 %v3917, 7
        %v3919 = vsub.s32 2, %v3918
        %v3920 = vrot.slane %v3907, %v3919
        %v3921 = vlaneseq
        %v3922 = vshrl.u32 %v3921, 7
        %v3923 = vsub.s32 3, %v3922
        %v3924 = vrot.slane %v3907, %v3923
        %v3925 = vlaneseq
        %v3926 = vshrl.u32 %v3925, 7
        %v3927 = vsub.s32 4, %v3926
        %v3928 = vrot.slane %v3907, %v3927
        %v3929 = vlaneseq
        %v3930 = vshrl.u32 %v3929, 7
        %v3931 = vsub.s32 5, %v3930
        %v3932 = vrot.slane %v3907, %v3931
        %v3933 = vlaneseq
        %v3934 = vshrl.u32 %v3933, 7
        %v3935 = vsub.s32 6, %v3934
        %v3936 = vrot.slane %v3907, %v3935
        %v3944 = vadd.f32 %v3889, %v3912
        %v3945 = vadd.f32 %v3890, %v3916
        %v3946 = vadd.f32 %v3891, %v3920
        %v3947 = vadd.f32 %v3892, %v3924
        %v3948 = vadd.f32 %v3893, %v3928
        %v3949 = vadd.f32 %v3894, %v3932
        %v3950 = vadd.f32 %v3903, %v3936
        %v3951 = vmax.f32 %v3868, %v3944
        %v3952 = vmax.f32 %v3869, %v3945
        %v3953 = vmax.f32 %v3870, %v3946
        %v3954 = vmax.f32 %v3871, %v3947
        %v3955 = vmax.f32 %v3872, %v3948
        %v3956 = vmax.f32 %v3873, %v3949
        %v3957 = vmax.f32 %v3874, %v3950
        %3958 = vrot.lane.b32.xlu0 %v3613, 126
        %v3959 = vpop.permute.xlu0 %3958
        %3960 = vrot.lane.b32.xlu0 %v3614, 126
        %v3961 = vpop.permute.xlu0 %3960
        %3962 = vrot.lane.b32.xlu0 %v3615, 126
        %v3963 = vpop.permute.xlu0 %3962
        %3964 = vrot.lane.b32.xlu0 %v3616, 126
        %v3965 = vpop.permute.xlu0 %3964
        %3966 = vrot.lane.b32.xlu0 %v3617, 126
        %v3967 = vpop.permute.xlu0 %3966
        %3968 = vrot.lane.b32.xlu0 %v3618, 126
        %v3969 = vpop.permute.xlu0 %3968
        %3970 = vrot.lane.b32.xlu0 %v3619, 126
        %v3971 = vpop.permute.xlu0 %3970
        %v3972 = vsel %vm707, %v3959, %v3961
        %v3973 = vsel %vm707, %v3961, %v3963
        %v3974 = vsel %vm707, %v3963, %v3965
        %v3975 = vsel %vm707, %v3965, %v3967
        %v3976 = vsel %vm707, %v3967, %v3969
        %v3977 = vsel %vm707, %v3969, %v3971
        %v3986 = vsel %vm707, %v3971, %v3959
        %s3987 = scalar_lea.vmem [#allocation8], 4
        %v3988 = vld [vmem:[%s3987] ss:$8 sm:$0xf]
        %v3989 = vld [vmem:[%s3987] ss:$8 sm:$0xf0]
        %v3990 = vor.u32 %v3988, %v3989
        %v3992 = vlaneseq
        %v3993 = vshrl.u32 %v3992, 7
        %v3994 = vsub.s32 0, %v3993
        %v3995 = vrot.slane %v3990, %v3994
        %v3996 = vlaneseq
        %v3997 = vshrl.u32 %v3996, 7
        %v3998 = vsub.s32 1, %v3997
        %v3999 = vrot.slane %v3990, %v3998
        %v4000 = vlaneseq
        %v4001 = vshrl.u32 %v4000, 7
        %v4002 = vsub.s32 2, %v4001
        %v4003 = vrot.slane %v3990, %v4002
        %v4004 = vlaneseq
        %v4005 = vshrl.u32 %v4004, 7
        %v4006 = vsub.s32 3, %v4005
        %v4007 = vrot.slane %v3990, %v4006
        %v4008 = vlaneseq
        %v4009 = vshrl.u32 %v4008, 7
        %v4010 = vsub.s32 4, %v4009
        %v4011 = vrot.slane %v3990, %v4010
        %v4012 = vlaneseq
        %v4013 = vshrl.u32 %v4012, 7
        %v4014 = vsub.s32 5, %v4013
        %v4015 = vrot.slane %v3990, %v4014
        %v4016 = vlaneseq
        %v4017 = vshrl.u32 %v4016, 7
        %v4018 = vsub.s32 6, %v4017
        %v4019 = vrot.slane %v3990, %v4018
        %v4027 = vadd.f32 %v3972, %v3995
        %v4028 = vadd.f32 %v3973, %v3999
        %v4029 = vadd.f32 %v3974, %v4003
        %v4030 = vadd.f32 %v3975, %v4007
        %v4031 = vadd.f32 %v3976, %v4011
        %v4032 = vadd.f32 %v3977, %v4015
        %v4033 = vadd.f32 %v3986, %v4019
        %v4034 = vmax.f32 %v3951, %v4027
        %v4035 = vmax.f32 %v3952, %v4028
        %v4036 = vmax.f32 %v3953, %v4029
        %v4037 = vmax.f32 %v3954, %v4030
        %v4038 = vmax.f32 %v3955, %v4031
        %v4039 = vmax.f32 %v3956, %v4032
        %v4040 = vmax.f32 %v3957, %v4033
        %4041 = vrot.lane.b32.xlu0 %v3613, 127
        %v4042 = vpop.permute.xlu0 %4041
        %4043 = vrot.lane.b32.xlu0 %v3614, 127
        %v4044 = vpop.permute.xlu0 %4043
        %4045 = vrot.lane.b32.xlu0 %v3615, 127
        %v4046 = vpop.permute.xlu0 %4045
        %4047 = vrot.lane.b32.xlu0 %v3616, 127
        %v4048 = vpop.permute.xlu0 %4047
        %4049 = vrot.lane.b32.xlu0 %v3617, 127
        %v4050 = vpop.permute.xlu0 %4049
        %4051 = vrot.lane.b32.xlu0 %v3618, 127
        %v4052 = vpop.permute.xlu0 %4051
        %4053 = vrot.lane.b32.xlu0 %v3619, 127
        %v4054 = vpop.permute.xlu0 %4053
        %v4055 = vsel %vm791, %v4042, %v4044
        %v4056 = vsel %vm791, %v4044, %v4046
        %v4057 = vsel %vm791, %v4046, %v4048
        %v4058 = vsel %vm791, %v4048, %v4050
        %v4059 = vsel %vm791, %v4050, %v4052
        %v4060 = vsel %vm791, %v4052, %v4054
        %v4069 = vsel %vm791, %v4054, %v4042
        %s4070 = scalar_lea.vmem [#allocation8], 5
        %v4071 = vld [vmem:[%s4070] ss:$8 sm:$0xf]
        %v4072 = vld [vmem:[%s4070] ss:$8 sm:$0xf0]
        %v4073 = vor.u32 %v4071, %v4072
        %v4075 = vlaneseq
        %v4076 = vshrl.u32 %v4075, 7
        %v4077 = vsub.s32 0, %v4076
        %v4078 = vrot.slane %v4073, %v4077
        %v4079 = vlaneseq
        %v4080 = vshrl.u32 %v4079, 7
        %v4081 = vsub.s32 1, %v4080
        %v4082 = vrot.slane %v4073, %v4081
        %v4083 = vlaneseq
        %v4084 = vshrl.u32 %v4083, 7
        %v4085 = vsub.s32 2, %v4084
        %v4086 = vrot.slane %v4073, %v4085
        %v4087 = vlaneseq
        %v4088 = vshrl.u32 %v4087, 7
        %v4089 = vsub.s32 3, %v4088
        %v4090 = vrot.slane %v4073, %v4089
        %v4091 = vlaneseq
        %v4092 = vshrl.u32 %v4091, 7
        %v4093 = vsub.s32 4, %v4092
        %v4094 = vrot.slane %v4073, %v4093
        %v4095 = vlaneseq
        %v4096 = vshrl.u32 %v4095, 7
        %v4097 = vsub.s32 5, %v4096
        %v4098 = vrot.slane %v4073, %v4097
        %v4099 = vlaneseq
        %v4100 = vshrl.u32 %v4099, 7
        %v4101 = vsub.s32 6, %v4100
        %v4102 = vrot.slane %v4073, %v4101
        %v4110 = vadd.f32 %v4055, %v4078
        %v4111 = vadd.f32 %v4056, %v4082
        %v4112 = vadd.f32 %v4057, %v4086
        %v4113 = vadd.f32 %v4058, %v4090
        %v4114 = vadd.f32 %v4059, %v4094
        %v4115 = vadd.f32 %v4060, %v4098
        %v4116 = vadd.f32 %v4069, %v4102
        %v4117 = vmax.f32 %v4034, %v4110
        %v4118 = vmax.f32 %v4035, %v4111
        %v4119 = vmax.f32 %v4036, %v4112
        %v4120 = vmax.f32 %v4037, %v4113
        %v4121 = vmax.f32 %v4038, %v4114
        %v4122 = vmax.f32 %v4039, %v4115
        %v4123 = vmax.f32 %v4040, %v4116
        %4124 = vrot.lane.b32.xlu0 %v3619, 1
        %v4125 = vpop.permute.xlu0 %4124
        %4127 = vrot.lane.b32.xlu0 %v3613, 1
        %v4128 = vpop.permute.xlu0 %4127
        %4129 = vrot.lane.b32.xlu0 %v3614, 1
        %v4130 = vpop.permute.xlu0 %4129
        %4131 = vrot.lane.b32.xlu0 %v3615, 1
        %v4132 = vpop.permute.xlu0 %4131
        %4133 = vrot.lane.b32.xlu0 %v3616, 1
        %v4134 = vpop.permute.xlu0 %4133
        %4135 = vrot.lane.b32.xlu0 %v3617, 1
        %v4136 = vpop.permute.xlu0 %4135
        %4137 = vrot.lane.b32.xlu0 %v3618, 1
        %v4138 = vpop.permute.xlu0 %4137
        %v4139 = vsel %vm876, %v4128, %v4130
        %v4140 = vsel %vm876, %v4130, %v4132
        %v4141 = vsel %vm876, %v4132, %v4134
        %v4142 = vsel %vm876, %v4134, %v4136
        %v4143 = vsel %vm876, %v4136, %v4138
        %v4144 = vsel %vm876, %v4138, %v4125
        %v4152 = vsel %vm876, %v4125, %v4128
        %s4153 = scalar_lea.vmem [#allocation8], 7
        %v4154 = vld [vmem:[%s4153] ss:$8 sm:$0xf]
        %v4155 = vld [vmem:[%s4153] ss:$8 sm:$0xf0]
        %v4156 = vor.u32 %v4154, %v4155
        %v4158 = vlaneseq
        %v4159 = vshrl.u32 %v4158, 7
        %v4160 = vsub.s32 0, %v4159
        %v4161 = vrot.slane %v4156, %v4160
        %v4162 = vlaneseq
        %v4163 = vshrl.u32 %v4162, 7
        %v4164 = vsub.s32 1, %v4163
        %v4165 = vrot.slane %v4156, %v4164
        %v4166 = vlaneseq
        %v4167 = vshrl.u32 %v4166, 7
        %v4168 = vsub.s32 2, %v4167
        %v4169 = vrot.slane %v4156, %v4168
        %v4170 = vlaneseq
        %v4171 = vshrl.u32 %v4170, 7
        %v4172 = vsub.s32 3, %v4171
        %v4173 = vrot.slane %v4156, %v4172
        %v4174 = vlaneseq
        %v4175 = vshrl.u32 %v4174, 7
        %v4176 = vsub.s32 4, %v4175
        %v4177 = vrot.slane %v4156, %v4176
        %v4178 = vlaneseq
        %v4179 = vshrl.u32 %v4178, 7
        %v4180 = vsub.s32 5, %v4179
        %v4181 = vrot.slane %v4156, %v4180
        %v4182 = vlaneseq
        %v4183 = vshrl.u32 %v4182, 7
        %v4184 = vsub.s32 6, %v4183
        %v4185 = vrot.slane %v4156, %v4184
        %v4193 = vadd.f32 %v4152, %v4161
        %v4194 = vadd.f32 %v4139, %v4165
        %v4195 = vadd.f32 %v4140, %v4169
        %v4196 = vadd.f32 %v4141, %v4173
        %v4197 = vadd.f32 %v4142, %v4177
        %v4198 = vadd.f32 %v4143, %v4181
        %v4199 = vadd.f32 %v4144, %v4185
        %v4200 = vmax.f32 %v4117, %v4193
        %v4201 = vmax.f32 %v4118, %v4194
        %v4202 = vmax.f32 %v4119, %v4195
        %v4203 = vmax.f32 %v4120, %v4196
        %v4204 = vmax.f32 %v4121, %v4197
        %v4205 = vmax.f32 %v4122, %v4198
        %v4206 = vmax.f32 %v4123, %v4199
        %4207 = vrot.lane.b32.xlu0 %v3619, 2
        %v4208 = vpop.permute.xlu0 %4207
        %4210 = vrot.lane.b32.xlu0 %v3613, 2
        %v4211 = vpop.permute.xlu0 %4210
        %4212 = vrot.lane.b32.xlu0 %v3614, 2
        %v4213 = vpop.permute.xlu0 %4212
        %4214 = vrot.lane.b32.xlu0 %v3615, 2
        %v4215 = vpop.permute.xlu0 %4214
        %4216 = vrot.lane.b32.xlu0 %v3616, 2
        %v4217 = vpop.permute.xlu0 %4216
        %4218 = vrot.lane.b32.xlu0 %v3617, 2
        %v4219 = vpop.permute.xlu0 %4218
        %4220 = vrot.lane.b32.xlu0 %v3618, 2
        %v4221 = vpop.permute.xlu0 %4220
        %v4222 = vsel %vm960, %v4211, %v4213
        %v4223 = vsel %vm960, %v4213, %v4215
        %v4224 = vsel %vm960, %v4215, %v4217
        %v4225 = vsel %vm960, %v4217, %v4219
        %v4226 = vsel %vm960, %v4219, %v4221
        %v4227 = vsel %vm960, %v4221, %v4208
        %v4235 = vsel %vm960, %v4208, %v4211
        %s4236 = scalar_lea.vmem [#allocation8], 56
        %v4237 = vld [vmem:[%s4236] ss:$8 sm:$0xf]
        %v4238 = vld [vmem:[%s4236] ss:$8 sm:$0xf0]
        %v4239 = vor.u32 %v4237, %v4238
        %v4241 = vlaneseq
        %v4242 = vshrl.u32 %v4241, 7
        %v4243 = vsub.s32 0, %v4242
        %v4244 = vrot.slane %v4239, %v4243
        %v4245 = vlaneseq
        %v4246 = vshrl.u32 %v4245, 7
        %v4247 = vsub.s32 1, %v4246
        %v4248 = vrot.slane %v4239, %v4247
        %v4249 = vlaneseq
        %v4250 = vshrl.u32 %v4249, 7
        %v4251 = vsub.s32 2, %v4250
        %v4252 = vrot.slane %v4239, %v4251
        %v4253 = vlaneseq
        %v4254 = vshrl.u32 %v4253, 7
        %v4255 = vsub.s32 3, %v4254
        %v4256 = vrot.slane %v4239, %v4255
        %v4257 = vlaneseq
        %v4258 = vshrl.u32 %v4257, 7
        %v4259 = vsub.s32 4, %v4258
        %v4260 = vrot.slane %v4239, %v4259
        %v4261 = vlaneseq
        %v4262 = vshrl.u32 %v4261, 7
        %v4263 = vsub.s32 5, %v4262
        %v4264 = vrot.slane %v4239, %v4263
        %v4265 = vlaneseq
        %v4266 = vshrl.u32 %v4265, 7
        %v4267 = vsub.s32 6, %v4266
        %v4268 = vrot.slane %v4239, %v4267
        %v4276 = vadd.f32 %v4235, %v4244
        %v4277 = vadd.f32 %v4222, %v4248
        %v4278 = vadd.f32 %v4223, %v4252
        %v4279 = vadd.f32 %v4224, %v4256
        %v4280 = vadd.f32 %v4225, %v4260
        %v4281 = vadd.f32 %v4226, %v4264
        %v4282 = vadd.f32 %v4227, %v4268
        %v4283 = vmax.f32 %v4200, %v4276
        %v4284 = vmax.f32 %v4201, %v4277
        %v4285 = vmax.f32 %v4202, %v4278
        %v4286 = vmax.f32 %v4203, %v4279
        %v4287 = vmax.f32 %v4204, %v4280
        %v4288 = vmax.f32 %v4205, %v4281
        %v4289 = vmax.f32 %v4206, %v4282
        %4290 = vrot.lane.b32.xlu0 %v3619, 3
        %v4291 = vpop.permute.xlu0 %4290
        %4293 = vrot.lane.b32.xlu0 %v3613, 3
        %v4294 = vpop.permute.xlu0 %4293
        %4295 = vrot.lane.b32.xlu0 %v3614, 3
        %v4296 = vpop.permute.xlu0 %4295
        %4297 = vrot.lane.b32.xlu0 %v3615, 3
        %v4298 = vpop.permute.xlu0 %4297
        %4299 = vrot.lane.b32.xlu0 %v3616, 3
        %v4300 = vpop.permute.xlu0 %4299
        %4301 = vrot.lane.b32.xlu0 %v3617, 3
        %v4302 = vpop.permute.xlu0 %4301
        %4303 = vrot.lane.b32.xlu0 %v3618, 3
        %v4304 = vpop.permute.xlu0 %4303
        %v4305 = vsel %vm1044, %v4294, %v4296
        %v4306 = vsel %vm1044, %v4296, %v4298
        %v4307 = vsel %vm1044, %v4298, %v4300
        %v4308 = vsel %vm1044, %v4300, %v4302
        %v4309 = vsel %vm1044, %v4302, %v4304
        %v4310 = vsel %vm1044, %v4304, %v4291
        %v4318 = vsel %vm1044, %v4291, %v4294
        %s4319 = scalar_lea.vmem [#allocation8], 57
        %v4320 = vld [vmem:[%s4319] ss:$8 sm:$0xf]
        %v4321 = vld [vmem:[%s4319] ss:$8 sm:$0xf0]
        %v4322 = vor.u32 %v4320, %v4321
        %v4324 = vlaneseq
        %v4325 = vshrl.u32 %v4324, 7
        %v4326 = vsub.s32 0, %v4325
        %v4327 = vrot.slane %v4322, %v4326
        %v4328 = vlaneseq
        %v4329 = vshrl.u32 %v4328, 7
        %v4330 = vsub.s32 1, %v4329
        %v4331 = vrot.slane %v4322, %v4330
        %v4332 = vlaneseq
        %v4333 = vshrl.u32 %v4332, 7
        %v4334 = vsub.s32 2, %v4333
        %v4335 = vrot.slane %v4322, %v4334
        %v4336 = vlaneseq
        %v4337 = vshrl.u32 %v4336, 7
        %v4338 = vsub.s32 3, %v4337
        %v4339 = vrot.slane %v4322, %v4338
        %v4340 = vlaneseq
        %v4341 = vshrl.u32 %v4340, 7
        %v4342 = vsub.s32 4, %v4341
        %v4343 = vrot.slane %v4322, %v4342
        %v4344 = vlaneseq
        %v4345 = vshrl.u32 %v4344, 7
        %v4346 = vsub.s32 5, %v4345
        %v4347 = vrot.slane %v4322, %v4346
        %v4348 = vlaneseq
        %v4349 = vshrl.u32 %v4348, 7
        %v4350 = vsub.s32 6, %v4349
        %v4351 = vrot.slane %v4322, %v4350
        %v4359 = vadd.f32 %v4318, %v4327
        %v4360 = vadd.f32 %v4305, %v4331
        %v4361 = vadd.f32 %v4306, %v4335
        %v4362 = vadd.f32 %v4307, %v4339
        %v4363 = vadd.f32 %v4308, %v4343
        %v4364 = vadd.f32 %v4309, %v4347
        %v4365 = vadd.f32 %v4310, %v4351
        %v4366 = vmax.f32 %v4283, %v4359
        %v4367 = vmax.f32 %v4284, %v4360
        %v4368 = vmax.f32 %v4285, %v4361
        %v4369 = vmax.f32 %v4286, %v4362
        %v4370 = vmax.f32 %v4287, %v4363
        %v4371 = vmax.f32 %v4288, %v4364
        %v4372 = vmax.f32 %v4289, %v4365
        %4373 = vrot.lane.b32.xlu0 %v3619, 4
        %v4374 = vpop.permute.xlu0 %4373
        %4376 = vrot.lane.b32.xlu0 %v3613, 4
        %v4377 = vpop.permute.xlu0 %4376
        %4378 = vrot.lane.b32.xlu0 %v3614, 4
        %v4379 = vpop.permute.xlu0 %4378
        %4380 = vrot.lane.b32.xlu0 %v3615, 4
        %v4381 = vpop.permute.xlu0 %4380
        %4382 = vrot.lane.b32.xlu0 %v3616, 4
        %v4383 = vpop.permute.xlu0 %4382
        %4384 = vrot.lane.b32.xlu0 %v3617, 4
        %v4385 = vpop.permute.xlu0 %4384
        %4386 = vrot.lane.b32.xlu0 %v3618, 4
        %v4387 = vpop.permute.xlu0 %4386
        %v4388 = vsel %vm1128, %v4377, %v4379
        %v4389 = vsel %vm1128, %v4379, %v4381
        %v4390 = vsel %vm1128, %v4381, %v4383
        %v4391 = vsel %vm1128, %v4383, %v4385
        %v4392 = vsel %vm1128, %v4385, %v4387
        %v4393 = vsel %vm1128, %v4387, %v4374
        %v4401 = vsel %vm1128, %v4374, %v4377
        %s4402 = scalar_lea.vmem [#allocation8], 58
        %v4403 = vld [vmem:[%s4402] ss:$8 sm:$0xf]
        %v4404 = vld [vmem:[%s4402] ss:$8 sm:$0xf0]
        %v4405 = vor.u32 %v4403, %v4404
        %v4407 = vlaneseq
        %v4408 = vshrl.u32 %v4407, 7
        %v4409 = vsub.s32 0, %v4408
        %v4410 = vrot.slane %v4405, %v4409
        %v4411 = vlaneseq
        %v4412 = vshrl.u32 %v4411, 7
        %v4413 = vsub.s32 1, %v4412
        %v4414 = vrot.slane %v4405, %v4413
        %v4415 = vlaneseq
        %v4416 = vshrl.u32 %v4415, 7
        %v4417 = vsub.s32 2, %v4416
        %v4418 = vrot.slane %v4405, %v4417
        %v4419 = vlaneseq
        %v4420 = vshrl.u32 %v4419, 7
        %v4421 = vsub.s32 3, %v4420
        %v4422 = vrot.slane %v4405, %v4421
        %v4423 = vlaneseq
        %v4424 = vshrl.u32 %v4423, 7
        %v4425 = vsub.s32 4, %v4424
        %v4426 = vrot.slane %v4405, %v4425
        %v4427 = vlaneseq
        %v4428 = vshrl.u32 %v4427, 7
        %v4429 = vsub.s32 5, %v4428
        %v4430 = vrot.slane %v4405, %v4429
        %v4431 = vlaneseq
        %v4432 = vshrl.u32 %v4431, 7
        %v4433 = vsub.s32 6, %v4432
        %v4434 = vrot.slane %v4405, %v4433
        %v4442 = vadd.f32 %v4401, %v4410
        %v4443 = vadd.f32 %v4388, %v4414
        %v4444 = vadd.f32 %v4389, %v4418
        %v4445 = vadd.f32 %v4390, %v4422
        %v4446 = vadd.f32 %v4391, %v4426
        %v4447 = vadd.f32 %v4392, %v4430
        %v4448 = vadd.f32 %v4393, %v4434
        %v4449 = vmax.f32 %v4366, %v4442
        %v4450 = vmax.f32 %v4367, %v4443
        %v4451 = vmax.f32 %v4368, %v4444
        %v4452 = vmax.f32 %v4369, %v4445
        %v4453 = vmax.f32 %v4370, %v4446
        %v4454 = vmax.f32 %v4371, %v4447
        %v4455 = vmax.f32 %v4372, %v4448
        %4456 = vrot.lane.b32.xlu0 %v3619, 5
        %v4457 = vpop.permute.xlu0 %4456
        %4459 = vrot.lane.b32.xlu0 %v3613, 5
        %v4460 = vpop.permute.xlu0 %4459
        %4461 = vrot.lane.b32.xlu0 %v3614, 5
        %v4462 = vpop.permute.xlu0 %4461
        %4463 = vrot.lane.b32.xlu0 %v3615, 5
        %v4464 = vpop.permute.xlu0 %4463
        %4465 = vrot.lane.b32.xlu0 %v3616, 5
        %v4466 = vpop.permute.xlu0 %4465
        %4467 = vrot.lane.b32.xlu0 %v3617, 5
        %v4468 = vpop.permute.xlu0 %4467
        %4469 = vrot.lane.b32.xlu0 %v3618, 5
        %v4470 = vpop.permute.xlu0 %4469
        %v4471 = vsel %vm1212, %v4460, %v4462
        %v4472 = vsel %vm1212, %v4462, %v4464
        %v4473 = vsel %vm1212, %v4464, %v4466
        %v4474 = vsel %vm1212, %v4466, %v4468
        %v4475 = vsel %vm1212, %v4468, %v4470
        %v4476 = vsel %vm1212, %v4470, %v4457
        %v4484 = vsel %vm1212, %v4457, %v4460
        %s4485 = scalar_lea.vmem [#allocation8], 59
        %v4486 = vld [vmem:[%s4485] ss:$8 sm:$0xf]
        %v4487 = vld [vmem:[%s4485] ss:$8 sm:$0xf0]
        %v4488 = vor.u32 %v4486, %v4487
        %v4490 = vlaneseq
        %v4491 = vshrl.u32 %v4490, 7
        %v4492 = vsub.s32 0, %v4491
        %v4493 = vrot.slane %v4488, %v4492
        %v4494 = vlaneseq
        %v4495 = vshrl.u32 %v4494, 7
        %v4496 = vsub.s32 1, %v4495
        %v4497 = vrot.slane %v4488, %v4496
        %v4498 = vlaneseq
        %v4499 = vshrl.u32 %v4498, 7
        %v4500 = vsub.s32 2, %v4499
        %v4501 = vrot.slane %v4488, %v4500
        %v4502 = vlaneseq
        %v4503 = vshrl.u32 %v4502, 7
        %v4504 = vsub.s32 3, %v4503
        %v4505 = vrot.slane %v4488, %v4504
        %v4506 = vlaneseq
        %v4507 = vshrl.u32 %v4506, 7
        %v4508 = vsub.s32 4, %v4507
        %v4509 = vrot.slane %v4488, %v4508
        %v4510 = vlaneseq
        %v4511 = vshrl.u32 %v4510, 7
        %v4512 = vsub.s32 5, %v4511
        %v4513 = vrot.slane %v4488, %v4512
        %v4514 = vlaneseq
        %v4515 = vshrl.u32 %v4514, 7
        %v4516 = vsub.s32 6, %v4515
        %v4517 = vrot.slane %v4488, %v4516
        %v4525 = vadd.f32 %v4484, %v4493
        %v4526 = vadd.f32 %v4471, %v4497
        %v4527 = vadd.f32 %v4472, %v4501
        %v4528 = vadd.f32 %v4473, %v4505
        %v4529 = vadd.f32 %v4474, %v4509
        %v4530 = vadd.f32 %v4475, %v4513
        %v4531 = vadd.f32 %v4476, %v4517
        %v4532 = vmax.f32 %v4449, %v4525
        %v4533 = vmax.f32 %v4450, %v4526
        %v4534 = vmax.f32 %v4451, %v4527
        %v4535 = vmax.f32 %v4452, %v4528
        %v4536 = vmax.f32 %v4453, %v4529
        %v4537 = vmax.f32 %v4454, %v4530
        %v4538 = vmax.f32 %v4455, %v4531
        %4539 = vrot.lane.b32.xlu0 %v3619, 6
        %v4540 = vpop.permute.xlu0 %4539
        %4542 = vrot.lane.b32.xlu0 %v3613, 6
        %v4543 = vpop.permute.xlu0 %4542
        %4544 = vrot.lane.b32.xlu0 %v3614, 6
        %v4545 = vpop.permute.xlu0 %4544
        %4546 = vrot.lane.b32.xlu0 %v3615, 6
        %v4547 = vpop.permute.xlu0 %4546
        %4548 = vrot.lane.b32.xlu0 %v3616, 6
        %v4549 = vpop.permute.xlu0 %4548
        %4550 = vrot.lane.b32.xlu0 %v3617, 6
        %v4551 = vpop.permute.xlu0 %4550
        %4552 = vrot.lane.b32.xlu0 %v3618, 6
        %v4553 = vpop.permute.xlu0 %4552
        %v4554 = vsel %vm1296, %v4543, %v4545
        %v4555 = vsel %vm1296, %v4545, %v4547
        %v4556 = vsel %vm1296, %v4547, %v4549
        %v4557 = vsel %vm1296, %v4549, %v4551
        %v4558 = vsel %vm1296, %v4551, %v4553
        %v4559 = vsel %vm1296, %v4553, %v4540
        %v4567 = vsel %vm1296, %v4540, %v4543
        %s4568 = scalar_lea.vmem [#allocation8], 60
        %v4569 = vld [vmem:[%s4568] ss:$8 sm:$0xf]
        %v4570 = vld [vmem:[%s4568] ss:$8 sm:$0xf0]
        %v4571 = vor.u32 %v4569, %v4570
        %v4573 = vlaneseq
        %v4574 = vshrl.u32 %v4573, 7
        %v4575 = vsub.s32 0, %v4574
        %v4576 = vrot.slane %v4571, %v4575
        %v4577 = vlaneseq
        %v4578 = vshrl.u32 %v4577, 7
        %v4579 = vsub.s32 1, %v4578
        %v4580 = vrot.slane %v4571, %v4579
        %v4581 = vlaneseq
        %v4582 = vshrl.u32 %v4581, 7
        %v4583 = vsub.s32 2, %v4582
        %v4584 = vrot.slane %v4571, %v4583
        %v4585 = vlaneseq
        %v4586 = vshrl.u32 %v4585, 7
        %v4587 = vsub.s32 3, %v4586
        %v4588 = vrot.slane %v4571, %v4587
        %v4589 = vlaneseq
        %v4590 = vshrl.u32 %v4589, 7
        %v4591 = vsub.s32 4, %v4590
        %v4592 = vrot.slane %v4571, %v4591
        %v4593 = vlaneseq
        %v4594 = vshrl.u32 %v4593, 7
        %v4595 = vsub.s32 5, %v4594
        %v4596 = vrot.slane %v4571, %v4595
        %v4597 = vlaneseq
        %v4598 = vshrl.u32 %v4597, 7
        %v4599 = vsub.s32 6, %v4598
        %v4600 = vrot.slane %v4571, %v4599
        %v4608 = vadd.f32 %v4567, %v4576
        %v4609 = vadd.f32 %v4554, %v4580
        %v4610 = vadd.f32 %v4555, %v4584
        %v4611 = vadd.f32 %v4556, %v4588
        %v4612 = vadd.f32 %v4557, %v4592
        %v4613 = vadd.f32 %v4558, %v4596
        %v4614 = vadd.f32 %v4559, %v4600
        %v4615 = vmax.f32 %v4532, %v4608
        %v4616 = vmax.f32 %v4533, %v4609
        %v4617 = vmax.f32 %v4534, %v4610
        %v4618 = vmax.f32 %v4535, %v4611
        %v4619 = vmax.f32 %v4536, %v4612
        %v4620 = vmax.f32 %v4537, %v4613
        %v4621 = vmax.f32 %v4538, %v4614
        %v4622 = vsub.f32 %v3613, %v4615
        %v4623 = vsub.f32 %v3614, %v4616
        %v4624 = vsub.f32 %v3615, %v4617
        %v4625 = vsub.f32 %v3616, %v4618
        %v4626 = vsub.f32 %v3617, %v4619
        %v4627 = vsub.f32 %v3618, %v4620
        %v4628 = vsub.f32 %v3619, %v4621
        %v4629 = vmul.f32 %v4622, 1.442695
        %v4630 = vpow.pop %v4629
        %v4631 = vmul.f32 %v4623, 1.442695
        %v4632 = vpow.pop %v4631
        %v4633 = vmul.f32 %v4624, 1.442695
        %v4634 = vpow.pop %v4633
        %v4635 = vmul.f32 %v4625, 1.442695
        %v4636 = vpow.pop %v4635
        %v4637 = vmul.f32 %v4626, 1.442695
        %v4638 = vpow.pop %v4637
        %v4639 = vmul.f32 %v4627, 1.442695
        %v4640 = vpow.pop %v4639
        %v4641 = vmul.f32 %v4628, 1.442695
        %v4642 = vpow.pop %v4641
        %4650 = vrot.lane.b32.xlu0 %v4630, 122
        %v4651 = vpop.permute.xlu0 %4650
        %4652 = vrot.lane.b32.xlu0 %v4632, 122
        %v4653 = vpop.permute.xlu0 %4652
        %4654 = vrot.lane.b32.xlu0 %v4634, 122
        %v4655 = vpop.permute.xlu0 %4654
        %4656 = vrot.lane.b32.xlu0 %v4636, 122
        %v4657 = vpop.permute.xlu0 %4656
        %4658 = vrot.lane.b32.xlu0 %v4638, 122
        %v4659 = vpop.permute.xlu0 %4658
        %4660 = vrot.lane.b32.xlu0 %v4640, 122
        %v4661 = vpop.permute.xlu0 %4660
        %4662 = vrot.lane.b32.xlu0 %v4642, 122
        %v4663 = vpop.permute.xlu0 %4662
        %v4664 = vsel %vm372, %v4651, %v4653
        %v4665 = vsel %vm372, %v4653, %v4655
        %v4666 = vsel %vm372, %v4655, %v4657
        %v4667 = vsel %vm372, %v4657, %v4659
        %v4668 = vsel %vm372, %v4659, %v4661
        %v4669 = vsel %vm372, %v4661, %v4663
        %v4678 = vsel %vm372, %v4663, %v4651
        %v4679 = vld [vmem:[#allocation10] ss:$8 sm:$0xf]
        %v4680 = vld [vmem:[#allocation10] ss:$8 sm:$0xf0]
        %v4681 = vor.u32 %v4679, %v4680
        %v4683 = vlaneseq
        %v4684 = vshrl.u32 %v4683, 7
        %v4685 = vsub.s32 0, %v4684
        %v4686 = vrot.slane %v4681, %v4685
        %v4687 = vlaneseq
        %v4688 = vshrl.u32 %v4687, 7
        %v4689 = vsub.s32 1, %v4688
        %v4690 = vrot.slane %v4681, %v4689
        %v4691 = vlaneseq
        %v4692 = vshrl.u32 %v4691, 7
        %v4693 = vsub.s32 2, %v4692
        %v4694 = vrot.slane %v4681, %v4693
        %v4695 = vlaneseq
        %v4696 = vshrl.u32 %v4695, 7
        %v4697 = vsub.s32 3, %v4696
        %v4698 = vrot.slane %v4681, %v4697
        %v4699 = vlaneseq
        %v4700 = vshrl.u32 %v4699, 7
        %v4701 = vsub.s32 4, %v4700
        %v4702 = vrot.slane %v4681, %v4701
        %v4703 = vlaneseq
        %v4704 = vshrl.u32 %v4703, 7
        %v4705 = vsub.s32 5, %v4704
        %v4706 = vrot.slane %v4681, %v4705
        %v4707 = vlaneseq
        %v4708 = vshrl.u32 %v4707, 7
        %v4709 = vsub.s32 6, %v4708
        %v4710 = vrot.slane %v4681, %v4709
        %v4718 = vmul.f32 %v4664, %v4686
        %v4719 = vmul.f32 %v4665, %v4690
        %v4720 = vmul.f32 %v4666, %v4694
        %v4721 = vmul.f32 %v4667, %v4698
        %v4722 = vmul.f32 %v4668, %v4702
        %v4723 = vmul.f32 %v4669, %v4706
        %v4724 = vmul.f32 %v4678, %v4710
        %v4725 = vadd.f32 %v4630, %v4718
        %v4726 = vadd.f32 %v4632, %v4719
        %v4727 = vadd.f32 %v4634, %v4720
        %v4728 = vadd.f32 %v4636, %v4721
        %v4729 = vadd.f32 %v4638, %v4722
        %v4730 = vadd.f32 %v4640, %v4723
        %v4731 = vadd.f32 %v4642, %v4724
        %4732 = vrot.lane.b32.xlu0 %v4630, 123
        %v4733 = vpop.permute.xlu0 %4732
        %4734 = vrot.lane.b32.xlu0 %v4632, 123
        %v4735 = vpop.permute.xlu0 %4734
        %4736 = vrot.lane.b32.xlu0 %v4634, 123
        %v4737 = vpop.permute.xlu0 %4736
        %4738 = vrot.lane.b32.xlu0 %v4636, 123
        %v4739 = vpop.permute.xlu0 %4738
        %4740 = vrot.lane.b32.xlu0 %v4638, 123
        %v4741 = vpop.permute.xlu0 %4740
        %4742 = vrot.lane.b32.xlu0 %v4640, 123
        %v4743 = vpop.permute.xlu0 %4742
        %4744 = vrot.lane.b32.xlu0 %v4642, 123
        %v4745 = vpop.permute.xlu0 %4744
        %v4746 = vsel %vm455, %v4733, %v4735
        %v4747 = vsel %vm455, %v4735, %v4737
        %v4748 = vsel %vm455, %v4737, %v4739
        %v4749 = vsel %vm455, %v4739, %v4741
        %v4750 = vsel %vm455, %v4741, %v4743
        %v4751 = vsel %vm455, %v4743, %v4745
        %v4760 = vsel %vm455, %v4745, %v4733
        %s4761 = scalar_lea.vmem [#allocation10], 1
        %v4762 = vld [vmem:[%s4761] ss:$8 sm:$0xf]
        %v4763 = vld [vmem:[%s4761] ss:$8 sm:$0xf0]
        %v4764 = vor.u32 %v4762, %v4763
        %v4766 = vlaneseq
        %v4767 = vshrl.u32 %v4766, 7
        %v4768 = vsub.s32 0, %v4767
        %v4769 = vrot.slane %v4764, %v4768
        %v4770 = vlaneseq
        %v4771 = vshrl.u32 %v4770, 7
        %v4772 = vsub.s32 1, %v4771
        %v4773 = vrot.slane %v4764, %v4772
        %v4774 = vlaneseq
        %v4775 = vshrl.u32 %v4774, 7
        %v4776 = vsub.s32 2, %v4775
        %v4777 = vrot.slane %v4764, %v4776
        %v4778 = vlaneseq
        %v4779 = vshrl.u32 %v4778, 7
        %v4780 = vsub.s32 3, %v4779
        %v4781 = vrot.slane %v4764, %v4780
        %v4782 = vlaneseq
        %v4783 = vshrl.u32 %v4782, 7
        %v4784 = vsub.s32 4, %v4783
        %v4785 = vrot.slane %v4764, %v4784
        %v4786 = vlaneseq
        %v4787 = vshrl.u32 %v4786, 7
        %v4788 = vsub.s32 5, %v4787
        %v4789 = vrot.slane %v4764, %v4788
        %v4790 = vlaneseq
        %v4791 = vshrl.u32 %v4790, 7
        %v4792 = vsub.s32 6, %v4791
        %v4793 = vrot.slane %v4764, %v4792
        %v4801 = vmul.f32 %v4746, %v4769
        %v4802 = vmul.f32 %v4747, %v4773
        %v4803 = vmul.f32 %v4748, %v4777
        %v4804 = vmul.f32 %v4749, %v4781
        %v4805 = vmul.f32 %v4750, %v4785
        %v4806 = vmul.f32 %v4751, %v4789
        %v4807 = vmul.f32 %v4760, %v4793
        %v4808 = vadd.f32 %v4725, %v4801
        %v4809 = vadd.f32 %v4726, %v4802
        %v4810 = vadd.f32 %v4727, %v4803
        %v4811 = vadd.f32 %v4728, %v4804
        %v4812 = vadd.f32 %v4729, %v4805
        %v4813 = vadd.f32 %v4730, %v4806
        %v4814 = vadd.f32 %v4731, %v4807
        %4815 = vrot.lane.b32.xlu0 %v4630, 124
        %v4816 = vpop.permute.xlu0 %4815
        %4817 = vrot.lane.b32.xlu0 %v4632, 124
        %v4818 = vpop.permute.xlu0 %4817
        %4819 = vrot.lane.b32.xlu0 %v4634, 124
        %v4820 = vpop.permute.xlu0 %4819
        %4821 = vrot.lane.b32.xlu0 %v4636, 124
        %v4822 = vpop.permute.xlu0 %4821
        %4823 = vrot.lane.b32.xlu0 %v4638, 124
        %v4824 = vpop.permute.xlu0 %4823
        %4825 = vrot.lane.b32.xlu0 %v4640, 124
        %v4826 = vpop.permute.xlu0 %4825
        %4827 = vrot.lane.b32.xlu0 %v4642, 124
        %v4828 = vpop.permute.xlu0 %4827
        %v4829 = vsel %vm539, %v4816, %v4818
        %v4830 = vsel %vm539, %v4818, %v4820
        %v4831 = vsel %vm539, %v4820, %v4822
        %v4832 = vsel %vm539, %v4822, %v4824
        %v4833 = vsel %vm539, %v4824, %v4826
        %v4834 = vsel %vm539, %v4826, %v4828
        %v4843 = vsel %vm539, %v4828, %v4816
        %s4844 = scalar_lea.vmem [#allocation10], 2
        %v4845 = vld [vmem:[%s4844] ss:$8 sm:$0xf]
        %v4846 = vld [vmem:[%s4844] ss:$8 sm:$0xf0]
        %v4847 = vor.u32 %v4845, %v4846
        %v4849 = vlaneseq
        %v4850 = vshrl.u32 %v4849, 7
        %v4851 = vsub.s32 0, %v4850
        %v4852 = vrot.slane %v4847, %v4851
        %v4853 = vlaneseq
        %v4854 = vshrl.u32 %v4853, 7
        %v4855 = vsub.s32 1, %v4854
        %v4856 = vrot.slane %v4847, %v4855
        %v4857 = vlaneseq
        %v4858 = vshrl.u32 %v4857, 7
        %v4859 = vsub.s32 2, %v4858
        %v4860 = vrot.slane %v4847, %v4859
        %v4861 = vlaneseq
        %v4862 = vshrl.u32 %v4861, 7
        %v4863 = vsub.s32 3, %v4862
        %v4864 = vrot.slane %v4847, %v4863
        %v4865 = vlaneseq
        %v4866 = vshrl.u32 %v4865, 7
        %v4867 = vsub.s32 4, %v4866
        %v4868 = vrot.slane %v4847, %v4867
        %v4869 = vlaneseq
        %v4870 = vshrl.u32 %v4869, 7
        %v4871 = vsub.s32 5, %v4870
        %v4872 = vrot.slane %v4847, %v4871
        %v4873 = vlaneseq
        %v4874 = vshrl.u32 %v4873, 7
        %v4875 = vsub.s32 6, %v4874
        %v4876 = vrot.slane %v4847, %v4875
        %v4884 = vmul.f32 %v4829, %v4852
        %v4885 = vmul.f32 %v4830, %v4856
        %v4886 = vmul.f32 %v4831, %v4860
        %v4887 = vmul.f32 %v4832, %v4864
        %v4888 = vmul.f32 %v4833, %v4868
        %v4889 = vmul.f32 %v4834, %v4872
        %v4890 = vmul.f32 %v4843, %v4876
        %v4891 = vadd.f32 %v4808, %v4884
        %v4892 = vadd.f32 %v4809, %v4885
        %v4893 = vadd.f32 %v4810, %v4886
        %v4894 = vadd.f32 %v4811, %v4887
        %v4895 = vadd.f32 %v4812, %v4888
        %v4896 = vadd.f32 %v4813, %v4889
        %v4897 = vadd.f32 %v4814, %v4890
        %4898 = vrot.lane.b32.xlu0 %v4630, 125
        %v4899 = vpop.permute.xlu0 %4898
        %4900 = vrot.lane.b32.xlu0 %v4632, 125
        %v4901 = vpop.permute.xlu0 %4900
        %4902 = vrot.lane.b32.xlu0 %v4634, 125
        %v4903 = vpop.permute.xlu0 %4902
        %4904 = vrot.lane.b32.xlu0 %v4636, 125
        %v4905 = vpop.permute.xlu0 %4904
        %4906 = vrot.lane.b32.xlu0 %v4638, 125
        %v4907 = vpop.permute.xlu0 %4906
        %4908 = vrot.lane.b32.xlu0 %v4640, 125
        %v4909 = vpop.permute.xlu0 %4908
        %4910 = vrot.lane.b32.xlu0 %v4642, 125
        %v4911 = vpop.permute.xlu0 %4910
        %v4912 = vsel %vm623, %v4899, %v4901
        %v4913 = vsel %vm623, %v4901, %v4903
        %v4914 = vsel %vm623, %v4903, %v4905
        %v4915 = vsel %vm623, %v4905, %v4907
        %v4916 = vsel %vm623, %v4907, %v4909
        %v4917 = vsel %vm623, %v4909, %v4911
        %v4926 = vsel %vm623, %v4911, %v4899
        %s4927 = scalar_lea.vmem [#allocation10], 3
        %v4928 = vld [vmem:[%s4927] ss:$8 sm:$0xf]
        %v4929 = vld [vmem:[%s4927] ss:$8 sm:$0xf0]
        %v4930 = vor.u32 %v4928, %v4929
        %v4932 = vlaneseq
        %v4933 = vshrl.u32 %v4932, 7
        %v4934 = vsub.s32 0, %v4933
        %v4935 = vrot.slane %v4930, %v4934
        %v4936 = vlaneseq
        %v4937 = vshrl.u32 %v4936, 7
        %v4938 = vsub.s32 1, %v4937
        %v4939 = vrot.slane %v4930, %v4938
        %v4940 = vlaneseq
        %v4941 = vshrl.u32 %v4940, 7
        %v4942 = vsub.s32 2, %v4941
        %v4943 = vrot.slane %v4930, %v4942
        %v4944 = vlaneseq
        %v4945 = vshrl.u32 %v4944, 7
        %v4946 = vsub.s32 3, %v4945
        %v4947 = vrot.slane %v4930, %v4946
        %v4948 = vlaneseq
        %v4949 = vshrl.u32 %v4948, 7
        %v4950 = vsub.s32 4, %v4949
        %v4951 = vrot.slane %v4930, %v4950
        %v4952 = vlaneseq
        %v4953 = vshrl.u32 %v4952, 7
        %v4954 = vsub.s32 5, %v4953
        %v4955 = vrot.slane %v4930, %v4954
        %v4956 = vlaneseq
        %v4957 = vshrl.u32 %v4956, 7
        %v4958 = vsub.s32 6, %v4957
        %v4959 = vrot.slane %v4930, %v4958
        %v4967 = vmul.f32 %v4912, %v4935
        %v4968 = vmul.f32 %v4913, %v4939
        %v4969 = vmul.f32 %v4914, %v4943
        %v4970 = vmul.f32 %v4915, %v4947
        %v4971 = vmul.f32 %v4916, %v4951
        %v4972 = vmul.f32 %v4917, %v4955
        %v4973 = vmul.f32 %v4926, %v4959
        %v4974 = vadd.f32 %v4891, %v4967
        %v4975 = vadd.f32 %v4892, %v4968
        %v4976 = vadd.f32 %v4893, %v4969
        %v4977 = vadd.f32 %v4894, %v4970
        %v4978 = vadd.f32 %v4895, %v4971
        %v4979 = vadd.f32 %v4896, %v4972
        %v4980 = vadd.f32 %v4897, %v4973
        %4981 = vrot.lane.b32.xlu0 %v4630, 126
        %v4982 = vpop.permute.xlu0 %4981
        %4983 = vrot.lane.b32.xlu0 %v4632, 126
        %v4984 = vpop.permute.xlu0 %4983
        %4985 = vrot.lane.b32.xlu0 %v4634, 126
        %v4986 = vpop.permute.xlu0 %4985
        %4987 = vrot.lane.b32.xlu0 %v4636, 126
        %v4988 = vpop.permute.xlu0 %4987
        %4989 = vrot.lane.b32.xlu0 %v4638, 126
        %v4990 = vpop.permute.xlu0 %4989
        %4991 = vrot.lane.b32.xlu0 %v4640, 126
        %v4992 = vpop.permute.xlu0 %4991
        %4993 = vrot.lane.b32.xlu0 %v4642, 126
        %v4994 = vpop.permute.xlu0 %4993
        %v4995 = vsel %vm707, %v4982, %v4984
        %v4996 = vsel %vm707, %v4984, %v4986
        %v4997 = vsel %vm707, %v4986, %v4988
        %v4998 = vsel %vm707, %v4988, %v4990
        %v4999 = vsel %vm707, %v4990, %v4992
        %v5000 = vsel %vm707, %v4992, %v4994
        %v5009 = vsel %vm707, %v4994, %v4982
        %s5010 = scalar_lea.vmem [#allocation10], 4
        %v5011 = vld [vmem:[%s5010] ss:$8 sm:$0xf]
        %v5012 = vld [vmem:[%s5010] ss:$8 sm:$0xf0]
        %v5013 = vor.u32 %v5011, %v5012
        %v5015 = vlaneseq
        %v5016 = vshrl.u32 %v5015, 7
        %v5017 = vsub.s32 0, %v5016
        %v5018 = vrot.slane %v5013, %v5017
        %v5019 = vlaneseq
        %v5020 = vshrl.u32 %v5019, 7
        %v5021 = vsub.s32 1, %v5020
        %v5022 = vrot.slane %v5013, %v5021
        %v5023 = vlaneseq
        %v5024 = vshrl.u32 %v5023, 7
        %v5025 = vsub.s32 2, %v5024
        %v5026 = vrot.slane %v5013, %v5025
        %v5027 = vlaneseq
        %v5028 = vshrl.u32 %v5027, 7
        %v5029 = vsub.s32 3, %v5028
        %v5030 = vrot.slane %v5013, %v5029
        %v5031 = vlaneseq
        %v5032 = vshrl.u32 %v5031, 7
        %v5033 = vsub.s32 4, %v5032
        %v5034 = vrot.slane %v5013, %v5033
        %v5035 = vlaneseq
        %v5036 = vshrl.u32 %v5035, 7
        %v5037 = vsub.s32 5, %v5036
        %v5038 = vrot.slane %v5013, %v5037
        %v5039 = vlaneseq
        %v5040 = vshrl.u32 %v5039, 7
        %v5041 = vsub.s32 6, %v5040
        %v5042 = vrot.slane %v5013, %v5041
        %v5050 = vmul.f32 %v4995, %v5018
        %v5051 = vmul.f32 %v4996, %v5022
        %v5052 = vmul.f32 %v4997, %v5026
        %v5053 = vmul.f32 %v4998, %v5030
        %v5054 = vmul.f32 %v4999, %v5034
        %v5055 = vmul.f32 %v5000, %v5038
        %v5056 = vmul.f32 %v5009, %v5042
        %v5057 = vadd.f32 %v4974, %v5050
        %v5058 = vadd.f32 %v4975, %v5051
        %v5059 = vadd.f32 %v4976, %v5052
        %v5060 = vadd.f32 %v4977, %v5053
        %v5061 = vadd.f32 %v4978, %v5054
        %v5062 = vadd.f32 %v4979, %v5055
        %v5063 = vadd.f32 %v4980, %v5056
        %5064 = vrot.lane.b32.xlu0 %v4630, 127
        %v5065 = vpop.permute.xlu0 %5064
        %5066 = vrot.lane.b32.xlu0 %v4632, 127
        %v5067 = vpop.permute.xlu0 %5066
        %5068 = vrot.lane.b32.xlu0 %v4634, 127
        %v5069 = vpop.permute.xlu0 %5068
        %5070 = vrot.lane.b32.xlu0 %v4636, 127
        %v5071 = vpop.permute.xlu0 %5070
        %5072 = vrot.lane.b32.xlu0 %v4638, 127
        %v5073 = vpop.permute.xlu0 %5072
        %5074 = vrot.lane.b32.xlu0 %v4640, 127
        %v5075 = vpop.permute.xlu0 %5074
        %5076 = vrot.lane.b32.xlu0 %v4642, 127
        %v5077 = vpop.permute.xlu0 %5076
        %v5078 = vsel %vm791, %v5065, %v5067
        %v5079 = vsel %vm791, %v5067, %v5069
        %v5080 = vsel %vm791, %v5069, %v5071
        %v5081 = vsel %vm791, %v5071, %v5073
        %v5082 = vsel %vm791, %v5073, %v5075
        %v5083 = vsel %vm791, %v5075, %v5077
        %v5092 = vsel %vm791, %v5077, %v5065
        %s5093 = scalar_lea.vmem [#allocation10], 5
        %v5094 = vld [vmem:[%s5093] ss:$8 sm:$0xf]
        %v5095 = vld [vmem:[%s5093] ss:$8 sm:$0xf0]
        %v5096 = vor.u32 %v5094, %v5095
        %v5098 = vlaneseq
        %v5099 = vshrl.u32 %v5098, 7
        %v5100 = vsub.s32 0, %v5099
        %v5101 = vrot.slane %v5096, %v5100
        %v5102 = vlaneseq
        %v5103 = vshrl.u32 %v5102, 7
        %v5104 = vsub.s32 1, %v5103
        %v5105 = vrot.slane %v5096, %v5104
        %v5106 = vlaneseq
        %v5107 = vshrl.u32 %v5106, 7
        %v5108 = vsub.s32 2, %v5107
        %v5109 = vrot.slane %v5096, %v5108
        %v5110 = vlaneseq
        %v5111 = vshrl.u32 %v5110, 7
        %v5112 = vsub.s32 3, %v5111
        %v5113 = vrot.slane %v5096, %v5112
        %v5114 = vlaneseq
        %v5115 = vshrl.u32 %v5114, 7
        %v5116 = vsub.s32 4, %v5115
        %v5117 = vrot.slane %v5096, %v5116
        %v5118 = vlaneseq
        %v5119 = vshrl.u32 %v5118, 7
        %v5120 = vsub.s32 5, %v5119
        %v5121 = vrot.slane %v5096, %v5120
        %v5122 = vlaneseq
        %v5123 = vshrl.u32 %v5122, 7
        %v5124 = vsub.s32 6, %v5123
        %v5125 = vrot.slane %v5096, %v5124
        %v5133 = vmul.f32 %v5078, %v5101
        %v5134 = vmul.f32 %v5079, %v5105
        %v5135 = vmul.f32 %v5080, %v5109
        %v5136 = vmul.f32 %v5081, %v5113
        %v5137 = vmul.f32 %v5082, %v5117
        %v5138 = vmul.f32 %v5083, %v5121
        %v5139 = vmul.f32 %v5092, %v5125
        %v5140 = vadd.f32 %v5057, %v5133
        %v5141 = vadd.f32 %v5058, %v5134
        %v5142 = vadd.f32 %v5059, %v5135
        %v5143 = vadd.f32 %v5060, %v5136
        %v5144 = vadd.f32 %v5061, %v5137
        %v5145 = vadd.f32 %v5062, %v5138
        %v5146 = vadd.f32 %v5063, %v5139
        %5147 = vrot.lane.b32.xlu0 %v4642, 1
        %v5148 = vpop.permute.xlu0 %5147
        %5150 = vrot.lane.b32.xlu0 %v4630, 1
        %v5151 = vpop.permute.xlu0 %5150
        %5152 = vrot.lane.b32.xlu0 %v4632, 1
        %v5153 = vpop.permute.xlu0 %5152
        %5154 = vrot.lane.b32.xlu0 %v4634, 1
        %v5155 = vpop.permute.xlu0 %5154
        %5156 = vrot.lane.b32.xlu0 %v4636, 1
        %v5157 = vpop.permute.xlu0 %5156
        %5158 = vrot.lane.b32.xlu0 %v4638, 1
        %v5159 = vpop.permute.xlu0 %5158
        %5160 = vrot.lane.b32.xlu0 %v4640, 1
        %v5161 = vpop.permute.xlu0 %5160
        %v5162 = vsel %vm876, %v5151, %v5153
        %v5163 = vsel %vm876, %v5153, %v5155
        %v5164 = vsel %vm876, %v5155, %v5157
        %v5165 = vsel %vm876, %v5157, %v5159
        %v5166 = vsel %vm876, %v5159, %v5161
        %v5167 = vsel %vm876, %v5161, %v5148
        %v5175 = vsel %vm876, %v5148, %v5151
        %s5176 = scalar_lea.vmem [#allocation10], 7
        %v5177 = vld [vmem:[%s5176] ss:$8 sm:$0xf]
        %v5178 = vld [vmem:[%s5176] ss:$8 sm:$0xf0]
        %v5179 = vor.u32 %v5177, %v5178
        %v5181 = vlaneseq
        %v5182 = vshrl.u32 %v5181, 7
        %v5183 = vsub.s32 0, %v5182
        %v5184 = vrot.slane %v5179, %v5183
        %v5185 = vlaneseq
        %v5186 = vshrl.u32 %v5185, 7
        %v5187 = vsub.s32 1, %v5186
        %v5188 = vrot.slane %v5179, %v5187
        %v5189 = vlaneseq
        %v5190 = vshrl.u32 %v5189, 7
        %v5191 = vsub.s32 2, %v5190
        %v5192 = vrot.slane %v5179, %v5191
        %v5193 = vlaneseq
        %v5194 = vshrl.u32 %v5193, 7
        %v5195 = vsub.s32 3, %v5194
        %v5196 = vrot.slane %v5179, %v5195
        %v5197 = vlaneseq
        %v5198 = vshrl.u32 %v5197, 7
        %v5199 = vsub.s32 4, %v5198
        %v5200 = vrot.slane %v5179, %v5199
        %v5201 = vlaneseq
        %v5202 = vshrl.u32 %v5201, 7
        %v5203 = vsub.s32 5, %v5202
        %v5204 = vrot.slane %v5179, %v5203
        %v5205 = vlaneseq
        %v5206 = vshrl.u32 %v5205, 7
        %v5207 = vsub.s32 6, %v5206
        %v5208 = vrot.slane %v5179, %v5207
        %v5216 = vmul.f32 %v5175, %v5184
        %v5217 = vmul.f32 %v5162, %v5188
        %v5218 = vmul.f32 %v5163, %v5192
        %v5219 = vmul.f32 %v5164, %v5196
        %v5220 = vmul.f32 %v5165, %v5200
        %v5221 = vmul.f32 %v5166, %v5204
        %v5222 = vmul.f32 %v5167, %v5208
        %v5223 = vadd.f32 %v5140, %v5216
        %v5224 = vadd.f32 %v5141, %v5217
        %v5225 = vadd.f32 %v5142, %v5218
        %v5226 = vadd.f32 %v5143, %v5219
        %v5227 = vadd.f32 %v5144, %v5220
        %v5228 = vadd.f32 %v5145, %v5221
        %v5229 = vadd.f32 %v5146, %v5222
        %5230 = vrot.lane.b32.xlu0 %v4642, 2
        %v5231 = vpop.permute.xlu0 %5230
        %5233 = vrot.lane.b32.xlu0 %v4630, 2
        %v5234 = vpop.permute.xlu0 %5233
        %5235 = vrot.lane.b32.xlu0 %v4632, 2
        %v5236 = vpop.permute.xlu0 %5235
        %5237 = vrot.lane.b32.xlu0 %v4634, 2
        %v5238 = vpop.permute.xlu0 %5237
        %5239 = vrot.lane.b32.xlu0 %v4636, 2
        %v5240 = vpop.permute.xlu0 %5239
        %5241 = vrot.lane.b32.xlu0 %v4638, 2
        %v5242 = vpop.permute.xlu0 %5241
        %5243 = vrot.lane.b32.xlu0 %v4640, 2
        %v5244 = vpop.permute.xlu0 %5243
        %v5245 = vsel %vm960, %v5234, %v5236
        %v5246 = vsel %vm960, %v5236, %v5238
        %v5247 = vsel %vm960, %v5238, %v5240
        %v5248 = vsel %vm960, %v5240, %v5242
        %v5249 = vsel %vm960, %v5242, %v5244
        %v5250 = vsel %vm960, %v5244, %v5231
        %v5258 = vsel %vm960, %v5231, %v5234
        %s5259 = scalar_lea.vmem [#allocation10], 56
        %v5260 = vld [vmem:[%s5259] ss:$8 sm:$0xf]
        %v5261 = vld [vmem:[%s5259] ss:$8 sm:$0xf0]
        %v5262 = vor.u32 %v5260, %v5261
        %v5264 = vlaneseq
        %v5265 = vshrl.u32 %v5264, 7
        %v5266 = vsub.s32 0, %v5265
        %v5267 = vrot.slane %v5262, %v5266
        %v5268 = vlaneseq
        %v5269 = vshrl.u32 %v5268, 7
        %v5270 = vsub.s32 1, %v5269
        %v5271 = vrot.slane %v5262, %v5270
        %v5272 = vlaneseq
        %v5273 = vshrl.u32 %v5272, 7
        %v5274 = vsub.s32 2, %v5273
        %v5275 = vrot.slane %v5262, %v5274
        %v5276 = vlaneseq
        %v5277 = vshrl.u32 %v5276, 7
        %v5278 = vsub.s32 3, %v5277
        %v5279 = vrot.slane %v5262, %v5278
        %v5280 = vlaneseq
        %v5281 = vshrl.u32 %v5280, 7
        %v5282 = vsub.s32 4, %v5281
        %v5283 = vrot.slane %v5262, %v5282
        %v5284 = vlaneseq
        %v5285 = vshrl.u32 %v5284, 7
        %v5286 = vsub.s32 5, %v5285
        %v5287 = vrot.slane %v5262, %v5286
        %v5288 = vlaneseq
        %v5289 = vshrl.u32 %v5288, 7
        %v5290 = vsub.s32 6, %v5289
        %v5291 = vrot.slane %v5262, %v5290
        %v5299 = vmul.f32 %v5258, %v5267
        %v5300 = vmul.f32 %v5245, %v5271
        %v5301 = vmul.f32 %v5246, %v5275
        %v5302 = vmul.f32 %v5247, %v5279
        %v5303 = vmul.f32 %v5248, %v5283
        %v5304 = vmul.f32 %v5249, %v5287
        %v5305 = vmul.f32 %v5250, %v5291
        %v5306 = vadd.f32 %v5223, %v5299
        %v5307 = vadd.f32 %v5224, %v5300
        %v5308 = vadd.f32 %v5225, %v5301
        %v5309 = vadd.f32 %v5226, %v5302
        %v5310 = vadd.f32 %v5227, %v5303
        %v5311 = vadd.f32 %v5228, %v5304
        %v5312 = vadd.f32 %v5229, %v5305
        %5313 = vrot.lane.b32.xlu0 %v4642, 3
        %v5314 = vpop.permute.xlu0 %5313
        %5316 = vrot.lane.b32.xlu0 %v4630, 3
        %v5317 = vpop.permute.xlu0 %5316
        %5318 = vrot.lane.b32.xlu0 %v4632, 3
        %v5319 = vpop.permute.xlu0 %5318
        %5320 = vrot.lane.b32.xlu0 %v4634, 3
        %v5321 = vpop.permute.xlu0 %5320
        %5322 = vrot.lane.b32.xlu0 %v4636, 3
        %v5323 = vpop.permute.xlu0 %5322
        %5324 = vrot.lane.b32.xlu0 %v4638, 3
        %v5325 = vpop.permute.xlu0 %5324
        %5326 = vrot.lane.b32.xlu0 %v4640, 3
        %v5327 = vpop.permute.xlu0 %5326
        %v5328 = vsel %vm1044, %v5317, %v5319
        %v5329 = vsel %vm1044, %v5319, %v5321
        %v5330 = vsel %vm1044, %v5321, %v5323
        %v5331 = vsel %vm1044, %v5323, %v5325
        %v5332 = vsel %vm1044, %v5325, %v5327
        %v5333 = vsel %vm1044, %v5327, %v5314
        %v5341 = vsel %vm1044, %v5314, %v5317
        %s5342 = scalar_lea.vmem [#allocation10], 57
        %v5343 = vld [vmem:[%s5342] ss:$8 sm:$0xf]
        %v5344 = vld [vmem:[%s5342] ss:$8 sm:$0xf0]
        %v5345 = vor.u32 %v5343, %v5344
        %v5347 = vlaneseq
        %v5348 = vshrl.u32 %v5347, 7
        %v5349 = vsub.s32 0, %v5348
        %v5350 = vrot.slane %v5345, %v5349
        %v5351 = vlaneseq
        %v5352 = vshrl.u32 %v5351, 7
        %v5353 = vsub.s32 1, %v5352
        %v5354 = vrot.slane %v5345, %v5353
        %v5355 = vlaneseq
        %v5356 = vshrl.u32 %v5355, 7
        %v5357 = vsub.s32 2, %v5356
        %v5358 = vrot.slane %v5345, %v5357
        %v5359 = vlaneseq
        %v5360 = vshrl.u32 %v5359, 7
        %v5361 = vsub.s32 3, %v5360
        %v5362 = vrot.slane %v5345, %v5361
        %v5363 = vlaneseq
        %v5364 = vshrl.u32 %v5363, 7
        %v5365 = vsub.s32 4, %v5364
        %v5366 = vrot.slane %v5345, %v5365
        %v5367 = vlaneseq
        %v5368 = vshrl.u32 %v5367, 7
        %v5369 = vsub.s32 5, %v5368
        %v5370 = vrot.slane %v5345, %v5369
        %v5371 = vlaneseq
        %v5372 = vshrl.u32 %v5371, 7
        %v5373 = vsub.s32 6, %v5372
        %v5374 = vrot.slane %v5345, %v5373
        %v5382 = vmul.f32 %v5341, %v5350
        %v5383 = vmul.f32 %v5328, %v5354
        %v5384 = vmul.f32 %v5329, %v5358
        %v5385 = vmul.f32 %v5330, %v5362
        %v5386 = vmul.f32 %v5331, %v5366
        %v5387 = vmul.f32 %v5332, %v5370
        %v5388 = vmul.f32 %v5333, %v5374
        %v5389 = vadd.f32 %v5306, %v5382
        %v5390 = vadd.f32 %v5307, %v5383
        %v5391 = vadd.f32 %v5308, %v5384
        %v5392 = vadd.f32 %v5309, %v5385
        %v5393 = vadd.f32 %v5310, %v5386
        %v5394 = vadd.f32 %v5311, %v5387
        %v5395 = vadd.f32 %v5312, %v5388
        %5396 = vrot.lane.b32.xlu0 %v4642, 4
        %v5397 = vpop.permute.xlu0 %5396
        %5399 = vrot.lane.b32.xlu0 %v4630, 4
        %v5400 = vpop.permute.xlu0 %5399
        %5401 = vrot.lane.b32.xlu0 %v4632, 4
        %v5402 = vpop.permute.xlu0 %5401
        %5403 = vrot.lane.b32.xlu0 %v4634, 4
        %v5404 = vpop.permute.xlu0 %5403
        %5405 = vrot.lane.b32.xlu0 %v4636, 4
        %v5406 = vpop.permute.xlu0 %5405
        %5407 = vrot.lane.b32.xlu0 %v4638, 4
        %v5408 = vpop.permute.xlu0 %5407
        %5409 = vrot.lane.b32.xlu0 %v4640, 4
        %v5410 = vpop.permute.xlu0 %5409
        %v5411 = vsel %vm1128, %v5400, %v5402
        %v5412 = vsel %vm1128, %v5402, %v5404
        %v5413 = vsel %vm1128, %v5404, %v5406
        %v5414 = vsel %vm1128, %v5406, %v5408
        %v5415 = vsel %vm1128, %v5408, %v5410
        %v5416 = vsel %vm1128, %v5410, %v5397
        %v5424 = vsel %vm1128, %v5397, %v5400
        %s5425 = scalar_lea.vmem [#allocation10], 58
        %v5426 = vld [vmem:[%s5425] ss:$8 sm:$0xf]
        %v5427 = vld [vmem:[%s5425] ss:$8 sm:$0xf0]
        %v5428 = vor.u32 %v5426, %v5427
        %v5430 = vlaneseq
        %v5431 = vshrl.u32 %v5430, 7
        %v5432 = vsub.s32 0, %v5431
        %v5433 = vrot.slane %v5428, %v5432
        %v5434 = vlaneseq
        %v5435 = vshrl.u32 %v5434, 7
        %v5436 = vsub.s32 1, %v5435
        %v5437 = vrot.slane %v5428, %v5436
        %v5438 = vlaneseq
        %v5439 = vshrl.u32 %v5438, 7
        %v5440 = vsub.s32 2, %v5439
        %v5441 = vrot.slane %v5428, %v5440
        %v5442 = vlaneseq
        %v5443 = vshrl.u32 %v5442, 7
        %v5444 = vsub.s32 3, %v5443
        %v5445 = vrot.slane %v5428, %v5444
        %v5446 = vlaneseq
        %v5447 = vshrl.u32 %v5446, 7
        %v5448 = vsub.s32 4, %v5447
        %v5449 = vrot.slane %v5428, %v5448
        %v5450 = vlaneseq
        %v5451 = vshrl.u32 %v5450, 7
        %v5452 = vsub.s32 5, %v5451
        %v5453 = vrot.slane %v5428, %v5452
        %v5454 = vlaneseq
        %v5455 = vshrl.u32 %v5454, 7
        %v5456 = vsub.s32 6, %v5455
        %v5457 = vrot.slane %v5428, %v5456
        %v5465 = vmul.f32 %v5424, %v5433
        %v5466 = vmul.f32 %v5411, %v5437
        %v5467 = vmul.f32 %v5412, %v5441
        %v5468 = vmul.f32 %v5413, %v5445
        %v5469 = vmul.f32 %v5414, %v5449
        %v5470 = vmul.f32 %v5415, %v5453
        %v5471 = vmul.f32 %v5416, %v5457
        %v5472 = vadd.f32 %v5389, %v5465
        %v5473 = vadd.f32 %v5390, %v5466
        %v5474 = vadd.f32 %v5391, %v5467
        %v5475 = vadd.f32 %v5392, %v5468
        %v5476 = vadd.f32 %v5393, %v5469
        %v5477 = vadd.f32 %v5394, %v5470
        %v5478 = vadd.f32 %v5395, %v5471
        %5479 = vrot.lane.b32.xlu0 %v4642, 5
        %v5480 = vpop.permute.xlu0 %5479
        %5482 = vrot.lane.b32.xlu0 %v4630, 5
        %v5483 = vpop.permute.xlu0 %5482
        %5484 = vrot.lane.b32.xlu0 %v4632, 5
        %v5485 = vpop.permute.xlu0 %5484
        %5486 = vrot.lane.b32.xlu0 %v4634, 5
        %v5487 = vpop.permute.xlu0 %5486
        %5488 = vrot.lane.b32.xlu0 %v4636, 5
        %v5489 = vpop.permute.xlu0 %5488
        %5490 = vrot.lane.b32.xlu0 %v4638, 5
        %v5491 = vpop.permute.xlu0 %5490
        %5492 = vrot.lane.b32.xlu0 %v4640, 5
        %v5493 = vpop.permute.xlu0 %5492
        %v5494 = vsel %vm1212, %v5483, %v5485
        %v5495 = vsel %vm1212, %v5485, %v5487
        %v5496 = vsel %vm1212, %v5487, %v5489
        %v5497 = vsel %vm1212, %v5489, %v5491
        %v5498 = vsel %vm1212, %v5491, %v5493
        %v5499 = vsel %vm1212, %v5493, %v5480
        %v5507 = vsel %vm1212, %v5480, %v5483
        %s5508 = scalar_lea.vmem [#allocation10], 59
        %v5509 = vld [vmem:[%s5508] ss:$8 sm:$0xf]
        %v5510 = vld [vmem:[%s5508] ss:$8 sm:$0xf0]
        %v5511 = vor.u32 %v5509, %v5510
        %v5513 = vlaneseq
        %v5514 = vshrl.u32 %v5513, 7
        %v5515 = vsub.s32 0, %v5514
        %v5516 = vrot.slane %v5511, %v5515
        %v5517 = vlaneseq
        %v5518 = vshrl.u32 %v5517, 7
        %v5519 = vsub.s32 1, %v5518
        %v5520 = vrot.slane %v5511, %v5519
        %v5521 = vlaneseq
        %v5522 = vshrl.u32 %v5521, 7
        %v5523 = vsub.s32 2, %v5522
        %v5524 = vrot.slane %v5511, %v5523
        %v5525 = vlaneseq
        %v5526 = vshrl.u32 %v5525, 7
        %v5527 = vsub.s32 3, %v5526
        %v5528 = vrot.slane %v5511, %v5527
        %v5529 = vlaneseq
        %v5530 = vshrl.u32 %v5529, 7
        %v5531 = vsub.s32 4, %v5530
        %v5532 = vrot.slane %v5511, %v5531
        %v5533 = vlaneseq
        %v5534 = vshrl.u32 %v5533, 7
        %v5535 = vsub.s32 5, %v5534
        %v5536 = vrot.slane %v5511, %v5535
        %v5537 = vlaneseq
        %v5538 = vshrl.u32 %v5537, 7
        %v5539 = vsub.s32 6, %v5538
        %v5540 = vrot.slane %v5511, %v5539
        %v5548 = vmul.f32 %v5507, %v5516
        %v5549 = vmul.f32 %v5494, %v5520
        %v5550 = vmul.f32 %v5495, %v5524
        %v5551 = vmul.f32 %v5496, %v5528
        %v5552 = vmul.f32 %v5497, %v5532
        %v5553 = vmul.f32 %v5498, %v5536
        %v5554 = vmul.f32 %v5499, %v5540
        %v5555 = vadd.f32 %v5472, %v5548
        %v5556 = vadd.f32 %v5473, %v5549
        %v5557 = vadd.f32 %v5474, %v5550
        %v5558 = vadd.f32 %v5475, %v5551
        %v5559 = vadd.f32 %v5476, %v5552
        %v5560 = vadd.f32 %v5477, %v5553
        %v5561 = vadd.f32 %v5478, %v5554
        %5562 = vrot.lane.b32.xlu0 %v4642, 6
        %v5563 = vpop.permute.xlu0 %5562
        %5565 = vrot.lane.b32.xlu0 %v4630, 6
        %v5566 = vpop.permute.xlu0 %5565
        %5567 = vrot.lane.b32.xlu0 %v4632, 6
        %v5568 = vpop.permute.xlu0 %5567
        %5569 = vrot.lane.b32.xlu0 %v4634, 6
        %v5570 = vpop.permute.xlu0 %5569
        %5571 = vrot.lane.b32.xlu0 %v4636, 6
        %v5572 = vpop.permute.xlu0 %5571
        %5573 = vrot.lane.b32.xlu0 %v4638, 6
        %v5574 = vpop.permute.xlu0 %5573
        %5575 = vrot.lane.b32.xlu0 %v4640, 6
        %v5576 = vpop.permute.xlu0 %5575
        %v5577 = vsel %vm1296, %v5566, %v5568
        %v5578 = vsel %vm1296, %v5568, %v5570
        %v5579 = vsel %vm1296, %v5570, %v5572
        %v5580 = vsel %vm1296, %v5572, %v5574
        %v5581 = vsel %vm1296, %v5574, %v5576
        %v5582 = vsel %vm1296, %v5576, %v5563
        %v5590 = vsel %vm1296, %v5563, %v5566
        %s5591 = scalar_lea.vmem [#allocation10], 60
        %v5592 = vld [vmem:[%s5591] ss:$8 sm:$0xf]
        %v5593 = vld [vmem:[%s5591] ss:$8 sm:$0xf0]
        %v5594 = vor.u32 %v5592, %v5593
        %v5596 = vlaneseq
        %v5597 = vshrl.u32 %v5596, 7
        %v5598 = vsub.s32 0, %v5597
        %v5599 = vrot.slane %v5594, %v5598
        %v5600 = vlaneseq
        %v5601 = vshrl.u32 %v5600, 7
        %v5602 = vsub.s32 1, %v5601
        %v5603 = vrot.slane %v5594, %v5602
        %v5604 = vlaneseq
        %v5605 = vshrl.u32 %v5604, 7
        %v5606 = vsub.s32 2, %v5605
        %v5607 = vrot.slane %v5594, %v5606
        %v5608 = vlaneseq
        %v5609 = vshrl.u32 %v5608, 7
        %v5610 = vsub.s32 3, %v5609
        %v5611 = vrot.slane %v5594, %v5610
        %v5612 = vlaneseq
        %v5613 = vshrl.u32 %v5612, 7
        %v5614 = vsub.s32 4, %v5613
        %v5615 = vrot.slane %v5594, %v5614
        %v5616 = vlaneseq
        %v5617 = vshrl.u32 %v5616, 7
        %v5618 = vsub.s32 5, %v5617
        %v5619 = vrot.slane %v5594, %v5618
        %v5620 = vlaneseq
        %v5621 = vshrl.u32 %v5620, 7
        %v5622 = vsub.s32 6, %v5621
        %v5623 = vrot.slane %v5594, %v5622
        %v5631 = vmul.f32 %v5590, %v5599
        %v5632 = vmul.f32 %v5577, %v5603
        %v5633 = vmul.f32 %v5578, %v5607
        %v5634 = vmul.f32 %v5579, %v5611
        %v5635 = vmul.f32 %v5580, %v5615
        %v5636 = vmul.f32 %v5581, %v5619
        %v5637 = vmul.f32 %v5582, %v5623
        %v5638 = vadd.f32 %v5555, %v5631
        %v5639 = vadd.f32 %v5556, %v5632
        %v5640 = vadd.f32 %v5557, %v5633
        %v5641 = vadd.f32 %v5558, %v5634
        %v5642 = vadd.f32 %v5559, %v5635
        %v5643 = vadd.f32 %v5560, %v5636
        %v5644 = vadd.f32 %v5561, %v5637
        %v5645 = vrcp.pop %v5638
        %v5646 = vmul.f32 %v4630, %v5645
        %v5647 = vrcp.pop %v5639
        %v5648 = vmul.f32 %v4632, %v5647
        %v5649 = vrcp.pop %v5640
        %v5650 = vmul.f32 %v4634, %v5649
        %v5651 = vrcp.pop %v5641
        %v5652 = vmul.f32 %v4636, %v5651
        %v5653 = vrcp.pop %v5642
        %v5654 = vmul.f32 %v4638, %v5653
        %v5655 = vrcp.pop %v5643
        %v5656 = vmul.f32 %v4640, %v5655
        %v5657 = vrcp.pop %v5644
        %v5658 = vmul.f32 %v4642, %v5657
        %5659 = vst [vmem:[%s296] sm:$0xff] %v5646
        %5660 = vst [vmem:[%s296 + $0x8] sm:$0xff] %v5648
        %5661 = vst [vmem:[%s296 + $0x10] sm:$0xff] %v5650
        %5662 = vst [vmem:[%s296 + $0x18] sm:$0xff] %v5652
        %5663 = vst [vmem:[%s296 + $0x20] sm:$0xff] %v5654
        %5664 = vst [vmem:[%s296 + $0x28] sm:$0xff] %v5656
        %5665 = vst [vmem:[%s296 + $0x30] sm:$0xff] %v5658
        %s5666 = sand.u32 %s142, 1
        %s5667 = scalar_lea.sflag [#allocation4], %s5666
        %s5668 = sand.u32 %s142, 1
        %s5669 = smul.addr %s5668, 56
        %s5670 = scalar_lea.vmem [#allocation11], %s5669
        // Predicated region
        $region61: #{tpu_custom_call.1} parent=39 // pred_check
          %p5671 = pneg %p152
        $region62: #{tpu_custom_call.1} parent=39 // pred_check_branch
          %5673 = sbr.rel (%p5671) target = $region64
        $region63: #{tpu_custom_call.1} parent=39 // pred_region
          %s5675 = ssub.s32 896, 896
          %5676 = vsyncadd %s5667, %s5675
          %s5677 = smul.addr %s24, 7
          %s5678 = smul.addr %s5677, 128
          %s5679 = scalar_lea.hbm %s5, %s5678
          %s5681 = sshll.u32 %s5670, 4
          %s5682 = int_to_ptr.vmem [resolvable:$true] %s5681
          %5684 = dma.vmem_to_hbm [thread:$0]  %s5682, 896, %s5679, %s5667
        $region64: #{tpu_custom_call.1} parent=39 // pred_fallthru
          _
      $region40: #{tpu_custom_call.1} parent=5 // pred_fallthru
        _
      %p5685 = scmp.le.s32.totalorder 2, %s19
      // Predicated region
      $region65: #{tpu_custom_call.1} parent=5 // pred_check
        %p5686 = pneg %p5685
      $region66: #{tpu_custom_call.1} parent=5 // pred_check_branch
        %5688 = sbr.rel (%p5686) target = $region68
      $region67: #{tpu_custom_call.1} parent=5 // pred_region
        %s5689 = ssub.s32 %s19, 2
        // Predicated region
        $region69: #{tpu_custom_call.1} parent=67 // pred_check
          %p5690 = pneg %p158
        $region70: #{tpu_custom_call.1} parent=67 // pred_check_branch
          %5692 = sbr.rel (%p5690) target = $region72
        $region71: #{tpu_custom_call.1} parent=67 // pred_region
          %s5693 = sand.u32 %s143, 1
          %s5694 = scalar_lea.sflag [#allocation4], %s5693
          %s5695 = sand.u32 %s143, 1
          %s5696 = smul.addr %s5695, 56
          %s5697 = scalar_lea.vmem [#allocation11], %s5696
          %5698 = dma.done %s5694, 896
        $region72: #{tpu_custom_call.1} parent=67 // pred_fallthru
          _
      $region68: #{tpu_custom_call.1} parent=5 // pred_fallthru
        _
    $region6: #{tpu_custom_call.1} parent=1 // loop_footer
      %s23 = sadd.s32 1, %s19
    $region7: #{tpu_custom_call.1} parent=1 // loop_footer_branch
      %18 = sbr.rel target = $region3
    $region8: #{tpu_custom_call.1} parent=1 // loop_exit
      _
    %5699 = vsyncpa [#allocation3], 1
    %s5700 = scalar_lea.sflag [#allocation3], 1
    %5701 = vsyncpa %s5700, 1
    %5702 = vsyncpa [#allocation6], 1
    %5703 = vsyncpa [#allocation9], 1
    %5704 = vsyncpa [#allocation4], 1
    %s5705 = scalar_lea.sflag [#allocation4], 1
    %5706 = vsyncpa %s5705, 1

</llo_original>
